<compile_context>
chip_gen: v6e
topology: v6e:2x2x1
jax: 0.10.0
libtpu: 0.0.40
codegen_flags: <defaults>
</compile_context>

<pallas_src>
import math
import functools

import jax
import jax.numpy as jnp
from jax.experimental import pallas as pl
from jax.experimental.pallas import tpu as pltpu


# ----------------------------------------------------------------------------
# Kernel: one post-LN transformer encoder layer for `bt` batch elements
# ----------------------------------------------------------------------------
def _encoder_layer_kernel(nhead, bt,
                          x_ref,       # (bt*S, D)  f32
                          wqT_ref,     # (D, D)     bf16
                          wkT_ref,     # (D, D)     bf16
                          wvT_ref,     # (D, D)     bf16
                          woutT_ref,   # (D, D)     bf16
                          w1T_ref,     # (D, F)     bf16
                          w2T_ref,     # (F, D)     bf16
                          bb1_ref,     # (1, F)     f32   linear1.bias
                          vecs_ref,    # (9, D)     f32   [bq,bk,bv,bout,g1,be1,bb2,g2,be2]
                          o_ref,       # (bt*S, D)  f32
                          ctx_ref):    # (bt*S, D)  f32   VMEM scratch
    rows, D = x_ref.shape
    S = rows // bt
    hd = D // nhead
    scale = 1.0 / math.sqrt(hd)
    eps = 1e-5

    x = x_ref[...]                                   # (rows, D) f32
    x_bf = x.astype(jnp.bfloat16)

    # ---- Q/K/V projections: three N=D matmuls (no misaligned lane slices) ----
    q = jnp.dot(x_bf, wqT_ref[...], preferred_element_type=jnp.float32) + vecs_ref[0:1]
    k = jnp.dot(x_bf, wkT_ref[...], preferred_element_type=jnp.float32) + vecs_ref[1:2]
    v = jnp.dot(x_bf, wvT_ref[...], preferred_element_type=jnp.float32) + vecs_ref[2:3]
    q_bf = q.astype(jnp.bfloat16)
    k_bf = k.astype(jnp.bfloat16)
    v_bf = v.astype(jnp.bfloat16)

    # ---- per-head lane masks, hoisted out of the (b, h) loops ----
    lane = jax.lax.broadcasted_iota(jnp.int32, (1, D), 1)
    head_masks = [(lane >= h * hd) & (lane < (h + 1) * hd) for h in range(nhead)]
    zero_sd_bf = jnp.zeros((S, D), jnp.bfloat16)

    # ---- attention: all heads fused into one MXU pass per batch element ----
    for b in range(bt):                              # static, tiny
        r0 = b * S
        qb = q_bf[r0:r0 + S]                         # (S, D) bf16 (sublane slice)
        kb = k_bf[r0:r0 + S]
        vb = v_bf[r0:r0 + S]

        # Stack masked q_h along the row axis -> (nhead*S, D).
        q_stack = jnp.concatenate(
            [jnp.where(head_masks[h], qb, zero_sd_bf) for h in range(nhead)],
            axis=0)

        # scores_h = q_h @ k^T  (zeroed lanes drop out of the contraction)
        s = jax.lax.dot_general(q_stack, kb, (((1,), (1,)), ((), ())),
                                preferred_element_type=jnp.float32) * scale
        s = s - jnp.max(s, axis=-1, keepdims=True)   # per-row (= per-head) softmax
        p = jnp.exp(s)
        p = p * pl.reciprocal(jnp.sum(p, axis=-1, keepdims=True), approx=True)

        # Single (nhead*S, S) @ (S, D) matmul; row-block h only keeps head-h lanes.
        ctx_stack = jnp.dot(p.astype(jnp.bfloat16), vb,
                            preferred_element_type=jnp.float32)
        ctx = jnp.zeros((S, D), jnp.float32)
        for h in range(nhead):
            ctx = ctx + jnp.where(head_masks[h],
                                  ctx_stack[h * S:(h + 1) * S], 0.0)
        ctx_ref[r0:r0 + S, :] = ctx                  # scratch: no concat, short live ranges

    # ---- out-projection over all bt*S rows at once ----
    attn = (jnp.dot(ctx_ref[...].astype(jnp.bfloat16), woutT_ref[...],
                    preferred_element_type=jnp.float32)
            + vecs_ref[3:4])                          # + out_proj.bias

    # ---- residual + LayerNorm1 (post-LN), f32 ----
    y = x + attn
    mu = jnp.mean(y, axis=-1, keepdims=True)
    var = jnp.mean((y - mu) ** 2, axis=-1, keepdims=True)
    y = (y - mu) * jax.lax.rsqrt(var + eps) * vecs_ref[4:5] + vecs_ref[5:6]

    # ---- feed-forward (bf16 operands, f32 acc), ReLU in f32 ----
    h1 = (jnp.dot(y.astype(jnp.bfloat16), w1T_ref[...],
                  preferred_element_type=jnp.float32) + bb1_ref[...])
    h1 = jnp.maximum(h1, 0.0)
    z = (jnp.dot(h1.astype(jnp.bfloat16), w2T_ref[...],
                 preferred_element_type=jnp.float32) + vecs_ref[6:7])

    # ---- residual + LayerNorm2 ----
    y2 = y + z
    mu2 = jnp.mean(y2, axis=-1, keepdims=True)
    var2 = jnp.mean((y2 - mu2) ** 2, axis=-1, keepdims=True)
    out = (y2 - mu2) * jax.lax.rsqrt(var2 + eps) * vecs_ref[7:8] + vecs_ref[8:9]

    o_ref[...] = out.astype(o_ref.dtype)


# ----------------------------------------------------------------------------
# Generation-aware tiling helpers
# ----------------------------------------------------------------------------
def _tpu_config():
    """(num_tensorcores_per_device, target_rows) from the device kind."""
    try:
        kind = jax.devices()[0].device_kind.lower()
    except Exception:
        kind = ""
    # Dual-TC / megacore chips visible to one JAX device: v4, v5p, v7x.
    dual_tc = any(t in kind for t in ("v4", "v5p", "v7"))
    # v5e (and older v2/v3) have 128-row MXUs -> M~256 is enough; v6e/v7x prefer 512.
    small_mxu = any(t in kind for t in ("v5 lite", "v5e", "v5lite", "v2", "v3"))
    target_rows = 256 if small_mxu else 512
    return (2 if dual_tc else 1), target_rows


def _batch_tile(B, S, num_tc, target_rows):
    """Batch elements per grid step.

    Single-TC chips: fuse as many batches as the row budget allows (a multi-step
    grid is a pure serial loop there).  Dual-TC chips: keep >= num_tc parallel
    steps so the grid shards across TensorCores.
    """
    if S % 8 != 0:
        # Non-8-aligned seq length: one full block (block == full array dims,
        # exempt from the (8,128) divisibility rule).
        return B
    bt = max(1, min(B, max(1, target_rows // S)))
    while bt > 1 and (B % bt != 0 or (num_tc > 1 and B // bt < num_tc)):
        bt -= 1
    return bt


def _vmem_limit_bytes(rows, D, F):
    """Padded VMEM estimate for the pipeline buffers, clamped to a safe range."""
    def padded(r, c, itemsize):
        return (-(-r // 8) * 8) * (-(-c // 128) * 128) * itemsize
    total = 0
    total += 2 * 2 * padded(rows, D, 4)      # x block + out block, double-buffered
    total += padded(rows, D, 4)              # ctx scratch
    total += 2 * (4 * padded(D, D, 2) + padded(D, F, 2) + padded(F, D, 2))  # weights
    total += 2 * (padded(1, F, 4) + padded(9, D, 4))                        # biases
    total += 2 << 20                          # margin / internal scratch
    return int(min(max(total, 4 << 20), 32 << 20))


# ----------------------------------------------------------------------------
# Wrapper
# ----------------------------------------------------------------------------
def transformer_encoder_pallas(src_nchw, params, nhead):
    """src_nchw: (B, d_model, H, W) float32.  Returns (B, H*W, d_model) f32."""
    B, D, H, W = src_nchw.shape
    S = H * W
    # (B, D, H, W) -> (B, D, S) -> (B, S, D)  [flatten(-2).transpose(-2,-1)]
    x = jnp.transpose(src_nchw.reshape(B, D, S), (0, 2, 1)).astype(jnp.float32)
    x2d = x.reshape(B * S, D)                         # lane axis = D

    (win, bin_, wout, bout, g1, be1, w1, bb1, w2, bb2, g2, be2) = params
    F = w1.shape[0]

    # Wrapper-side weight split / pre-transpose / bf16 cast (done once by XLA).
    wqT = win[:D].T.astype(jnp.bfloat16)      # (D, D)
    wkT = win[D:2 * D].T.astype(jnp.bfloat16)
    wvT = win[2 * D:].T.astype(jnp.bfloat16)
    woutT = wout.T.astype(jnp.bfloat16)       # (D, D)
    w1T = w1.T.astype(jnp.bfloat16)           # (D, F)
    w2T = w2.T.astype(jnp.bfloat16)           # (F, D)

    bq = bin_[:, :D]
    bk = bin_[:, D:2 * D]
    bv = bin_[:, 2 * D:]
    # Pack the nine (1, D) bias / LayerNorm vectors into one slab.
    vecs = jnp.concatenate([bq, bk, bv, bout, g1, be1, bb2, g2, be2], axis=0)  # (9, D)

    num_tc, target_rows = _tpu_config()
    bt = _batch_tile(B, S, num_tc, target_rows)
    rows = bt * S
    grid = (B // bt,)

    const = lambda shape: pl.BlockSpec(shape, lambda i: tuple(0 for _ in shape))
    kernel = functools.partial(_encoder_layer_kernel, nhead, bt)

    out2d = pl.pallas_call(
        kernel,
        out_shape=jax.ShapeDtypeStruct((B * S, D), jnp.float32),
        grid_spec=pltpu.PrefetchScalarGridSpec(
            num_scalar_prefetch=0,
            grid=grid,
            in_specs=[
                pl.BlockSpec((rows, D), lambda i: (i, 0)),   # x (bt rows/step)
                const((D, D)),                               # wqT
                const((D, D)),                               # wkT
                const((D, D)),                               # wvT
                const((D, D)),                               # out_proj.weight.T
                const((D, F)),                               # linear1.weight.T
                const((F, D)),                               # linear2.weight.T
                const((1, F)),                               # linear1.bias
                const((9, D)),                               # packed vectors
            ],
            out_specs=pl.BlockSpec((rows, D), lambda i: (i, 0)),
            scratch_shapes=[pltpu.VMEM((rows, D), jnp.float32)],
        ),
        compiler_params=pltpu.CompilerParams(
            dimension_semantics=("parallel",),
            vmem_limit_bytes=_vmem_limit_bytes(rows, D, F)),
    )(x2d, wqT, wkT, wvT, woutT, w1T, w2T, bb1, vecs)
    return out2d.reshape(B, S, D)


# ----------------------------------------------------------------------------
# Pure-JAX f32 reference (same math) for a sanity check
# ----------------------------------------------------------------------------
def _reference(src_nchw, params, nhead):
    B, D, H, W = src_nchw.shape
    S = H * W
    x = jnp.transpose(src_nchw.reshape(B, D, S), (0, 2, 1)).astype(jnp.float32)
    (win, bin_, wout, bout, g1, be1, w1, bb1, w2, bb2, g2, be2) = params
    hd = D // nhead
    eps = 1e-5

    qkv = x @ win.T + bin_                                   # (B, S, 3D)
    q, k, v = qkv[..., :D], qkv[..., D:2 * D], qkv[..., 2 * D:]
    q = q.reshape(B, S, nhead, hd).transpose(0, 2, 1, 3)
    k = k.reshape(B, S, nhead, hd).transpose(0, 2, 1, 3)
    v = v.reshape(B, S, nhead, hd).transpose(0, 2, 1, 3)
    s = jnp.einsum("bhqd,bhkd->bhqk", q, k) / math.sqrt(hd)
    p = jax.nn.softmax(s, axis=-1)
    a = jnp.einsum("bhqk,bhkd->bhqd", p, v).transpose(0, 2, 1, 3).reshape(B, S, D)
    a = a @ wout.T + bout
    y = x + a
    mu = y.mean(-1, keepdims=True)
    var = ((y - mu) ** 2).mean(-1, keepdims=True)
    y = (y - mu) / jnp.sqrt(var + eps) * g1 + be1
    h1 = jnp.maximum(y @ w1.T + bb1, 0.0)
    z = h1 @ w2.T + bb2
    y2 = y + z
    mu2 = y2.mean(-1, keepdims=True)
    var2 = ((y2 - mu2) ** 2).mean(-1, keepdims=True)
    return (y2 - mu2) / jnp.sqrt(var2 + eps) * g2 + be2


# ----------------------------------------------------------------------------
# Parameter init (deterministic, synthetic)
# ----------------------------------------------------------------------------
def init_params(key, d_model, nhead, dim_ff):
    ks = jax.random.split(key, 8)

    def u(k, shape, fan_in):
        lim = 1.0 / math.sqrt(fan_in)
        return jax.random.uniform(k, shape, jnp.float32, -lim, lim)

    win = u(ks[0], (3 * d_model, d_model), d_model)
    bin_ = jnp.zeros((1, 3 * d_model), jnp.float32)
    wout = u(ks[1], (d_model, d_model), d_model)
    bout = u(ks[2], (1, d_model), d_model)
    g1 = jnp.ones((1, d_model), jnp.float32)
    be1 = jnp.zeros((1, d_model), jnp.float32)
    w1 = u(ks[3], (dim_ff, d_model), d_model)
    bb1 = u(ks[4], (1, dim_ff), d_model)
    w2 = u(ks[5], (d_model, dim_ff), dim_ff)
    bb2 = u(ks[6], (1, d_model), dim_ff)
    g2 = jnp.ones((1, d_model), jnp.float32)
    be2 = jnp.zeros((1, d_model), jnp.float32)
    return (win, bin_, wout, bout, g1, be1, w1, bb1, w2, bb2, g2, be2)


if __name__ == "__main__":
    B, d_model, H, W = 2, 32, 8, 8      # seq len S = 64
    nhead, dim_ff = 4, 64

    key = jax.random.PRNGKey(0)
    k_x, k_p = jax.random.split(key)
    src = jax.random.normal(k_x, (B, d_model, H, W), jnp.float32)
    params = init_params(k_p, d_model, nhead, dim_ff)

    out = transformer_encoder_pallas(src, params, nhead)
    out = jax.block_until_ready(out)

    ref = _reference(src, params, nhead)
    assert out.shape == (B, H * W, d_model)
    # bf16 MXU operands with f32 accumulation -> relaxed tolerance vs f32 ref.
    assert jnp.allclose(out, ref, atol=5e-2, rtol=5e-2), "mismatch vs reference"

    print("KERNEL_OK")
</pallas_src>

<mosaic_0001>
module attributes {stable_mosaic.version = 11 : i64} {
  func.func @_encoder_layer_kernel(%arg0: i32, %arg1: memref<128x32xf32, #tpu.memory_space<vmem>>, %arg2: memref<32x32xbf16, #tpu.memory_space<vmem>>, %arg3: memref<32x32xbf16, #tpu.memory_space<vmem>>, %arg4: memref<32x32xbf16, #tpu.memory_space<vmem>>, %arg5: memref<32x32xbf16, #tpu.memory_space<vmem>>, %arg6: memref<32x64xbf16, #tpu.memory_space<vmem>>, %arg7: memref<64x32xbf16, #tpu.memory_space<vmem>>, %arg8: memref<1x64xf32, #tpu.memory_space<vmem>>, %arg9: memref<9x32xf32, #tpu.memory_space<vmem>>, %arg10: memref<128x32xf32, #tpu.memory_space<vmem>>, %arg11: memref<128x32xf32, #tpu.memory_space<vmem>>) attributes {dimension_semantics = [#tpu.dimension_semantics<parallel>], iteration_bounds = array<i64: 1>, scalar_prefetch = 0 : i64, scratch_operands = 1 : i64, tpu.core_type = #tpu.core_type<tc>, window_params = [{transform_indices = @transform_0, window_bounds = array<i64: 128, 32>}, {pipeline_mode = #tpu.pipeline_mode<synchronous>, transform_indices = @transform_1, window_bounds = array<i64: 32, 32>}, {pipeline_mode = #tpu.pipeline_mode<synchronous>, transform_indices = @transform_2, window_bounds = array<i64: 32, 32>}, {pipeline_mode = #tpu.pipeline_mode<synchronous>, transform_indices = @transform_3, window_bounds = array<i64: 32, 32>}, {pipeline_mode = #tpu.pipeline_mode<synchronous>, transform_indices = @transform_4, window_bounds = array<i64: 32, 32>}, {pipeline_mode = #tpu.pipeline_mode<synchronous>, transform_indices = @transform_5, window_bounds = array<i64: 32, 64>}, {pipeline_mode = #tpu.pipeline_mode<synchronous>, transform_indices = @transform_6, window_bounds = array<i64: 64, 32>}, {pipeline_mode = #tpu.pipeline_mode<synchronous>, transform_indices = @transform_7, window_bounds = array<i64: 1, 64>}, {pipeline_mode = #tpu.pipeline_mode<synchronous>, transform_indices = @transform_8, window_bounds = array<i64: 9, 32>}, {transform_indices = @transform_9, window_bounds = array<i64: 128, 32>}]} {
    %c0 = arith.constant 0 : index
    %c0_0 = arith.constant 0 : index
    %0 = vector.load %arg1[%c0, %c0_0] : memref<128x32xf32, #tpu.memory_space<vmem>>, vector<128x32xf32>
    %1 = arith.truncf %0 : vector<128x32xf32> to vector<128x32xbf16>
    %c0_1 = arith.constant 0 : index
    %c0_2 = arith.constant 0 : index
    %2 = vector.load %arg2[%c0_1, %c0_2] : memref<32x32xbf16, #tpu.memory_space<vmem>>, vector<32x32xbf16>
    %cst = arith.constant dense<0.000000e+00> : vector<128x32xf32>
    %3 = tpu.matmul %1, %2, %cst {dimension_numbers = #tpu.dot_dimension_numbers<[1], [0], [0], [1], [0, 0, 1, 1], [], []>} : vector<128x32xbf16>, vector<32x32xbf16>, vector<128x32xf32> -> vector<128x32xf32>
    %c0_3 = arith.constant 0 : index
    %c0_4 = arith.constant 0 : index
    %4 = vector.load %arg9[%c0_3, %c0_4] : memref<9x32xf32, #tpu.memory_space<vmem>>, vector<1x32xf32>
    %5 = vector.broadcast %4 : vector<1x32xf32> to vector<128x32xf32>
    %6 = arith.addf %3, %5 : vector<128x32xf32>
    %c0_5 = arith.constant 0 : index
    %c0_6 = arith.constant 0 : index
    %7 = vector.load %arg3[%c0_5, %c0_6] : memref<32x32xbf16, #tpu.memory_space<vmem>>, vector<32x32xbf16>
    %cst_7 = arith.constant dense<0.000000e+00> : vector<128x32xf32>
    %8 = tpu.matmul %1, %7, %cst_7 {dimension_numbers = #tpu.dot_dimension_numbers<[1], [0], [0], [1], [0, 0, 1, 1], [], []>} : vector<128x32xbf16>, vector<32x32xbf16>, vector<128x32xf32> -> vector<128x32xf32>
    %c1 = arith.constant 1 : index
    %c0_8 = arith.constant 0 : index
    %9 = vector.load %arg9[%c1, %c0_8] : memref<9x32xf32, #tpu.memory_space<vmem>>, vector<1x32xf32>
    %10 = vector.broadcast %9 : vector<1x32xf32> to vector<128x32xf32>
    %11 = arith.addf %8, %10 : vector<128x32xf32>
    %c0_9 = arith.constant 0 : index
    %c0_10 = arith.constant 0 : index
    %12 = vector.load %arg4[%c0_9, %c0_10] : memref<32x32xbf16, #tpu.memory_space<vmem>>, vector<32x32xbf16>
    %cst_11 = arith.constant dense<0.000000e+00> : vector<128x32xf32>
    %13 = tpu.matmul %1, %12, %cst_11 {dimension_numbers = #tpu.dot_dimension_numbers<[1], [0], [0], [1], [0, 0, 1, 1], [], []>} : vector<128x32xbf16>, vector<32x32xbf16>, vector<128x32xf32> -> vector<128x32xf32>
    %c2 = arith.constant 2 : index
    %c0_12 = arith.constant 0 : index
    %14 = vector.load %arg9[%c2, %c0_12] : memref<9x32xf32, #tpu.memory_space<vmem>>, vector<1x32xf32>
    %15 = vector.broadcast %14 : vector<1x32xf32> to vector<128x32xf32>
    %16 = arith.addf %13, %15 : vector<128x32xf32>
    %17 = arith.truncf %6 : vector<128x32xf32> to vector<128x32xbf16>
    %18 = arith.truncf %11 : vector<128x32xf32> to vector<128x32xbf16>
    %19 = arith.truncf %16 : vector<128x32xf32> to vector<128x32xbf16>
    %20 = tpu.iota {dimensions = array<i32: 1>} : vector<1x32xi32>
    %c0_i32 = arith.constant 0 : i32
    %21 = vector.broadcast %c0_i32 : i32 to vector<1x32xi32>
    %22 = arith.cmpi sge, %20, %21 : vector<1x32xi32>
    %c8_i32 = arith.constant 8 : i32
    %23 = vector.broadcast %c8_i32 : i32 to vector<1x32xi32>
    %24 = arith.cmpi slt, %20, %23 : vector<1x32xi32>
    %25 = arith.andi %22, %24 : vector<1x32xi1>
    %c8_i32_13 = arith.constant 8 : i32
    %26 = vector.broadcast %c8_i32_13 : i32 to vector<1x32xi32>
    %27 = arith.cmpi sge, %20, %26 : vector<1x32xi32>
    %c16_i32 = arith.constant 16 : i32
    %28 = vector.broadcast %c16_i32 : i32 to vector<1x32xi32>
    %29 = arith.cmpi slt, %20, %28 : vector<1x32xi32>
    %30 = arith.andi %27, %29 : vector<1x32xi1>
    %c16_i32_14 = arith.constant 16 : i32
    %31 = vector.broadcast %c16_i32_14 : i32 to vector<1x32xi32>
    %32 = arith.cmpi sge, %20, %31 : vector<1x32xi32>
    %c24_i32 = arith.constant 24 : i32
    %33 = vector.broadcast %c24_i32 : i32 to vector<1x32xi32>
    %34 = arith.cmpi slt, %20, %33 : vector<1x32xi32>
    %35 = arith.andi %32, %34 : vector<1x32xi1>
    %c24_i32_15 = arith.constant 24 : i32
    %36 = vector.broadcast %c24_i32_15 : i32 to vector<1x32xi32>
    %37 = arith.cmpi sge, %20, %36 : vector<1x32xi32>
    %c32_i32 = arith.constant 32 : i32
    %38 = vector.broadcast %c32_i32 : i32 to vector<1x32xi32>
    %39 = arith.cmpi slt, %20, %38 : vector<1x32xi32>
    %40 = arith.andi %37, %39 : vector<1x32xi1>
    %cst_16 = arith.constant 0.000000e+00 : bf16
    %41 = vector.broadcast %cst_16 : bf16 to vector<64x32xbf16>
    %42 = vector.extract_strided_slice %17 {offsets = [0, 0], sizes = [64, 32], strides = [1, 1]} : vector<128x32xbf16> to vector<64x32xbf16>
    %43 = vector.extract_strided_slice %18 {offsets = [0, 0], sizes = [64, 32], strides = [1, 1]} : vector<128x32xbf16> to vector<64x32xbf16>
    %44 = vector.extract_strided_slice %19 {offsets = [0, 0], sizes = [64, 32], strides = [1, 1]} : vector<128x32xbf16> to vector<64x32xbf16>
    %45 = vector.shape_cast %25 : vector<1x32xi1> to vector<1x32xi1>
    %46 = vector.broadcast %45 : vector<1x32xi1> to vector<64x32xi1>
    %47 = arith.select %46, %42, %41 : vector<64x32xi1>, vector<64x32xbf16>
    %48 = vector.shape_cast %30 : vector<1x32xi1> to vector<1x32xi1>
    %49 = vector.broadcast %48 : vector<1x32xi1> to vector<64x32xi1>
    %50 = arith.select %49, %42, %41 : vector<64x32xi1>, vector<64x32xbf16>
    %51 = vector.shape_cast %35 : vector<1x32xi1> to vector<1x32xi1>
    %52 = vector.broadcast %51 : vector<1x32xi1> to vector<64x32xi1>
    %53 = arith.select %52, %42, %41 : vector<64x32xi1>, vector<64x32xbf16>
    %54 = vector.shape_cast %40 : vector<1x32xi1> to vector<1x32xi1>
    %55 = vector.broadcast %54 : vector<1x32xi1> to vector<64x32xi1>
    %56 = arith.select %55, %42, %41 : vector<64x32xi1>, vector<64x32xbf16>
    %57 = tpu.concatenate %47, %50, %53, %56 in 0 : vector<64x32xbf16>, vector<64x32xbf16>, vector<64x32xbf16>, vector<64x32xbf16> -> vector<256x32xbf16>
    %cst_17 = arith.constant dense<0.000000e+00> : vector<256x64xf32>
    %58 = tpu.matmul %57, %43, %cst_17 {dimension_numbers = #tpu.dot_dimension_numbers<[1], [1], [0], [0], [0, 0, 1, 0], [], []>} : vector<256x32xbf16>, vector<64x32xbf16>, vector<256x64xf32> -> vector<256x64xf32>
    %cst_18 = arith.constant 0.353553385 : f32
    %59 = vector.broadcast %cst_18 : f32 to vector<256x64xf32>
    %60 = arith.mulf %58, %59 : vector<256x64xf32>
    %cst_19 = arith.constant dense<0xFF800000> : vector<256xf32>
    %61 = vector.multi_reduction <maximumf>, %60, %cst_19 [1] : vector<256x64xf32> to vector<256xf32>
    %62 = vector.shape_cast %61 : vector<256xf32> to vector<256x1xf32>
    %63 = vector.broadcast %62 : vector<256x1xf32> to vector<256x64xf32>
    %64 = arith.subf %60, %63 : vector<256x64xf32>
    %65 = math.exp %64 : vector<256x64xf32>
    %cst_20 = arith.constant dense<0.000000e+00> : vector<256xf32>
    %66 = vector.multi_reduction <add>, %65, %cst_20 [1] : vector<256x64xf32> to vector<256xf32>
    %67 = vector.shape_cast %66 : vector<256xf32> to vector<256x1xf32>
    %68 = tpu.reciprocal %67 {approx = true} : vector<256x1xf32> -> vector<256x1xf32>
    %69 = vector.broadcast %68 : vector<256x1xf32> to vector<256x64xf32>
    %70 = arith.mulf %65, %69 : vector<256x64xf32>
    %71 = arith.truncf %70 : vector<256x64xf32> to vector<256x64xbf16>
    %cst_21 = arith.constant dense<0.000000e+00> : vector<256x32xf32>
    %72 = tpu.matmul %71, %44, %cst_21 {dimension_numbers = #tpu.dot_dimension_numbers<[1], [0], [0], [1], [0, 0, 1, 1], [], []>} : vector<256x64xbf16>, vector<64x32xbf16>, vector<256x32xf32> -> vector<256x32xf32>
    %cst_22 = arith.constant 0.000000e+00 : f32
    %73 = vector.broadcast %cst_22 : f32 to vector<64x32xf32>
    %74 = vector.extract_strided_slice %72 {offsets = [0, 0], sizes = [64, 32], strides = [1, 1]} : vector<256x32xf32> to vector<64x32xf32>
    %cst_23 = arith.constant 0.000000e+00 : f32
    %75 = vector.shape_cast %25 : vector<1x32xi1> to vector<1x32xi1>
    %76 = vector.broadcast %75 : vector<1x32xi1> to vector<64x32xi1>
    %77 = vector.broadcast %cst_23 : f32 to vector<64x32xf32>
    %78 = arith.select %76, %74, %77 : vector<64x32xi1>, vector<64x32xf32>
    %79 = arith.addf %73, %78 : vector<64x32xf32>
    %80 = vector.extract_strided_slice %72 {offsets = [64, 0], sizes = [64, 32], strides = [1, 1]} : vector<256x32xf32> to vector<64x32xf32>
    %cst_24 = arith.constant 0.000000e+00 : f32
    %81 = vector.shape_cast %30 : vector<1x32xi1> to vector<1x32xi1>
    %82 = vector.broadcast %81 : vector<1x32xi1> to vector<64x32xi1>
    %83 = vector.broadcast %cst_24 : f32 to vector<64x32xf32>
    %84 = arith.select %82, %80, %83 : vector<64x32xi1>, vector<64x32xf32>
    %85 = arith.addf %79, %84 : vector<64x32xf32>
    %86 = vector.extract_strided_slice %72 {offsets = [128, 0], sizes = [64, 32], strides = [1, 1]} : vector<256x32xf32> to vector<64x32xf32>
    %cst_25 = arith.constant 0.000000e+00 : f32
    %87 = vector.shape_cast %35 : vector<1x32xi1> to vector<1x32xi1>
    %88 = vector.broadcast %87 : vector<1x32xi1> to vector<64x32xi1>
    %89 = vector.broadcast %cst_25 : f32 to vector<64x32xf32>
    %90 = arith.select %88, %86, %89 : vector<64x32xi1>, vector<64x32xf32>
    %91 = arith.addf %85, %90 : vector<64x32xf32>
    %92 = vector.extract_strided_slice %72 {offsets = [192, 0], sizes = [64, 32], strides = [1, 1]} : vector<256x32xf32> to vector<64x32xf32>
    %cst_26 = arith.constant 0.000000e+00 : f32
    %93 = vector.shape_cast %40 : vector<1x32xi1> to vector<1x32xi1>
    %94 = vector.broadcast %93 : vector<1x32xi1> to vector<64x32xi1>
    %95 = vector.broadcast %cst_26 : f32 to vector<64x32xf32>
    %96 = arith.select %94, %92, %95 : vector<64x32xi1>, vector<64x32xf32>
    %97 = arith.addf %91, %96 : vector<64x32xf32>
    %c0_27 = arith.constant 0 : index
    %c0_28 = arith.constant 0 : index
    %98 = vector.load %arg11[%c0_27, %c0_28] : memref<128x32xf32, #tpu.memory_space<vmem>>, vector<64x32xf32>
    tpu.vector_store %arg11[%c0_27, %c0_28], %97 {strides = array<i32>} : memref<128x32xf32, #tpu.memory_space<vmem>>, vector<64x32xf32>,
    %99 = vector.extract_strided_slice %17 {offsets = [64, 0], sizes = [64, 32], strides = [1, 1]} : vector<128x32xbf16> to vector<64x32xbf16>
    %100 = vector.extract_strided_slice %18 {offsets = [64, 0], sizes = [64, 32], strides = [1, 1]} : vector<128x32xbf16> to vector<64x32xbf16>
    %101 = vector.extract_strided_slice %19 {offsets = [64, 0], sizes = [64, 32], strides = [1, 1]} : vector<128x32xbf16> to vector<64x32xbf16>
    %102 = vector.shape_cast %25 : vector<1x32xi1> to vector<1x32xi1>
    %103 = vector.broadcast %102 : vector<1x32xi1> to vector<64x32xi1>
    %104 = arith.select %103, %99, %41 : vector<64x32xi1>, vector<64x32xbf16>
    %105 = vector.shape_cast %30 : vector<1x32xi1> to vector<1x32xi1>
    %106 = vector.broadcast %105 : vector<1x32xi1> to vector<64x32xi1>
    %107 = arith.select %106, %99, %41 : vector<64x32xi1>, vector<64x32xbf16>
    %108 = vector.shape_cast %35 : vector<1x32xi1> to vector<1x32xi1>
    %109 = vector.broadcast %108 : vector<1x32xi1> to vector<64x32xi1>
    %110 = arith.select %109, %99, %41 : vector<64x32xi1>, vector<64x32xbf16>
    %111 = vector.shape_cast %40 : vector<1x32xi1> to vector<1x32xi1>
    %112 = vector.broadcast %111 : vector<1x32xi1> to vector<64x32xi1>
    %113 = arith.select %112, %99, %41 : vector<64x32xi1>, vector<64x32xbf16>
    %114 = tpu.concatenate %104, %107, %110, %113 in 0 : vector<64x32xbf16>, vector<64x32xbf16>, vector<64x32xbf16>, vector<64x32xbf16> -> vector<256x32xbf16>
    %cst_29 = arith.constant dense<0.000000e+00> : vector<256x64xf32>
    %115 = tpu.matmul %114, %100, %cst_29 {dimension_numbers = #tpu.dot_dimension_numbers<[1], [1], [0], [0], [0, 0, 1, 0], [], []>} : vector<256x32xbf16>, vector<64x32xbf16>, vector<256x64xf32> -> vector<256x64xf32>
    %cst_30 = arith.constant 0.353553385 : f32
    %116 = vector.broadcast %cst_30 : f32 to vector<256x64xf32>
    %117 = arith.mulf %115, %116 : vector<256x64xf32>
    %cst_31 = arith.constant dense<0xFF800000> : vector<256xf32>
    %118 = vector.multi_reduction <maximumf>, %117, %cst_31 [1] : vector<256x64xf32> to vector<256xf32>
    %119 = vector.shape_cast %118 : vector<256xf32> to vector<256x1xf32>
    %120 = vector.broadcast %119 : vector<256x1xf32> to vector<256x64xf32>
    %121 = arith.subf %117, %120 : vector<256x64xf32>
    %122 = math.exp %121 : vector<256x64xf32>
    %cst_32 = arith.constant dense<0.000000e+00> : vector<256xf32>
    %123 = vector.multi_reduction <add>, %122, %cst_32 [1] : vector<256x64xf32> to vector<256xf32>
    %124 = vector.shape_cast %123 : vector<256xf32> to vector<256x1xf32>
    %125 = tpu.reciprocal %124 {approx = true} : vector<256x1xf32> -> vector<256x1xf32>
    %126 = vector.broadcast %125 : vector<256x1xf32> to vector<256x64xf32>
    %127 = arith.mulf %122, %126 : vector<256x64xf32>
    %128 = arith.truncf %127 : vector<256x64xf32> to vector<256x64xbf16>
    %cst_33 = arith.constant dense<0.000000e+00> : vector<256x32xf32>
    %129 = tpu.matmul %128, %101, %cst_33 {dimension_numbers = #tpu.dot_dimension_numbers<[1], [0], [0], [1], [0, 0, 1, 1], [], []>} : vector<256x64xbf16>, vector<64x32xbf16>, vector<256x32xf32> -> vector<256x32xf32>
    %cst_34 = arith.constant 0.000000e+00 : f32
    %130 = vector.broadcast %cst_34 : f32 to vector<64x32xf32>
    %131 = vector.extract_strided_slice %129 {offsets = [0, 0], sizes = [64, 32], strides = [1, 1]} : vector<256x32xf32> to vector<64x32xf32>
    %cst_35 = arith.constant 0.000000e+00 : f32
    %132 = vector.shape_cast %25 : vector<1x32xi1> to vector<1x32xi1>
    %133 = vector.broadcast %132 : vector<1x32xi1> to vector<64x32xi1>
    %134 = vector.broadcast %cst_35 : f32 to vector<64x32xf32>
    %135 = arith.select %133, %131, %134 : vector<64x32xi1>, vector<64x32xf32>
    %136 = arith.addf %130, %135 : vector<64x32xf32>
    %137 = vector.extract_strided_slice %129 {offsets = [64, 0], sizes = [64, 32], strides = [1, 1]} : vector<256x32xf32> to vector<64x32xf32>
    %cst_36 = arith.constant 0.000000e+00 : f32
    %138 = vector.shape_cast %30 : vector<1x32xi1> to vector<1x32xi1>
    %139 = vector.broadcast %138 : vector<1x32xi1> to vector<64x32xi1>
    %140 = vector.broadcast %cst_36 : f32 to vector<64x32xf32>
    %141 = arith.select %139, %137, %140 : vector<64x32xi1>, vector<64x32xf32>
    %142 = arith.addf %136, %141 : vector<64x32xf32>
    %143 = vector.extract_strided_slice %129 {offsets = [128, 0], sizes = [64, 32], strides = [1, 1]} : vector<256x32xf32> to vector<64x32xf32>
    %cst_37 = arith.constant 0.000000e+00 : f32
    %144 = vector.shape_cast %35 : vector<1x32xi1> to vector<1x32xi1>
    %145 = vector.broadcast %144 : vector<1x32xi1> to vector<64x32xi1>
    %146 = vector.broadcast %cst_37 : f32 to vector<64x32xf32>
    %147 = arith.select %145, %143, %146 : vector<64x32xi1>, vector<64x32xf32>
    %148 = arith.addf %142, %147 : vector<64x32xf32>
    %149 = vector.extract_strided_slice %129 {offsets = [192, 0], sizes = [64, 32], strides = [1, 1]} : vector<256x32xf32> to vector<64x32xf32>
    %cst_38 = arith.constant 0.000000e+00 : f32
    %150 = vector.shape_cast %40 : vector<1x32xi1> to vector<1x32xi1>
    %151 = vector.broadcast %150 : vector<1x32xi1> to vector<64x32xi1>
    %152 = vector.broadcast %cst_38 : f32 to vector<64x32xf32>
    %153 = arith.select %151, %149, %152 : vector<64x32xi1>, vector<64x32xf32>
    %154 = arith.addf %148, %153 : vector<64x32xf32>
    %c64 = arith.constant 64 : index
    %c0_39 = arith.constant 0 : index
    %155 = vector.load %arg11[%c64, %c0_39] : memref<128x32xf32, #tpu.memory_space<vmem>>, vector<64x32xf32>
    tpu.vector_store %arg11[%c64, %c0_39], %154 {strides = array<i32>} : memref<128x32xf32, #tpu.memory_space<vmem>>, vector<64x32xf32>,
    %c0_40 = arith.constant 0 : index
    %c0_41 = arith.constant 0 : index
    %156 = vector.load %arg11[%c0_40, %c0_41] : memref<128x32xf32, #tpu.memory_space<vmem>>, vector<128x32xf32>
    %157 = arith.truncf %156 : vector<128x32xf32> to vector<128x32xbf16>
    %c0_42 = arith.constant 0 : index
    %c0_43 = arith.constant 0 : index
    %158 = vector.load %arg5[%c0_42, %c0_43] : memref<32x32xbf16, #tpu.memory_space<vmem>>, vector<32x32xbf16>
    %cst_44 = arith.constant dense<0.000000e+00> : vector<128x32xf32>
    %159 = tpu.matmul %157, %158, %cst_44 {dimension_numbers = #tpu.dot_dimension_numbers<[1], [0], [0], [1], [0, 0, 1, 1], [], []>} : vector<128x32xbf16>, vector<32x32xbf16>, vector<128x32xf32> -> vector<128x32xf32>
    %c3 = arith.constant 3 : index
    %c0_45 = arith.constant 0 : index
    %160 = vector.load %arg9[%c3, %c0_45] : memref<9x32xf32, #tpu.memory_space<vmem>>, vector<1x32xf32>
    %161 = vector.broadcast %160 : vector<1x32xf32> to vector<128x32xf32>
    %162 = arith.addf %159, %161 : vector<128x32xf32>
    %163 = arith.addf %0, %162 : vector<128x32xf32>
    %cst_46 = arith.constant dense<0.000000e+00> : vector<128xf32>
    %164 = vector.multi_reduction <add>, %163, %cst_46 [1] : vector<128x32xf32> to vector<128xf32>
    %165 = vector.shape_cast %164 : vector<128xf32> to vector<128x1xf32>
    %cst_47 = arith.constant 3.200000e+01 : f32
    %166 = vector.broadcast %cst_47 : f32 to vector<128x1xf32>
    %167 = arith.divf %165, %166 : vector<128x1xf32>
    %168 = vector.broadcast %167 : vector<128x1xf32> to vector<128x32xf32>
    %169 = arith.subf %163, %168 : vector<128x32xf32>
    %170 = arith.mulf %169, %169 : vector<128x32xf32>
    %cst_48 = arith.constant dense<0.000000e+00> : vector<128xf32>
    %171 = vector.multi_reduction <add>, %170, %cst_48 [1] : vector<128x32xf32> to vector<128xf32>
    %172 = vector.shape_cast %171 : vector<128xf32> to vector<128x1xf32>
    %cst_49 = arith.constant 3.200000e+01 : f32
    %173 = vector.broadcast %cst_49 : f32 to vector<128x1xf32>
    %174 = arith.divf %172, %173 : vector<128x1xf32>
    %175 = vector.broadcast %167 : vector<128x1xf32> to vector<128x32xf32>
    %176 = arith.subf %163, %175 : vector<128x32xf32>
    %cst_50 = arith.constant 9.99999974E-6 : f32
    %177 = vector.broadcast %cst_50 : f32 to vector<128x1xf32>
    %178 = arith.addf %174, %177 : vector<128x1xf32>
    %179 = math.rsqrt %178 : vector<128x1xf32>
    %180 = vector.broadcast %179 : vector<128x1xf32> to vector<128x32xf32>
    %181 = arith.mulf %176, %180 : vector<128x32xf32>
    %c4 = arith.constant 4 : index
    %c0_51 = arith.constant 0 : index
    %182 = vector.load %arg9[%c4, %c0_51] : memref<9x32xf32, #tpu.memory_space<vmem>>, vector<1x32xf32>
    %183 = vector.broadcast %182 : vector<1x32xf32> to vector<128x32xf32>
    %184 = arith.mulf %181, %183 : vector<128x32xf32>
    %c5 = arith.constant 5 : index
    %c0_52 = arith.constant 0 : index
    %185 = vector.load %arg9[%c5, %c0_52] : memref<9x32xf32, #tpu.memory_space<vmem>>, vector<1x32xf32>
    %186 = vector.broadcast %185 : vector<1x32xf32> to vector<128x32xf32>
    %187 = arith.addf %184, %186 : vector<128x32xf32>
    %188 = arith.truncf %187 : vector<128x32xf32> to vector<128x32xbf16>
    %c0_53 = arith.constant 0 : index
    %c0_54 = arith.constant 0 : index
    %189 = vector.load %arg6[%c0_53, %c0_54] : memref<32x64xbf16, #tpu.memory_space<vmem>>, vector<32x64xbf16>
    %cst_55 = arith.constant dense<0.000000e+00> : vector<128x64xf32>
    %190 = tpu.matmul %188, %189, %cst_55 {dimension_numbers = #tpu.dot_dimension_numbers<[1], [0], [0], [1], [0, 0, 1, 1], [], []>} : vector<128x32xbf16>, vector<32x64xbf16>, vector<128x64xf32> -> vector<128x64xf32>
    %c0_56 = arith.constant 0 : index
    %c0_57 = arith.constant 0 : index
    %191 = vector.load %arg8[%c0_56, %c0_57] : memref<1x64xf32, #tpu.memory_space<vmem>>, vector<1x64xf32>
    %192 = vector.broadcast %191 : vector<1x64xf32> to vector<128x64xf32>
    %193 = arith.addf %190, %192 : vector<128x64xf32>
    %cst_58 = arith.constant 0.000000e+00 : f32
    %194 = vector.broadcast %cst_58 : f32 to vector<128x64xf32>
    %195 = arith.maximumf %193, %194 : vector<128x64xf32>
    %196 = arith.truncf %195 : vector<128x64xf32> to vector<128x64xbf16>
    %c0_59 = arith.constant 0 : index
    %c0_60 = arith.constant 0 : index
    %197 = vector.load %arg7[%c0_59, %c0_60] : memref<64x32xbf16, #tpu.memory_space<vmem>>, vector<64x32xbf16>
    %cst_61 = arith.constant dense<0.000000e+00> : vector<128x32xf32>
    %198 = tpu.matmul %196, %197, %cst_61 {dimension_numbers = #tpu.dot_dimension_numbers<[1], [0], [0], [1], [0, 0, 1, 1], [], []>} : vector<128x64xbf16>, vector<64x32xbf16>, vector<128x32xf32> -> vector<128x32xf32>
    %c6 = arith.constant 6 : index
    %c0_62 = arith.constant 0 : index
    %199 = vector.load %arg9[%c6, %c0_62] : memref<9x32xf32, #tpu.memory_space<vmem>>, vector<1x32xf32>
    %200 = vector.broadcast %199 : vector<1x32xf32> to vector<128x32xf32>
    %201 = arith.addf %198, %200 : vector<128x32xf32>
    %202 = arith.addf %187, %201 : vector<128x32xf32>
    %cst_63 = arith.constant dense<0.000000e+00> : vector<128xf32>
    %203 = vector.multi_reduction <add>, %202, %cst_63 [1] : vector<128x32xf32> to vector<128xf32>
    %204 = vector.shape_cast %203 : vector<128xf32> to vector<128x1xf32>
    %cst_64 = arith.constant 3.200000e+01 : f32
    %205 = vector.broadcast %cst_64 : f32 to vector<128x1xf32>
    %206 = arith.divf %204, %205 : vector<128x1xf32>
    %207 = vector.broadcast %206 : vector<128x1xf32> to vector<128x32xf32>
    %208 = arith.subf %202, %207 : vector<128x32xf32>
    %209 = arith.mulf %208, %208 : vector<128x32xf32>
    %cst_65 = arith.constant dense<0.000000e+00> : vector<128xf32>
    %210 = vector.multi_reduction <add>, %209, %cst_65 [1] : vector<128x32xf32> to vector<128xf32>
    %211 = vector.shape_cast %210 : vector<128xf32> to vector<128x1xf32>
    %cst_66 = arith.constant 3.200000e+01 : f32
    %212 = vector.broadcast %cst_66 : f32 to vector<128x1xf32>
    %213 = arith.divf %211, %212 : vector<128x1xf32>
    %214 = vector.broadcast %206 : vector<128x1xf32> to vector<128x32xf32>
    %215 = arith.subf %202, %214 : vector<128x32xf32>
    %cst_67 = arith.constant 9.99999974E-6 : f32
    %216 = vector.broadcast %cst_67 : f32 to vector<128x1xf32>
    %217 = arith.addf %213, %216 : vector<128x1xf32>
    %218 = math.rsqrt %217 : vector<128x1xf32>
    %219 = vector.broadcast %218 : vector<128x1xf32> to vector<128x32xf32>
    %220 = arith.mulf %215, %219 : vector<128x32xf32>
    %c7 = arith.constant 7 : index
    %c0_68 = arith.constant 0 : index
    %221 = vector.load %arg9[%c7, %c0_68] : memref<9x32xf32, #tpu.memory_space<vmem>>, vector<1x32xf32>
    %222 = vector.broadcast %221 : vector<1x32xf32> to vector<128x32xf32>
    %223 = arith.mulf %220, %222 : vector<128x32xf32>
    %c8 = arith.constant 8 : index
    %c0_69 = arith.constant 0 : index
    %224 = vector.load %arg9[%c8, %c0_69] : memref<9x32xf32, #tpu.memory_space<vmem>>, vector<1x32xf32>
    %225 = vector.broadcast %224 : vector<1x32xf32> to vector<128x32xf32>
    %226 = arith.addf %223, %225 : vector<128x32xf32>
    %c0_70 = arith.constant 0 : index
    %c0_71 = arith.constant 0 : index
    %227 = vector.load %arg10[%c0_70, %c0_71] : memref<128x32xf32, #tpu.memory_space<vmem>>, vector<128x32xf32>
    tpu.vector_store %arg10[%c0_70, %c0_71], %226 {strides = array<i32>} : memref<128x32xf32, #tpu.memory_space<vmem>>, vector<128x32xf32>,
    return
  }
  func.func @transform_0(%arg0: i32) -> (i32, i32) {
    %c0_i32 = arith.constant 0 : i32
    %c0_i32_0 = arith.constant 0 : i32
    return %arg0, %c0_i32 : i32, i32
  }
  func.func @transform_1(%arg0: i32) -> (i32, i32) {
    %c0_i32 = arith.constant 0 : i32
    %c0_i32_0 = arith.constant 0 : i32
    %c0_i32_1 = arith.constant 0 : i32
    return %c0_i32, %c0_i32_0 : i32, i32
  }
  func.func @transform_2(%arg0: i32) -> (i32, i32) {
    %c0_i32 = arith.constant 0 : i32
    %c0_i32_0 = arith.constant 0 : i32
    %c0_i32_1 = arith.constant 0 : i32
    return %c0_i32, %c0_i32_0 : i32, i32
  }
  func.func @transform_3(%arg0: i32) -> (i32, i32) {
    %c0_i32 = arith.constant 0 : i32
    %c0_i32_0 = arith.constant 0 : i32
    %c0_i32_1 = arith.constant 0 : i32
    return %c0_i32, %c0_i32_0 : i32, i32
  }
  func.func @transform_4(%arg0: i32) -> (i32, i32) {
    %c0_i32 = arith.constant 0 : i32
    %c0_i32_0 = arith.constant 0 : i32
    %c0_i32_1 = arith.constant 0 : i32
    return %c0_i32, %c0_i32_0 : i32, i32
  }
  func.func @transform_5(%arg0: i32) -> (i32, i32) {
    %c0_i32 = arith.constant 0 : i32
    %c0_i32_0 = arith.constant 0 : i32
    %c0_i32_1 = arith.constant 0 : i32
    return %c0_i32, %c0_i32_0 : i32, i32
  }
  func.func @transform_6(%arg0: i32) -> (i32, i32) {
    %c0_i32 = arith.constant 0 : i32
    %c0_i32_0 = arith.constant 0 : i32
    %c0_i32_1 = arith.constant 0 : i32
    return %c0_i32, %c0_i32_0 : i32, i32
  }
  func.func @transform_7(%arg0: i32) -> (i32, i32) {
    %c0_i32 = arith.constant 0 : i32
    %c0_i32_0 = arith.constant 0 : i32
    %c0_i32_1 = arith.constant 0 : i32
    return %c0_i32, %c0_i32_0 : i32, i32
  }
  func.func @transform_8(%arg0: i32) -> (i32, i32) {
    %c0_i32 = arith.constant 0 : i32
    %c0_i32_0 = arith.constant 0 : i32
    %c0_i32_1 = arith.constant 0 : i32
    return %c0_i32, %c0_i32_0 : i32, i32
  }
  func.func @transform_9(%arg0: i32) -> (i32, i32) {
    %c0_i32 = arith.constant 0 : i32
    %c0_i32_0 = arith.constant 0 : i32
    return %arg0, %c0_i32 : i32, i32
  }
}

</mosaic_0001>

<llo_original>
// kernel: tpu_custom_call.1
$region0: #{tpu_custom_call.1}
  #allocation0 [shape = 'u32[]', space=smem, size = 0x4, offset = 0x4, fixed_abs, tag = 'smem constant byte address 0x4 - core index']
  #allocation1 [shape = 'u32[144,128]{1,0:T(1,128)}', space=vmem, size = 0x12000, scoped, tag = 'internal scratch']
  #allocation2 [shape = 'f32[128,32]{1,0:T(8,128)}', space=vmem, size = 0x10000, scoped, tag = 'scratch operand']
  %s0 = inlined_call_operand.vmem [shape: f32[128,32], index: 0, kind: input, shape index: {}]
  %s1 = inlined_call_operand.vmem [shape: bf16[32,32], index: 1, kind: input, shape index: {}]
  %s2 = inlined_call_operand.vmem [shape: bf16[32,32], index: 2, kind: input, shape index: {}]
  %s3 = inlined_call_operand.vmem [shape: bf16[32,32], index: 3, kind: input, shape index: {}]
  %s4 = inlined_call_operand.vmem [shape: bf16[32,32], index: 4, kind: input, shape index: {}]
  %s5 = inlined_call_operand.vmem [shape: bf16[32,64], index: 5, kind: input, shape index: {}]
  %s6 = inlined_call_operand.vmem [shape: bf16[64,32], index: 6, kind: input, shape index: {}]
  %s7 = inlined_call_operand.vmem [shape: f32[1,64], index: 7, kind: input, shape index: {}]
  %s8 = inlined_call_operand.vmem [shape: f32[9,32], index: 8, kind: input, shape index: {}]
  %s9 = inlined_call_operand.vmem [shape: f32[128,32], index: 9, kind: output, shape index: {}]
  %s10 = sld [smem:[#allocation0]]
  $region46: #{tpu_custom_call.1} parent=0
    _
  %s12 = ssub.s32 1, %s10
  %s13 = scalar_select 0, %s12, %s10
  // Predicated region
  $region2: #{tpu_custom_call.1} parent=0 // pred_check
    _
  $region3: #{tpu_custom_call.1} parent=0 // pred_check_branch
    %15 = sbr.rel (0) target = $region5
  $region4: #{tpu_custom_call.1} parent=0 // pred_region
    _
  $region5: #{tpu_custom_call.1} parent=0 // pred_fallthru
    _
  // Predicated region
  $region6: #{tpu_custom_call.1} parent=0 // pred_check
    _
  $region7: #{tpu_custom_call.1} parent=0 // pred_check_branch
    %17 = sbr.rel (0) target = $region9
  $region8: #{tpu_custom_call.1} parent=0 // pred_region
    _
  $region9: #{tpu_custom_call.1} parent=0 // pred_fallthru
    _
  // Predicated region
  $region10: #{tpu_custom_call.1} parent=0 // pred_check
    _
  $region11: #{tpu_custom_call.1} parent=0 // pred_check_branch
    %19 = sbr.rel (0) target = $region13
  $region12: #{tpu_custom_call.1} parent=0 // pred_region
    _
  $region13: #{tpu_custom_call.1} parent=0 // pred_fallthru
    _
  // Predicated region
  $region14: #{tpu_custom_call.1} parent=0 // pred_check
    _
  $region15: #{tpu_custom_call.1} parent=0 // pred_check_branch
    %21 = sbr.rel (0) target = $region17
  $region16: #{tpu_custom_call.1} parent=0 // pred_region
    _
  $region17: #{tpu_custom_call.1} parent=0 // pred_fallthru
    _
  // Predicated region
  $region18: #{tpu_custom_call.1} parent=0 // pred_check
    _
  $region19: #{tpu_custom_call.1} parent=0 // pred_check_branch
    %23 = sbr.rel (0) target = $region21
  $region20: #{tpu_custom_call.1} parent=0 // pred_region
    _
  $region21: #{tpu_custom_call.1} parent=0 // pred_fallthru
    _
  // Predicated region
  $region22: #{tpu_custom_call.1} parent=0 // pred_check
    _
  $region23: #{tpu_custom_call.1} parent=0 // pred_check_branch
    %25 = sbr.rel (0) target = $region25
  $region24: #{tpu_custom_call.1} parent=0 // pred_region
    _
  $region25: #{tpu_custom_call.1} parent=0 // pred_fallthru
    _
  // Predicated region
  $region26: #{tpu_custom_call.1} parent=0 // pred_check
    _
  $region27: #{tpu_custom_call.1} parent=0 // pred_check_branch
    %27 = sbr.rel (0) target = $region29
  $region28: #{tpu_custom_call.1} parent=0 // pred_region
    _
  $region29: #{tpu_custom_call.1} parent=0 // pred_fallthru
    _
  // Predicated region
  $region30: #{tpu_custom_call.1} parent=0 // pred_check
    _
  $region31: #{tpu_custom_call.1} parent=0 // pred_check_branch
    %29 = sbr.rel (0) target = $region33
  $region32: #{tpu_custom_call.1} parent=0 // pred_region
    _
  $region33: #{tpu_custom_call.1} parent=0 // pred_fallthru
    _
  // Predicated region
  $region34: #{tpu_custom_call.1} parent=0 // pred_check
    _
  $region35: #{tpu_custom_call.1} parent=0 // pred_check_branch
    %31 = sbr.rel (0) target = $region37
  $region36: #{tpu_custom_call.1} parent=0 // pred_region
    _
  $region37: #{tpu_custom_call.1} parent=0 // pred_fallthru
    _
  %v35 = vld [vmem:[%s0] sm:$0xff]
  %v36 = vld [vmem:[%s0 + $0x8] sm:$0xff]
  %v37 = vld [vmem:[%s0 + $0x10] sm:$0xff]
  %v38 = vld [vmem:[%s0 + $0x18] sm:$0xff]
  %v39 = vld [vmem:[%s0 + $0x20] sm:$0xff]
  %v40 = vld [vmem:[%s0 + $0x28] sm:$0xff]
  %v41 = vld [vmem:[%s0 + $0x30] sm:$0xff]
  %v42 = vld [vmem:[%s0 + $0x38] sm:$0xff]
  %v43 = vld [vmem:[%s0 + $0x40] sm:$0xff]
  %v44 = vld [vmem:[%s0 + $0x48] sm:$0xff]
  %v45 = vld [vmem:[%s0 + $0x50] sm:$0xff]
  %v46 = vld [vmem:[%s0 + $0x58] sm:$0xff]
  %v47 = vld [vmem:[%s0 + $0x60] sm:$0xff]
  %v48 = vld [vmem:[%s0 + $0x68] sm:$0xff]
  %v49 = vld [vmem:[%s0 + $0x70] sm:$0xff]
  %v50 = vld [vmem:[%s0 + $0x78] sm:$0xff]
  %v51 = vpack.c.bf16 %v36, %v35
  %v52 = vpack.c.bf16 %v38, %v37
  %v53 = vpack.c.bf16 %v40, %v39
  %v54 = vpack.c.bf16 %v42, %v41
  %v55 = vpack.c.bf16 %v44, %v43
  %v56 = vpack.c.bf16 %v46, %v45
  %v57 = vpack.c.bf16 %v48, %v47
  %v58 = vpack.c.bf16 %v50, %v49
  %v59 = vld [vmem:[%s1] sm:$0xf]
  %v60 = vld [vmem:[%s1 + $0x4] sm:$0xf]
  %v61 = vld [vmem:[%s1 + $0x8] sm:$0xf]
  %v62 = vld [vmem:[%s1 + $0xc] sm:$0xf]
  %v63 = vld [vmem:[%s8] sm:$0x1]
  %v64 = vlaneseq
  %v65 = vshrl.u32 %v64, 7
  %v66 = vsub.s32 0, %v65
  %v67 = vrot.slane %v63, %v66
  %v72 = vunpack.c.l.b16 %v59
  %v73 = vunpack.c.l.b16 %v60
  %v74 = vunpack.c.l.b16 %v61
  %v75 = vunpack.c.l.b16 %v62
  %v76 = vpack.c.b16 %v73, %v72
  %v77 = vpack.c.b16 %v75, %v74
  %vm80 = vcmask 261120
  %v82 = vsel %vm80, %v51, 0
  %v85 = vsel %vm80, %v52, 0
  %v88 = vsel %vm80, %v53, 0
  %v91 = vsel %vm80, %v54, 0
  %v94 = vsel %vm80, %v55, 0
  %v97 = vsel %vm80, %v56, 0
  %v100 = vsel %vm80, %v57, 0
  %v103 = vsel %vm80, %v58, 0
  %105 = vmatprep.subr.bf16.mxu0 0
  %106 = vmatpush1.bf16.msra.mxu0 0
  %107 = vmatprep.subr.bf16.mxu0 0
  %108 = vmatpush1.bf16.msra.mxu0 0
  %109 = vmatprep.subr.bf16.mxu0 0
  %110 = vmatpush1.bf16.msra.mxu0 0
  %111 = vmatprep.subr.bf16.mxu0 0
  %112 = vmatpush1.bf16.msra.mxu0 0
  %113 = vmatprep.subr.bf16.mxu0 0
  %114 = vmatpush1.bf16.msra.mxu0 0
  %115 = vmatprep.subr.bf16.mxu0 0
  %116 = vmatpush1.bf16.msra.mxu0 0
  %117 = vmatprep.subr.bf16.mxu0 0
  %118 = vmatpush1.bf16.msra.mxu0 %v77
  %119 = vmatprep.subr.bf16.mxu0 0
  %120 = vmatpush1.bf16.msra.mxu0 %v76
  %121 = vmatprep.subr.bf16.mxu0 0
  %122 = vmatpush2.bf16.msra.mxu0 0
  %123 = vmatprep.subr.bf16.mxu0 0
  %124 = vmatpush2.bf16.msra.mxu0 0
  %125 = vmatprep.subr.bf16.mxu0 0
  %126 = vmatpush2.bf16.msra.mxu0 0
  %127 = vmatprep.subr.bf16.mxu0 0
  %128 = vmatpush2.bf16.msra.mxu0 0
  %129 = vmatprep.subr.bf16.mxu0 0
  %130 = vmatpush2.bf16.msra.mxu0 0
  %131 = vmatprep.subr.bf16.mxu0 0
  %132 = vmatpush2.bf16.msra.mxu0 0
  %133 = vmatprep.subr.bf16.mxu0 0
  %134 = vmatpush2.bf16.msra.mxu0 0
  %135 = vmatprep.subr.bf16.mxu0 0
  %136 = vmatpush2.bf16.msra.mxu0 0
  %137 = vmatprep.mubr.bf16.mxu0 0
  %138 = vmatmul.mubr.bf16.gmra.mxu0 %v82
  %v139 = vpop.f32.mrf.mxu0
  %v140 = vadd.f32 %v67, %v139
  %v141 = vpop.f32.mrf.mxu0
  %v142 = vpop.f32.mrf.mxu0
  %v143 = vadd.f32 %v67, %v142
  %v144 = vpop.f32.mrf.mxu0
  %145 = vmatprep.mubr.bf16.mxu0 0
  %146 = vmatmul.mubr.bf16.gmra.mxu0 %v85
  %v147 = vpop.f32.mrf.mxu0
  %v148 = vadd.f32 %v67, %v147
  %v149 = vpop.f32.mrf.mxu0
  %v150 = vpop.f32.mrf.mxu0
  %v151 = vadd.f32 %v67, %v150
  %v152 = vpop.f32.mrf.mxu0
  %153 = vmatprep.mubr.bf16.mxu0 0
  %154 = vmatmul.mubr.bf16.gmra.mxu0 %v88
  %v155 = vpop.f32.mrf.mxu0
  %v156 = vadd.f32 %v67, %v155
  %v157 = vpop.f32.mrf.mxu0
  %v158 = vpop.f32.mrf.mxu0
  %v159 = vadd.f32 %v67, %v158
  %v160 = vpop.f32.mrf.mxu0
  %161 = vmatprep.mubr.bf16.mxu0 0
  %162 = vmatmul.mubr.bf16.gmra.mxu0 %v91
  %v163 = vpop.f32.mrf.mxu0
  %v164 = vadd.f32 %v67, %v163
  %v165 = vpop.f32.mrf.mxu0
  %v166 = vpop.f32.mrf.mxu0
  %v167 = vadd.f32 %v67, %v166
  %v168 = vpop.f32.mrf.mxu0
  %169 = vmatprep.mubr.bf16.mxu0 0
  %170 = vmatmul.mubr.bf16.gmra.mxu0 %v94
  %v171 = vpop.f32.mrf.mxu0
  %v172 = vadd.f32 %v67, %v171
  %v173 = vpop.f32.mrf.mxu0
  %v174 = vpop.f32.mrf.mxu0
  %v175 = vadd.f32 %v67, %v174
  %v176 = vpop.f32.mrf.mxu0
  %177 = vmatprep.mubr.bf16.mxu0 0
  %178 = vmatmul.mubr.bf16.gmra.mxu0 %v97
  %v179 = vpop.f32.mrf.mxu0
  %v180 = vadd.f32 %v67, %v179
  %v181 = vpop.f32.mrf.mxu0
  %v182 = vpop.f32.mrf.mxu0
  %v183 = vadd.f32 %v67, %v182
  %v184 = vpop.f32.mrf.mxu0
  %185 = vmatprep.mubr.bf16.mxu0 0
  %186 = vmatmul.mubr.bf16.gmra.mxu0 %v100
  %v187 = vpop.f32.mrf.mxu0
  %v188 = vadd.f32 %v67, %v187
  %v189 = vpop.f32.mrf.mxu0
  %v190 = vpop.f32.mrf.mxu0
  %v191 = vadd.f32 %v67, %v190
  %v192 = vpop.f32.mrf.mxu0
  %193 = vmatprep.mubr.bf16.mxu0 0
  %194 = vmatmul.mubr.bf16.gmra.mxu0 %v103
  %v195 = vpop.f32.mrf.mxu0
  %v196 = vadd.f32 %v67, %v195
  %v197 = vpop.f32.mrf.mxu0
  %v198 = vpop.f32.mrf.mxu0
  %v199 = vadd.f32 %v67, %v198
  %v200 = vpop.f32.mrf.mxu0
  %201 = vdwg.mxu0
  %v202 = vld [vmem:[%s2] sm:$0xf]
  %v203 = vld [vmem:[%s2 + $0x4] sm:$0xf]
  %v204 = vld [vmem:[%s2 + $0x8] sm:$0xf]
  %v205 = vld [vmem:[%s2 + $0xc] sm:$0xf]
  %v206 = vld [vmem:[%s8 + $0x1] sm:$0x1]
  %v207 = vlaneseq
  %v208 = vshrl.u32 %v207, 7
  %v209 = vsub.s32 0, %v208
  %v210 = vrot.slane %v206, %v209
  %v215 = vunpack.c.l.b16 %v202
  %v216 = vunpack.c.l.b16 %v203
  %v217 = vunpack.c.l.b16 %v204
  %v218 = vunpack.c.l.b16 %v205
  %v219 = vpack.c.b16 %v216, %v215
  %v220 = vpack.c.b16 %v218, %v217
  %223 = vmatprep.subr.bf16.mxu0 0
  %224 = vmatpush1.bf16.msra.mxu0 0
  %225 = vmatprep.subr.bf16.mxu0 0
  %226 = vmatpush1.bf16.msra.mxu0 0
  %227 = vmatprep.subr.bf16.mxu0 0
  %228 = vmatpush1.bf16.msra.mxu0 0
  %229 = vmatprep.subr.bf16.mxu0 0
  %230 = vmatpush1.bf16.msra.mxu0 0
  %231 = vmatprep.subr.bf16.mxu0 0
  %232 = vmatpush1.bf16.msra.mxu0 0
  %233 = vmatprep.subr.bf16.mxu0 0
  %234 = vmatpush1.bf16.msra.mxu0 0
  %235 = vmatprep.subr.bf16.mxu0 0
  %236 = vmatpush1.bf16.msra.mxu0 %v220
  %237 = vmatprep.subr.bf16.mxu0 0
  %238 = vmatpush1.bf16.msra.mxu0 %v219
  %239 = vmatprep.subr.bf16.mxu0 0
  %240 = vmatpush2.bf16.msra.mxu0 0
  %241 = vmatprep.subr.bf16.mxu0 0
  %242 = vmatpush2.bf16.msra.mxu0 0
  %243 = vmatprep.subr.bf16.mxu0 0
  %244 = vmatpush2.bf16.msra.mxu0 0
  %245 = vmatprep.subr.bf16.mxu0 0
  %246 = vmatpush2.bf16.msra.mxu0 0
  %247 = vmatprep.subr.bf16.mxu0 0
  %248 = vmatpush2.bf16.msra.mxu0 0
  %249 = vmatprep.subr.bf16.mxu0 0
  %250 = vmatpush2.bf16.msra.mxu0 0
  %251 = vmatprep.subr.bf16.mxu0 0
  %252 = vmatpush2.bf16.msra.mxu0 0
  %253 = vmatprep.subr.bf16.mxu0 0
  %254 = vmatpush2.bf16.msra.mxu0 0
  %255 = vmatprep.mubr.bf16.mxu0 0
  %256 = vmatmul.mubr.bf16.gmra.mxu0 %v82
  %v257 = vpop.f32.mrf.mxu0
  %v258 = vadd.f32 %v210, %v257
  %v259 = vpop.f32.mrf.mxu0
  %v260 = vpop.f32.mrf.mxu0
  %v261 = vadd.f32 %v210, %v260
  %v262 = vpop.f32.mrf.mxu0
  %263 = vmatprep.mubr.bf16.mxu0 0
  %264 = vmatmul.mubr.bf16.gmra.mxu0 %v85
  %v265 = vpop.f32.mrf.mxu0
  %v266 = vadd.f32 %v210, %v265
  %v267 = vpop.f32.mrf.mxu0
  %v268 = vpop.f32.mrf.mxu0
  %v269 = vadd.f32 %v210, %v268
  %v270 = vpop.f32.mrf.mxu0
  %271 = vmatprep.mubr.bf16.mxu0 0
  %272 = vmatmul.mubr.bf16.gmra.mxu0 %v88
  %v273 = vpop.f32.mrf.mxu0
  %v274 = vadd.f32 %v210, %v273
  %v275 = vpop.f32.mrf.mxu0
  %v276 = vpop.f32.mrf.mxu0
  %v277 = vadd.f32 %v210, %v276
  %v278 = vpop.f32.mrf.mxu0
  %279 = vmatprep.mubr.bf16.mxu0 0
  %280 = vmatmul.mubr.bf16.gmra.mxu0 %v91
  %v281 = vpop.f32.mrf.mxu0
  %v282 = vadd.f32 %v210, %v281
  %v283 = vpop.f32.mrf.mxu0
  %v284 = vpop.f32.mrf.mxu0
  %v285 = vadd.f32 %v210, %v284
  %v286 = vpop.f32.mrf.mxu0
  %287 = vmatprep.mubr.bf16.mxu0 0
  %288 = vmatmul.mubr.bf16.gmra.mxu0 %v94
  %v289 = vpop.f32.mrf.mxu0
  %v290 = vadd.f32 %v210, %v289
  %v291 = vpop.f32.mrf.mxu0
  %v292 = vpop.f32.mrf.mxu0
  %v293 = vadd.f32 %v210, %v292
  %v294 = vpop.f32.mrf.mxu0
  %295 = vmatprep.mubr.bf16.mxu0 0
  %296 = vmatmul.mubr.bf16.gmra.mxu0 %v97
  %v297 = vpop.f32.mrf.mxu0
  %v298 = vadd.f32 %v210, %v297
  %v299 = vpop.f32.mrf.mxu0
  %v300 = vpop.f32.mrf.mxu0
  %v301 = vadd.f32 %v210, %v300
  %v302 = vpop.f32.mrf.mxu0
  %303 = vmatprep.mubr.bf16.mxu0 0
  %304 = vmatmul.mubr.bf16.gmra.mxu0 %v100
  %v305 = vpop.f32.mrf.mxu0
  %v306 = vadd.f32 %v210, %v305
  %v307 = vpop.f32.mrf.mxu0
  %v308 = vpop.f32.mrf.mxu0
  %v309 = vadd.f32 %v210, %v308
  %v310 = vpop.f32.mrf.mxu0
  %311 = vmatprep.mubr.bf16.mxu0 0
  %312 = vmatmul.mubr.bf16.gmra.mxu0 %v103
  %v313 = vpop.f32.mrf.mxu0
  %v314 = vadd.f32 %v210, %v313
  %v315 = vpop.f32.mrf.mxu0
  %v316 = vpop.f32.mrf.mxu0
  %v317 = vadd.f32 %v210, %v316
  %v318 = vpop.f32.mrf.mxu0
  %319 = vdwg.mxu0
  %v320 = vld [vmem:[%s3] sm:$0xf]
  %v321 = vld [vmem:[%s3 + $0x4] sm:$0xf]
  %v322 = vld [vmem:[%s3 + $0x8] sm:$0xf]
  %v323 = vld [vmem:[%s3 + $0xc] sm:$0xf]
  %v324 = vld [vmem:[%s8 + $0x2] sm:$0x1]
  %v325 = vlaneseq
  %v326 = vshrl.u32 %v325, 7
  %v327 = vsub.s32 0, %v326
  %v328 = vrot.slane %v324, %v327
  %v333 = vunpack.c.l.b16 %v320
  %v334 = vunpack.c.l.b16 %v321
  %v335 = vunpack.c.l.b16 %v322
  %v336 = vunpack.c.l.b16 %v323
  %v337 = vpack.c.b16 %v334, %v333
  %v338 = vpack.c.b16 %v336, %v335
  %341 = vmatprep.subr.bf16.mxu0 0
  %342 = vmatpush1.bf16.msra.mxu0 0
  %343 = vmatprep.subr.bf16.mxu0 0
  %344 = vmatpush1.bf16.msra.mxu0 0
  %345 = vmatprep.subr.bf16.mxu0 0
  %346 = vmatpush1.bf16.msra.mxu0 0
  %347 = vmatprep.subr.bf16.mxu0 0
  %348 = vmatpush1.bf16.msra.mxu0 0
  %349 = vmatprep.subr.bf16.mxu0 0
  %350 = vmatpush1.bf16.msra.mxu0 0
  %351 = vmatprep.subr.bf16.mxu0 0
  %352 = vmatpush1.bf16.msra.mxu0 0
  %353 = vmatprep.subr.bf16.mxu0 0
  %354 = vmatpush1.bf16.msra.mxu0 %v338
  %355 = vmatprep.subr.bf16.mxu0 0
  %356 = vmatpush1.bf16.msra.mxu0 %v337
  %357 = vmatprep.subr.bf16.mxu0 0
  %358 = vmatpush2.bf16.msra.mxu0 0
  %359 = vmatprep.subr.bf16.mxu0 0
  %360 = vmatpush2.bf16.msra.mxu0 0
  %361 = vmatprep.subr.bf16.mxu0 0
  %362 = vmatpush2.bf16.msra.mxu0 0
  %363 = vmatprep.subr.bf16.mxu0 0
  %364 = vmatpush2.bf16.msra.mxu0 0
  %365 = vmatprep.subr.bf16.mxu0 0
  %366 = vmatpush2.bf16.msra.mxu0 0
  %367 = vmatprep.subr.bf16.mxu0 0
  %368 = vmatpush2.bf16.msra.mxu0 0
  %369 = vmatprep.subr.bf16.mxu0 0
  %370 = vmatpush2.bf16.msra.mxu0 0
  %371 = vmatprep.subr.bf16.mxu0 0
  %372 = vmatpush2.bf16.msra.mxu0 0
  %373 = vmatprep.mubr.bf16.mxu0 0
  %374 = vmatmul.mubr.bf16.gmra.mxu0 %v82
  %v375 = vpop.f32.mrf.mxu0
  %v376 = vadd.f32 %v328, %v375
  %v377 = vpop.f32.mrf.mxu0
  %v378 = vpop.f32.mrf.mxu0
  %v379 = vadd.f32 %v328, %v378
  %v380 = vpop.f32.mrf.mxu0
  %381 = vmatprep.mubr.bf16.mxu0 0
  %382 = vmatmul.mubr.bf16.gmra.mxu0 %v85
  %v383 = vpop.f32.mrf.mxu0
  %v384 = vadd.f32 %v328, %v383
  %v385 = vpop.f32.mrf.mxu0
  %v386 = vpop.f32.mrf.mxu0
  %v387 = vadd.f32 %v328, %v386
  %v388 = vpop.f32.mrf.mxu0
  %389 = vmatprep.mubr.bf16.mxu0 0
  %390 = vmatmul.mubr.bf16.gmra.mxu0 %v88
  %v391 = vpop.f32.mrf.mxu0
  %v392 = vadd.f32 %v328, %v391
  %v393 = vpop.f32.mrf.mxu0
  %v394 = vpop.f32.mrf.mxu0
  %v395 = vadd.f32 %v328, %v394
  %v396 = vpop.f32.mrf.mxu0
  %397 = vmatprep.mubr.bf16.mxu0 0
  %398 = vmatmul.mubr.bf16.gmra.mxu0 %v91
  %v399 = vpop.f32.mrf.mxu0
  %v400 = vadd.f32 %v328, %v399
  %v401 = vpop.f32.mrf.mxu0
  %v402 = vpop.f32.mrf.mxu0
  %v403 = vadd.f32 %v328, %v402
  %v404 = vpop.f32.mrf.mxu0
  %405 = vmatprep.mubr.bf16.mxu0 0
  %406 = vmatmul.mubr.bf16.gmra.mxu0 %v94
  %v407 = vpop.f32.mrf.mxu0
  %v408 = vadd.f32 %v328, %v407
  %v409 = vpop.f32.mrf.mxu0
  %v410 = vpop.f32.mrf.mxu0
  %v411 = vadd.f32 %v328, %v410
  %v412 = vpop.f32.mrf.mxu0
  %413 = vmatprep.mubr.bf16.mxu0 0
  %414 = vmatmul.mubr.bf16.gmra.mxu0 %v97
  %v415 = vpop.f32.mrf.mxu0
  %v416 = vadd.f32 %v328, %v415
  %v417 = vpop.f32.mrf.mxu0
  %v418 = vpop.f32.mrf.mxu0
  %v419 = vadd.f32 %v328, %v418
  %v420 = vpop.f32.mrf.mxu0
  %421 = vmatprep.mubr.bf16.mxu0 0
  %422 = vmatmul.mubr.bf16.gmra.mxu0 %v100
  %v423 = vpop.f32.mrf.mxu0
  %v424 = vadd.f32 %v328, %v423
  %v425 = vpop.f32.mrf.mxu0
  %v426 = vpop.f32.mrf.mxu0
  %v427 = vadd.f32 %v328, %v426
  %v428 = vpop.f32.mrf.mxu0
  %429 = vmatprep.mubr.bf16.mxu0 0
  %430 = vmatmul.mubr.bf16.gmra.mxu0 %v103
  %v431 = vpop.f32.mrf.mxu0
  %v432 = vadd.f32 %v328, %v431
  %v433 = vpop.f32.mrf.mxu0
  %v434 = vpop.f32.mrf.mxu0
  %v435 = vadd.f32 %v328, %v434
  %v436 = vpop.f32.mrf.mxu0
  %437 = vdwg.mxu0
  %v438 = vpack.c.bf16 %v143, %v140
  %v439 = vpack.c.bf16 %v151, %v148
  %v440 = vpack.c.bf16 %v159, %v156
  %v441 = vpack.c.bf16 %v167, %v164
  %v442 = vpack.c.bf16 %v175, %v172
  %v443 = vpack.c.bf16 %v183, %v180
  %v444 = vpack.c.bf16 %v191, %v188
  %v445 = vpack.c.bf16 %v199, %v196
  %v446 = vpack.c.bf16 %v261, %v258
  %v447 = vpack.c.bf16 %v269, %v266
  %v448 = vpack.c.bf16 %v277, %v274
  %v449 = vpack.c.bf16 %v285, %v282
  %v450 = vpack.c.bf16 %v293, %v290
  %v451 = vpack.c.bf16 %v301, %v298
  %v452 = vpack.c.bf16 %v309, %v306
  %v453 = vpack.c.bf16 %v317, %v314
  %v454 = vpack.c.bf16 %v379, %v376
  %v455 = vpack.c.bf16 %v387, %v384
  %v456 = vpack.c.bf16 %v395, %v392
  %v457 = vpack.c.bf16 %v403, %v400
  %v458 = vpack.c.bf16 %v411, %v408
  %v459 = vpack.c.bf16 %v419, %v416
  %v460 = vpack.c.bf16 %v427, %v424
  %v461 = vpack.c.bf16 %v435, %v432
  %v462 = vlaneseq
  %v463 = vand.u32 %v462, 127
  %vm464 = vcmp.ge.s32.totalorder %v463, 0
  %vm465 = vcmp.lt.s32.totalorder %v463, 8
  %vm466 = vmand %vm464, %vm465
  %vm467 = vcmp.ge.s32.totalorder %v463, 8
  %vm468 = vcmp.lt.s32.totalorder %v463, 16
  %vm469 = vmand %vm467, %vm468
  %vm470 = vcmp.ge.s32.totalorder %v463, 16
  %vm471 = vcmp.lt.s32.totalorder %v463, 24
  %vm472 = vmand %vm470, %vm471
  %vm473 = vcmp.ge.s32.totalorder %v463, 24
  %vm474 = vcmp.lt.s32.totalorder %v463, 32
  %vm475 = vmand %vm473, %vm474
  %v476 = vsel %vm466, 1, 0
  %vm477 = vcmp.eq.s32.totalorder %v476, 1
  %vm478 = vmpackc.low %vm477, %vm477
  %v479 = vsel %vm478, 65537, 0
  %v480 = vlaneseq
  %v481 = vshrl.u32 %v480, 7
  %v482 = vsub.s32 0, %v481
  %v483 = vrot.slane %v479, %v482
  %vm484 = vcmp.ne.s16.totalorder %v483, 0
  %v485 = vsel %vm484, %v438, 0
  %v486 = vsel %vm484, %v439, 0
  %v487 = vsel %vm484, %v440, 0
  %v488 = vsel %vm484, %v441, 0
  %v489 = vsel %vm469, 1, 0
  %vm490 = vcmp.eq.s32.totalorder %v489, 1
  %vm491 = vmpackc.low %vm490, %vm490
  %v492 = vsel %vm491, 65537, 0
  %v493 = vlaneseq
  %v494 = vshrl.u32 %v493, 7
  %v495 = vsub.s32 0, %v494
  %v496 = vrot.slane %v492, %v495
  %vm497 = vcmp.ne.s16.totalorder %v496, 0
  %v498 = vsel %vm497, %v438, 0
  %v499 = vsel %vm497, %v439, 0
  %v500 = vsel %vm497, %v440, 0
  %v501 = vsel %vm497, %v441, 0
  %v502 = vsel %vm472, 1, 0
  %vm503 = vcmp.eq.s32.totalorder %v502, 1
  %vm504 = vmpackc.low %vm503, %vm503
  %v505 = vsel %vm504, 65537, 0
  %v506 = vlaneseq
  %v507 = vshrl.u32 %v506, 7
  %v508 = vsub.s32 0, %v507
  %v509 = vrot.slane %v505, %v508
  %vm510 = vcmp.ne.s16.totalorder %v509, 0
  %v511 = vsel %vm510, %v438, 0
  %v512 = vsel %vm510, %v439, 0
  %v513 = vsel %vm510, %v440, 0
  %v514 = vsel %vm510, %v441, 0
  %v515 = vsel %vm475, 1, 0
  %vm516 = vcmp.eq.s32.totalorder %v515, 1
  %vm517 = vmpackc.low %vm516, %vm516
  %v518 = vsel %vm517, 65537, 0
  %v519 = vlaneseq
  %v520 = vshrl.u32 %v519, 7
  %v521 = vsub.s32 0, %v520
  %v522 = vrot.slane %v518, %v521
  %vm523 = vcmp.ne.s16.totalorder %v522, 0
  %v524 = vsel %vm523, %v438, 0
  %v525 = vsel %vm523, %v439, 0
  %v526 = vsel %vm523, %v440, 0
  %v527 = vsel %vm523, %v441, 0
  %v529 = vsel %vm80, %v485, 0
  %v532 = vsel %vm80, %v486, 0
  %v535 = vsel %vm80, %v487, 0
  %v538 = vsel %vm80, %v488, 0
  %v541 = vsel %vm80, %v498, 0
  %v544 = vsel %vm80, %v499, 0
  %v547 = vsel %vm80, %v500, 0
  %v550 = vsel %vm80, %v501, 0
  %v553 = vsel %vm80, %v511, 0
  %v556 = vsel %vm80, %v512, 0
  %v559 = vsel %vm80, %v513, 0
  %v562 = vsel %vm80, %v514, 0
  %v565 = vsel %vm80, %v524, 0
  %v568 = vsel %vm80, %v525, 0
  %v571 = vsel %vm80, %v526, 0
  %v574 = vsel %vm80, %v527, 0
  %v577 = vsel %vm80, %v446, 0
  %v580 = vsel %vm80, %v447, 0
  %v583 = vsel %vm80, %v448, 0
  %v586 = vsel %vm80, %v449, 0
  %588 = vmatprep.subr.bf16.mxu0 0
  %589 = vmatpush1.bf16.xpose.msra.mxu0 0
  %590 = vmatprep.subr.bf16.mxu0 0
  %591 = vmatpush1.bf16.xpose.msra.mxu0 0
  %592 = vmatprep.subr.bf16.mxu0 0
  %593 = vmatpush1.bf16.xpose.msra.mxu0 0
  %594 = vmatprep.subr.bf16.mxu0 0
  %595 = vmatpush1.bf16.xpose.msra.mxu0 0
  %596 = vmatprep.subr.bf16.mxu0 0
  %597 = vmatpush1.bf16.xpose.msra.mxu0 %v586
  %598 = vmatprep.subr.bf16.mxu0 0
  %599 = vmatpush1.bf16.xpose.msra.mxu0 %v583
  %600 = vmatprep.subr.bf16.mxu0 0
  %601 = vmatpush1.bf16.xpose.msra.mxu0 %v580
  %602 = vmatprep.subr.bf16.mxu0 0
  %603 = vmatpush1.bf16.xpose.msra.mxu0 %v577
  %604 = vmatprep.subr.bf16.mxu0 0
  %605 = vmatpush2.bf16.xpose.msra.mxu0 0
  %606 = vmatprep.subr.bf16.mxu0 0
  %607 = vmatpush2.bf16.xpose.msra.mxu0 0
  %608 = vmatprep.subr.bf16.mxu0 0
  %609 = vmatpush2.bf16.xpose.msra.mxu0 0
  %610 = vmatprep.subr.bf16.mxu0 0
  %611 = vmatpush2.bf16.xpose.msra.mxu0 0
  %612 = vmatprep.subr.bf16.mxu0 0
  %613 = vmatpush2.bf16.xpose.msra.mxu0 0
  %614 = vmatprep.subr.bf16.mxu0 0
  %615 = vmatpush2.bf16.xpose.msra.mxu0 0
  %616 = vmatprep.subr.bf16.mxu0 0
  %617 = vmatpush2.bf16.xpose.msra.mxu0 0
  %618 = vmatprep.subr.bf16.mxu0 0
  %619 = vmatpush2.bf16.xpose.msra.mxu0 0
  %620 = vmatprep.mubr.bf16.mxu0 0
  %621 = vmatmul.mubr.bf16.gmra.mxu0 %v529
  %v622 = vpop.f32.mrf.mxu0
  %v623 = vadd.f32 0.0, %v622
  %v624 = vpop.f32.mrf.mxu0
  %v625 = vpop.f32.mrf.mxu0
  %v626 = vadd.f32 0.0, %v625
  %v627 = vpop.f32.mrf.mxu0
  %628 = vmatprep.mubr.bf16.mxu0 0
  %629 = vmatmul.mubr.bf16.gmra.mxu0 %v532
  %v630 = vpop.f32.mrf.mxu0
  %v631 = vadd.f32 0.0, %v630
  %v632 = vpop.f32.mrf.mxu0
  %v633 = vpop.f32.mrf.mxu0
  %v634 = vadd.f32 0.0, %v633
  %v635 = vpop.f32.mrf.mxu0
  %636 = vmatprep.mubr.bf16.mxu0 0
  %637 = vmatmul.mubr.bf16.gmra.mxu0 %v535
  %v638 = vpop.f32.mrf.mxu0
  %v639 = vadd.f32 0.0, %v638
  %v640 = vpop.f32.mrf.mxu0
  %v641 = vpop.f32.mrf.mxu0
  %v642 = vadd.f32 0.0, %v641
  %v643 = vpop.f32.mrf.mxu0
  %644 = vmatprep.mubr.bf16.mxu0 0
  %645 = vmatmul.mubr.bf16.gmra.mxu0 %v538
  %v646 = vpop.f32.mrf.mxu0
  %v647 = vadd.f32 0.0, %v646
  %v648 = vpop.f32.mrf.mxu0
  %v649 = vpop.f32.mrf.mxu0
  %v650 = vadd.f32 0.0, %v649
  %v651 = vpop.f32.mrf.mxu0
  %652 = vmatprep.mubr.bf16.mxu0 0
  %653 = vmatmul.mubr.bf16.gmra.mxu0 %v541
  %v654 = vpop.f32.mrf.mxu0
  %v655 = vadd.f32 0.0, %v654
  %v656 = vpop.f32.mrf.mxu0
  %v657 = vpop.f32.mrf.mxu0
  %v658 = vadd.f32 0.0, %v657
  %v659 = vpop.f32.mrf.mxu0
  %660 = vmatprep.mubr.bf16.mxu0 0
  %661 = vmatmul.mubr.bf16.gmra.mxu0 %v544
  %v662 = vpop.f32.mrf.mxu0
  %v663 = vadd.f32 0.0, %v662
  %v664 = vpop.f32.mrf.mxu0
  %v665 = vpop.f32.mrf.mxu0
  %v666 = vadd.f32 0.0, %v665
  %v667 = vpop.f32.mrf.mxu0
  %668 = vmatprep.mubr.bf16.mxu0 0
  %669 = vmatmul.mubr.bf16.gmra.mxu0 %v547
  %v670 = vpop.f32.mrf.mxu0
  %v671 = vadd.f32 0.0, %v670
  %v672 = vpop.f32.mrf.mxu0
  %v673 = vpop.f32.mrf.mxu0
  %v674 = vadd.f32 0.0, %v673
  %v675 = vpop.f32.mrf.mxu0
  %676 = vmatprep.mubr.bf16.mxu0 0
  %677 = vmatmul.mubr.bf16.gmra.mxu0 %v550
  %v678 = vpop.f32.mrf.mxu0
  %v679 = vadd.f32 0.0, %v678
  %v680 = vpop.f32.mrf.mxu0
  %v681 = vpop.f32.mrf.mxu0
  %v682 = vadd.f32 0.0, %v681
  %v683 = vpop.f32.mrf.mxu0
  %684 = vmatprep.mubr.bf16.mxu0 0
  %685 = vmatmul.mubr.bf16.gmra.mxu0 %v553
  %v686 = vpop.f32.mrf.mxu0
  %v687 = vadd.f32 0.0, %v686
  %v688 = vpop.f32.mrf.mxu0
  %v689 = vpop.f32.mrf.mxu0
  %v690 = vadd.f32 0.0, %v689
  %v691 = vpop.f32.mrf.mxu0
  %692 = vmatprep.mubr.bf16.mxu0 0
  %693 = vmatmul.mubr.bf16.gmra.mxu0 %v556
  %v694 = vpop.f32.mrf.mxu0
  %v695 = vadd.f32 0.0, %v694
  %v696 = vpop.f32.mrf.mxu0
  %v697 = vpop.f32.mrf.mxu0
  %v698 = vadd.f32 0.0, %v697
  %v699 = vpop.f32.mrf.mxu0
  %700 = vmatprep.mubr.bf16.mxu0 0
  %701 = vmatmul.mubr.bf16.gmra.mxu0 %v559
  %v702 = vpop.f32.mrf.mxu0
  %v703 = vadd.f32 0.0, %v702
  %v704 = vpop.f32.mrf.mxu0
  %v705 = vpop.f32.mrf.mxu0
  %v706 = vadd.f32 0.0, %v705
  %v707 = vpop.f32.mrf.mxu0
  %708 = vmatprep.mubr.bf16.mxu0 0
  %709 = vmatmul.mubr.bf16.gmra.mxu0 %v562
  %v710 = vpop.f32.mrf.mxu0
  %v711 = vadd.f32 0.0, %v710
  %v712 = vpop.f32.mrf.mxu0
  %v713 = vpop.f32.mrf.mxu0
  %v714 = vadd.f32 0.0, %v713
  %v715 = vpop.f32.mrf.mxu0
  %716 = vmatprep.mubr.bf16.mxu0 0
  %717 = vmatmul.mubr.bf16.gmra.mxu0 %v565
  %v718 = vpop.f32.mrf.mxu0
  %v719 = vadd.f32 0.0, %v718
  %v720 = vpop.f32.mrf.mxu0
  %v721 = vpop.f32.mrf.mxu0
  %v722 = vadd.f32 0.0, %v721
  %v723 = vpop.f32.mrf.mxu0
  %724 = vmatprep.mubr.bf16.mxu0 0
  %725 = vmatmul.mubr.bf16.gmra.mxu0 %v568
  %v726 = vpop.f32.mrf.mxu0
  %v727 = vadd.f32 0.0, %v726
  %v728 = vpop.f32.mrf.mxu0
  %v729 = vpop.f32.mrf.mxu0
  %v730 = vadd.f32 0.0, %v729
  %v731 = vpop.f32.mrf.mxu0
  %732 = vmatprep.mubr.bf16.mxu0 0
  %733 = vmatmul.mubr.bf16.gmra.mxu0 %v571
  %v734 = vpop.f32.mrf.mxu0
  %v735 = vadd.f32 0.0, %v734
  %v736 = vpop.f32.mrf.mxu0
  %v737 = vpop.f32.mrf.mxu0
  %v738 = vadd.f32 0.0, %v737
  %v739 = vpop.f32.mrf.mxu0
  %740 = vmatprep.mubr.bf16.mxu0 0
  %741 = vmatmul.mubr.bf16.gmra.mxu0 %v574
  %v742 = vpop.f32.mrf.mxu0
  %v743 = vadd.f32 0.0, %v742
  %v744 = vpop.f32.mrf.mxu0
  %v745 = vpop.f32.mrf.mxu0
  %v746 = vadd.f32 0.0, %v745
  %v747 = vpop.f32.mrf.mxu0
  %748 = vdwg.mxu0
  %v749 = vmul.f32 %v623, 0.35355338
  %v750 = vmul.f32 %v626, 0.35355338
  %v751 = vmul.f32 %v631, 0.35355338
  %v752 = vmul.f32 %v634, 0.35355338
  %v753 = vmul.f32 %v639, 0.35355338
  %v754 = vmul.f32 %v642, 0.35355338
  %v755 = vmul.f32 %v647, 0.35355338
  %v756 = vmul.f32 %v650, 0.35355338
  %v757 = vmul.f32 %v655, 0.35355338
  %v758 = vmul.f32 %v658, 0.35355338
  %v759 = vmul.f32 %v663, 0.35355338
  %v760 = vmul.f32 %v666, 0.35355338
  %v761 = vmul.f32 %v671, 0.35355338
  %v762 = vmul.f32 %v674, 0.35355338
  %v763 = vmul.f32 %v679, 0.35355338
  %v764 = vmul.f32 %v682, 0.35355338
  %v765 = vmul.f32 %v687, 0.35355338
  %v766 = vmul.f32 %v690, 0.35355338
  %v767 = vmul.f32 %v695, 0.35355338
  %v768 = vmul.f32 %v698, 0.35355338
  %v769 = vmul.f32 %v703, 0.35355338
  %v770 = vmul.f32 %v706, 0.35355338
  %v771 = vmul.f32 %v711, 0.35355338
  %v772 = vmul.f32 %v714, 0.35355338
  %v773 = vmul.f32 %v719, 0.35355338
  %v774 = vmul.f32 %v722, 0.35355338
  %v775 = vmul.f32 %v727, 0.35355338
  %v776 = vmul.f32 %v730, 0.35355338
  %v777 = vmul.f32 %v735, 0.35355338
  %v778 = vmul.f32 %v738, 0.35355338
  %v779 = vmul.f32 %v743, 0.35355338
  %v780 = vmul.f32 %v746, 0.35355338
  %vm781 = vcmask 523264
  %v782 = vsel %vm781, %v749, -inf
  %783 = vmax.xlane.f32.xlu0 %v782
  %v784 = vpop.xlane.xlu0 %783
  %v785 = vsel %vm781, %v750, -inf
  %786 = vmax.xlane.f32.xlu0 %v785
  %v787 = vpop.xlane.xlu0 %786
  %v788 = vsel %vm781, %v751, -inf
  %789 = vmax.xlane.f32.xlu0 %v788
  %v790 = vpop.xlane.xlu0 %789
  %v791 = vsel %vm781, %v752, -inf
  %792 = vmax.xlane.f32.xlu0 %v791
  %v793 = vpop.xlane.xlu0 %792
  %v794 = vsel %vm781, %v753, -inf
  %795 = vmax.xlane.f32.xlu0 %v794
  %v796 = vpop.xlane.xlu0 %795
  %v797 = vsel %vm781, %v754, -inf
  %798 = vmax.xlane.f32.xlu0 %v797
  %v799 = vpop.xlane.xlu0 %798
  %v800 = vsel %vm781, %v755, -inf
  %801 = vmax.xlane.f32.xlu0 %v800
  %v802 = vpop.xlane.xlu0 %801
  %v803 = vsel %vm781, %v756, -inf
  %804 = vmax.xlane.f32.xlu0 %v803
  %v805 = vpop.xlane.xlu0 %804
  %v806 = vsel %vm781, %v757, -inf
  %807 = vmax.xlane.f32.xlu0 %v806
  %v808 = vpop.xlane.xlu0 %807
  %v809 = vsel %vm781, %v758, -inf
  %810 = vmax.xlane.f32.xlu0 %v809
  %v811 = vpop.xlane.xlu0 %810
  %v812 = vsel %vm781, %v759, -inf
  %813 = vmax.xlane.f32.xlu0 %v812
  %v814 = vpop.xlane.xlu0 %813
  %v815 = vsel %vm781, %v760, -inf
  %816 = vmax.xlane.f32.xlu0 %v815
  %v817 = vpop.xlane.xlu0 %816
  %v818 = vsel %vm781, %v761, -inf
  %819 = vmax.xlane.f32.xlu0 %v818
  %v820 = vpop.xlane.xlu0 %819
  %v821 = vsel %vm781, %v762, -inf
  %822 = vmax.xlane.f32.xlu0 %v821
  %v823 = vpop.xlane.xlu0 %822
  %v824 = vsel %vm781, %v763, -inf
  %825 = vmax.xlane.f32.xlu0 %v824
  %v826 = vpop.xlane.xlu0 %825
  %v827 = vsel %vm781, %v764, -inf
  %828 = vmax.xlane.f32.xlu0 %v827
  %v829 = vpop.xlane.xlu0 %828
  %v830 = vsel %vm781, %v765, -inf
  %831 = vmax.xlane.f32.xlu0 %v830
  %v832 = vpop.xlane.xlu0 %831
  %v833 = vsel %vm781, %v766, -inf
  %834 = vmax.xlane.f32.xlu0 %v833
  %v835 = vpop.xlane.xlu0 %834
  %v836 = vsel %vm781, %v767, -inf
  %837 = vmax.xlane.f32.xlu0 %v836
  %v838 = vpop.xlane.xlu0 %837
  %v839 = vsel %vm781, %v768, -inf
  %840 = vmax.xlane.f32.xlu0 %v839
  %v841 = vpop.xlane.xlu0 %840
  %v842 = vsel %vm781, %v769, -inf
  %843 = vmax.xlane.f32.xlu0 %v842
  %v844 = vpop.xlane.xlu0 %843
  %v845 = vsel %vm781, %v770, -inf
  %846 = vmax.xlane.f32.xlu0 %v845
  %v847 = vpop.xlane.xlu0 %846
  %v848 = vsel %vm781, %v771, -inf
  %849 = vmax.xlane.f32.xlu0 %v848
  %v850 = vpop.xlane.xlu0 %849
  %v851 = vsel %vm781, %v772, -inf
  %852 = vmax.xlane.f32.xlu0 %v851
  %v853 = vpop.xlane.xlu0 %852
  %v854 = vsel %vm781, %v773, -inf
  %855 = vmax.xlane.f32.xlu0 %v854
  %v856 = vpop.xlane.xlu0 %855
  %v857 = vsel %vm781, %v774, -inf
  %858 = vmax.xlane.f32.xlu0 %v857
  %v859 = vpop.xlane.xlu0 %858
  %v860 = vsel %vm781, %v775, -inf
  %861 = vmax.xlane.f32.xlu0 %v860
  %v862 = vpop.xlane.xlu0 %861
  %v863 = vsel %vm781, %v776, -inf
  %864 = vmax.xlane.f32.xlu0 %v863
  %v865 = vpop.xlane.xlu0 %864
  %v866 = vsel %vm781, %v777, -inf
  %867 = vmax.xlane.f32.xlu0 %v866
  %v868 = vpop.xlane.xlu0 %867
  %v869 = vsel %vm781, %v778, -inf
  %870 = vmax.xlane.f32.xlu0 %v869
  %v871 = vpop.xlane.xlu0 %870
  %v872 = vsel %vm781, %v779, -inf
  %873 = vmax.xlane.f32.xlu0 %v872
  %v874 = vpop.xlane.xlu0 %873
  %v875 = vsel %vm781, %v780, -inf
  %876 = vmax.xlane.f32.xlu0 %v875
  %v877 = vpop.xlane.xlu0 %876
  %v878 = vsub.f32 %v749, %v784
  %v879 = vsub.f32 %v750, %v787
  %v880 = vsub.f32 %v751, %v790
  %v881 = vsub.f32 %v752, %v793
  %v882 = vsub.f32 %v753, %v796
  %v883 = vsub.f32 %v754, %v799
  %v884 = vsub.f32 %v755, %v802
  %v885 = vsub.f32 %v756, %v805
  %v886 = vsub.f32 %v757, %v808
  %v887 = vsub.f32 %v758, %v811
  %v888 = vsub.f32 %v759, %v814
  %v889 = vsub.f32 %v760, %v817
  %v890 = vsub.f32 %v761, %v820
  %v891 = vsub.f32 %v762, %v823
  %v892 = vsub.f32 %v763, %v826
  %v893 = vsub.f32 %v764, %v829
  %v894 = vsub.f32 %v765, %v832
  %v895 = vsub.f32 %v766, %v835
  %v896 = vsub.f32 %v767, %v838
  %v897 = vsub.f32 %v768, %v841
  %v898 = vsub.f32 %v769, %v844
  %v899 = vsub.f32 %v770, %v847
  %v900 = vsub.f32 %v771, %v850
  %v901 = vsub.f32 %v772, %v853
  %v902 = vsub.f32 %v773, %v856
  %v903 = vsub.f32 %v774, %v859
  %v904 = vsub.f32 %v775, %v862
  %v905 = vsub.f32 %v776, %v865
  %v906 = vsub.f32 %v777, %v868
  %v907 = vsub.f32 %v778, %v871
  %v908 = vsub.f32 %v779, %v874
  %v909 = vsub.f32 %v780, %v877
  %v910 = vmul.f32 %v878, 1.442695
  %v911 = vpow.pop %v910
  %v912 = vmul.f32 %v879, 1.442695
  %v913 = vpow.pop %v912
  %v914 = vmul.f32 %v880, 1.442695
  %v915 = vpow.pop %v914
  %v916 = vmul.f32 %v881, 1.442695
  %v917 = vpow.pop %v916
  %v918 = vmul.f32 %v882, 1.442695
  %v919 = vpow.pop %v918
  %v920 = vmul.f32 %v883, 1.442695
  %v921 = vpow.pop %v920
  %v922 = vmul.f32 %v884, 1.442695
  %v923 = vpow.pop %v922
  %v924 = vmul.f32 %v885, 1.442695
  %v925 = vpow.pop %v924
  %v926 = vmul.f32 %v886, 1.442695
  %v927 = vpow.pop %v926
  %v928 = vmul.f32 %v887, 1.442695
  %v929 = vpow.pop %v928
  %v930 = vmul.f32 %v888, 1.442695
  %v931 = vpow.pop %v930
  %v932 = vmul.f32 %v889, 1.442695
  %v933 = vpow.pop %v932
  %v934 = vmul.f32 %v890, 1.442695
  %v935 = vpow.pop %v934
  %v936 = vmul.f32 %v891, 1.442695
  %v937 = vpow.pop %v936
  %v938 = vmul.f32 %v892, 1.442695
  %v939 = vpow.pop %v938
  %v940 = vmul.f32 %v893, 1.442695
  %v941 = vpow.pop %v940
  %v942 = vmul.f32 %v894, 1.442695
  %v943 = vpow.pop %v942
  %v944 = vmul.f32 %v895, 1.442695
  %v945 = vpow.pop %v944
  %v946 = vmul.f32 %v896, 1.442695
  %v947 = vpow.pop %v946
  %v948 = vmul.f32 %v897, 1.442695
  %v949 = vpow.pop %v948
  %v950 = vmul.f32 %v898, 1.442695
  %v951 = vpow.pop %v950
  %v952 = vmul.f32 %v899, 1.442695
  %v953 = vpow.pop %v952
  %v954 = vmul.f32 %v900, 1.442695
  %v955 = vpow.pop %v954
  %v956 = vmul.f32 %v901, 1.442695
  %v957 = vpow.pop %v956
  %v958 = vmul.f32 %v902, 1.442695
  %v959 = vpow.pop %v958
  %v960 = vmul.f32 %v903, 1.442695
  %v961 = vpow.pop %v960
  %v962 = vmul.f32 %v904, 1.442695
  %v963 = vpow.pop %v962
  %v964 = vmul.f32 %v905, 1.442695
  %v965 = vpow.pop %v964
  %v966 = vmul.f32 %v906, 1.442695
  %v967 = vpow.pop %v966
  %v968 = vmul.f32 %v907, 1.442695
  %v969 = vpow.pop %v968
  %v970 = vmul.f32 %v908, 1.442695
  %v971 = vpow.pop %v970
  %v972 = vmul.f32 %v909, 1.442695
  %v973 = vpow.pop %v972
  %v974 = vsel %vm781, %v911, 0.0
  %975 = vadd.xlane.f32.xlu0 %v974
  %v976 = vpop.xlane.xlu0 %975
  %v977 = vsel %vm781, %v913, 0.0
  %978 = vadd.xlane.f32.xlu0 %v977
  %v979 = vpop.xlane.xlu0 %978
  %v980 = vsel %vm781, %v915, 0.0
  %981 = vadd.xlane.f32.xlu0 %v980
  %v982 = vpop.xlane.xlu0 %981
  %v983 = vsel %vm781, %v917, 0.0
  %984 = vadd.xlane.f32.xlu0 %v983
  %v985 = vpop.xlane.xlu0 %984
  %v986 = vsel %vm781, %v919, 0.0
  %987 = vadd.xlane.f32.xlu0 %v986
  %v988 = vpop.xlane.xlu0 %987
  %v989 = vsel %vm781, %v921, 0.0
  %990 = vadd.xlane.f32.xlu0 %v989
  %v991 = vpop.xlane.xlu0 %990
  %v992 = vsel %vm781, %v923, 0.0
  %993 = vadd.xlane.f32.xlu0 %v992
  %v994 = vpop.xlane.xlu0 %993
  %v995 = vsel %vm781, %v925, 0.0
  %996 = vadd.xlane.f32.xlu0 %v995
  %v997 = vpop.xlane.xlu0 %996
  %v998 = vsel %vm781, %v927, 0.0
  %999 = vadd.xlane.f32.xlu0 %v998
  %v1000 = vpop.xlane.xlu0 %999
  %v1001 = vsel %vm781, %v929, 0.0
  %1002 = vadd.xlane.f32.xlu0 %v1001
  %v1003 = vpop.xlane.xlu0 %1002
  %v1004 = vsel %vm781, %v931, 0.0
  %1005 = vadd.xlane.f32.xlu0 %v1004
  %v1006 = vpop.xlane.xlu0 %1005
  %v1007 = vsel %vm781, %v933, 0.0
  %1008 = vadd.xlane.f32.xlu0 %v1007
  %v1009 = vpop.xlane.xlu0 %1008
  %v1010 = vsel %vm781, %v935, 0.0
  %1011 = vadd.xlane.f32.xlu0 %v1010
  %v1012 = vpop.xlane.xlu0 %1011
  %v1013 = vsel %vm781, %v937, 0.0
  %1014 = vadd.xlane.f32.xlu0 %v1013
  %v1015 = vpop.xlane.xlu0 %1014
  %v1016 = vsel %vm781, %v939, 0.0
  %1017 = vadd.xlane.f32.xlu0 %v1016
  %v1018 = vpop.xlane.xlu0 %1017
  %v1019 = vsel %vm781, %v941, 0.0
  %1020 = vadd.xlane.f32.xlu0 %v1019
  %v1021 = vpop.xlane.xlu0 %1020
  %v1022 = vsel %vm781, %v943, 0.0
  %1023 = vadd.xlane.f32.xlu0 %v1022
  %v1024 = vpop.xlane.xlu0 %1023
  %v1025 = vsel %vm781, %v945, 0.0
  %1026 = vadd.xlane.f32.xlu0 %v1025
  %v1027 = vpop.xlane.xlu0 %1026
  %v1028 = vsel %vm781, %v947, 0.0
  %1029 = vadd.xlane.f32.xlu0 %v1028
  %v1030 = vpop.xlane.xlu0 %1029
  %v1031 = vsel %vm781, %v949, 0.0
  %1032 = vadd.xlane.f32.xlu0 %v1031
  %v1033 = vpop.xlane.xlu0 %1032
  %v1034 = vsel %vm781, %v951, 0.0
  %1035 = vadd.xlane.f32.xlu0 %v1034
  %v1036 = vpop.xlane.xlu0 %1035
  %v1037 = vsel %vm781, %v953, 0.0
  %1038 = vadd.xlane.f32.xlu0 %v1037
  %v1039 = vpop.xlane.xlu0 %1038
  %v1040 = vsel %vm781, %v955, 0.0
  %1041 = vadd.xlane.f32.xlu0 %v1040
  %v1042 = vpop.xlane.xlu0 %1041
  %v1043 = vsel %vm781, %v957, 0.0
  %1044 = vadd.xlane.f32.xlu0 %v1043
  %v1045 = vpop.xlane.xlu0 %1044
  %v1046 = vsel %vm781, %v959, 0.0
  %1047 = vadd.xlane.f32.xlu0 %v1046
  %v1048 = vpop.xlane.xlu0 %1047
  %v1049 = vsel %vm781, %v961, 0.0
  %1050 = vadd.xlane.f32.xlu0 %v1049
  %v1051 = vpop.xlane.xlu0 %1050
  %v1052 = vsel %vm781, %v963, 0.0
  %1053 = vadd.xlane.f32.xlu0 %v1052
  %v1054 = vpop.xlane.xlu0 %1053
  %v1055 = vsel %vm781, %v965, 0.0
  %1056 = vadd.xlane.f32.xlu0 %v1055
  %v1057 = vpop.xlane.xlu0 %1056
  %v1058 = vsel %vm781, %v967, 0.0
  %1059 = vadd.xlane.f32.xlu0 %v1058
  %v1060 = vpop.xlane.xlu0 %1059
  %v1061 = vsel %vm781, %v969, 0.0
  %1062 = vadd.xlane.f32.xlu0 %v1061
  %v1063 = vpop.xlane.xlu0 %1062
  %v1064 = vsel %vm781, %v971, 0.0
  %1065 = vadd.xlane.f32.xlu0 %v1064
  %v1066 = vpop.xlane.xlu0 %1065
  %v1067 = vsel %vm781, %v973, 0.0
  %1068 = vadd.xlane.f32.xlu0 %v1067
  %v1069 = vpop.xlane.xlu0 %1068
  %v1070 = vrcp.pop %v976
  %v1071 = vrcp.pop %v979
  %v1072 = vrcp.pop %v982
  %v1073 = vrcp.pop %v985
  %v1074 = vrcp.pop %v988
  %v1075 = vrcp.pop %v991
  %v1076 = vrcp.pop %v994
  %v1077 = vrcp.pop %v997
  %v1078 = vrcp.pop %v1000
  %v1079 = vrcp.pop %v1003
  %v1080 = vrcp.pop %v1006
  %v1081 = vrcp.pop %v1009
  %v1082 = vrcp.pop %v1012
  %v1083 = vrcp.pop %v1015
  %v1084 = vrcp.pop %v1018
  %v1085 = vrcp.pop %v1021
  %v1086 = vrcp.pop %v1024
  %v1087 = vrcp.pop %v1027
  %v1088 = vrcp.pop %v1030
  %v1089 = vrcp.pop %v1033
  %v1090 = vrcp.pop %v1036
  %v1091 = vrcp.pop %v1039
  %v1092 = vrcp.pop %v1042
  %v1093 = vrcp.pop %v1045
  %v1094 = vrcp.pop %v1048
  %v1095 = vrcp.pop %v1051
  %v1096 = vrcp.pop %v1054
  %v1097 = vrcp.pop %v1057
  %v1098 = vrcp.pop %v1060
  %v1099 = vrcp.pop %v1063
  %v1100 = vrcp.pop %v1066
  %v1101 = vrcp.pop %v1069
  %v1102 = vmul.f32 %v911, %v1070
  %v1103 = vmul.f32 %v913, %v1071
  %v1104 = vmul.f32 %v915, %v1072
  %v1105 = vmul.f32 %v917, %v1073
  %v1106 = vmul.f32 %v919, %v1074
  %v1107 = vmul.f32 %v921, %v1075
  %v1108 = vmul.f32 %v923, %v1076
  %v1109 = vmul.f32 %v925, %v1077
  %v1110 = vmul.f32 %v927, %v1078
  %v1111 = vmul.f32 %v929, %v1079
  %v1112 = vmul.f32 %v931, %v1080
  %v1113 = vmul.f32 %v933, %v1081
  %v1114 = vmul.f32 %v935, %v1082
  %v1115 = vmul.f32 %v937, %v1083
  %v1116 = vmul.f32 %v939, %v1084
  %v1117 = vmul.f32 %v941, %v1085
  %v1118 = vmul.f32 %v943, %v1086
  %v1119 = vmul.f32 %v945, %v1087
  %v1120 = vmul.f32 %v947, %v1088
  %v1121 = vmul.f32 %v949, %v1089
  %v1122 = vmul.f32 %v951, %v1090
  %v1123 = vmul.f32 %v953, %v1091
  %v1124 = vmul.f32 %v955, %v1092
  %v1125 = vmul.f32 %v957, %v1093
  %v1126 = vmul.f32 %v959, %v1094
  %v1127 = vmul.f32 %v961, %v1095
  %v1128 = vmul.f32 %v963, %v1096
  %v1129 = vmul.f32 %v965, %v1097
  %v1130 = vmul.f32 %v967, %v1098
  %v1131 = vmul.f32 %v969, %v1099
  %v1132 = vmul.f32 %v971, %v1100
  %v1133 = vmul.f32 %v973, %v1101
  %v1134 = vpack.c.bf16 %v1103, %v1102
  %v1135 = vpack.c.bf16 %v1105, %v1104
  %v1136 = vpack.c.bf16 %v1107, %v1106
  %v1137 = vpack.c.bf16 %v1109, %v1108
  %v1138 = vpack.c.bf16 %v1111, %v1110
  %v1139 = vpack.c.bf16 %v1113, %v1112
  %v1140 = vpack.c.bf16 %v1115, %v1114
  %v1141 = vpack.c.bf16 %v1117, %v1116
  %v1142 = vpack.c.bf16 %v1119, %v1118
  %v1143 = vpack.c.bf16 %v1121, %v1120
  %v1144 = vpack.c.bf16 %v1123, %v1122
  %v1145 = vpack.c.bf16 %v1125, %v1124
  %v1146 = vpack.c.bf16 %v1127, %v1126
  %v1147 = vpack.c.bf16 %v1129, %v1128
  %v1148 = vpack.c.bf16 %v1131, %v1130
  %v1149 = vpack.c.bf16 %v1133, %v1132
  %v1151 = vsel %vm781, %v1134, 0
  %v1154 = vsel %vm781, %v1135, 0
  %v1157 = vsel %vm781, %v1136, 0
  %v1160 = vsel %vm781, %v1137, 0
  %v1163 = vsel %vm781, %v1138, 0
  %v1166 = vsel %vm781, %v1139, 0
  %v1169 = vsel %vm781, %v1140, 0
  %v1172 = vsel %vm781, %v1141, 0
  %v1175 = vsel %vm781, %v1142, 0
  %v1178 = vsel %vm781, %v1143, 0
  %v1181 = vsel %vm781, %v1144, 0
  %v1184 = vsel %vm781, %v1145, 0
  %v1187 = vsel %vm781, %v1146, 0
  %v1190 = vsel %vm781, %v1147, 0
  %v1193 = vsel %vm781, %v1148, 0
  %v1196 = vsel %vm781, %v1149, 0
  %1198 = vmatprep.subr.bf16.mxu0 0
  %1199 = vmatpush1.bf16.msra.mxu0 0
  %1200 = vmatprep.subr.bf16.mxu0 0
  %1201 = vmatpush1.bf16.msra.mxu0 0
  %1202 = vmatprep.subr.bf16.mxu0 0
  %1203 = vmatpush1.bf16.msra.mxu0 0
  %1204 = vmatprep.subr.bf16.mxu0 0
  %1205 = vmatpush1.bf16.msra.mxu0 0
  %1206 = vmatprep.subr.bf16.mxu0 0
  %1207 = vmatpush1.bf16.msra.mxu0 %v457
  %1208 = vmatprep.subr.bf16.mxu0 0
  %1209 = vmatpush1.bf16.msra.mxu0 %v456
  %1210 = vmatprep.subr.bf16.mxu0 0
  %1211 = vmatpush1.bf16.msra.mxu0 %v455
  %1212 = vmatprep.subr.bf16.mxu0 0
  %1213 = vmatpush1.bf16.msra.mxu0 %v454
  %1214 = vmatprep.subr.bf16.mxu0 0
  %1215 = vmatpush2.bf16.msra.mxu0 0
  %1216 = vmatprep.subr.bf16.mxu0 0
  %1217 = vmatpush2.bf16.msra.mxu0 0
  %1218 = vmatprep.subr.bf16.mxu0 0
  %1219 = vmatpush2.bf16.msra.mxu0 0
  %1220 = vmatprep.subr.bf16.mxu0 0
  %1221 = vmatpush2.bf16.msra.mxu0 0
  %1222 = vmatprep.subr.bf16.mxu0 0
  %1223 = vmatpush2.bf16.msra.mxu0 0
  %1224 = vmatprep.subr.bf16.mxu0 0
  %1225 = vmatpush2.bf16.msra.mxu0 0
  %1226 = vmatprep.subr.bf16.mxu0 0
  %1227 = vmatpush2.bf16.msra.mxu0 0
  %1228 = vmatprep.subr.bf16.mxu0 0
  %1229 = vmatpush2.bf16.msra.mxu0 0
  %1230 = vmatprep.mubr.bf16.mxu0 0
  %1231 = vmatmul.mubr.bf16.gmra.mxu0 %v1151
  %v1232 = vpop.f32.mrf.mxu0
  %v1233 = vadd.f32 0.0, %v1232
  %v1234 = vpop.f32.mrf.mxu0
  %v1235 = vpop.f32.mrf.mxu0
  %v1236 = vadd.f32 0.0, %v1235
  %v1237 = vpop.f32.mrf.mxu0
  %1238 = vmatprep.mubr.bf16.mxu0 0
  %1239 = vmatmul.mubr.bf16.gmra.mxu0 %v1154
  %v1240 = vpop.f32.mrf.mxu0
  %v1241 = vadd.f32 0.0, %v1240
  %v1242 = vpop.f32.mrf.mxu0
  %v1243 = vpop.f32.mrf.mxu0
  %v1244 = vadd.f32 0.0, %v1243
  %v1245 = vpop.f32.mrf.mxu0
  %1246 = vmatprep.mubr.bf16.mxu0 0
  %1247 = vmatmul.mubr.bf16.gmra.mxu0 %v1157
  %v1248 = vpop.f32.mrf.mxu0
  %v1249 = vadd.f32 0.0, %v1248
  %v1250 = vpop.f32.mrf.mxu0
  %v1251 = vpop.f32.mrf.mxu0
  %v1252 = vadd.f32 0.0, %v1251
  %v1253 = vpop.f32.mrf.mxu0
  %1254 = vmatprep.mubr.bf16.mxu0 0
  %1255 = vmatmul.mubr.bf16.gmra.mxu0 %v1160
  %v1256 = vpop.f32.mrf.mxu0
  %v1257 = vadd.f32 0.0, %v1256
  %v1258 = vpop.f32.mrf.mxu0
  %v1259 = vpop.f32.mrf.mxu0
  %v1260 = vadd.f32 0.0, %v1259
  %v1261 = vpop.f32.mrf.mxu0
  %1262 = vmatprep.mubr.bf16.mxu0 0
  %1263 = vmatmul.mubr.bf16.gmra.mxu0 %v1163
  %v1264 = vpop.f32.mrf.mxu0
  %v1265 = vadd.f32 0.0, %v1264
  %v1266 = vpop.f32.mrf.mxu0
  %v1267 = vpop.f32.mrf.mxu0
  %v1268 = vadd.f32 0.0, %v1267
  %v1269 = vpop.f32.mrf.mxu0
  %1270 = vmatprep.mubr.bf16.mxu0 0
  %1271 = vmatmul.mubr.bf16.gmra.mxu0 %v1166
  %v1272 = vpop.f32.mrf.mxu0
  %v1273 = vadd.f32 0.0, %v1272
  %v1274 = vpop.f32.mrf.mxu0
  %v1275 = vpop.f32.mrf.mxu0
  %v1276 = vadd.f32 0.0, %v1275
  %v1277 = vpop.f32.mrf.mxu0
  %1278 = vmatprep.mubr.bf16.mxu0 0
  %1279 = vmatmul.mubr.bf16.gmra.mxu0 %v1169
  %v1280 = vpop.f32.mrf.mxu0
  %v1281 = vadd.f32 0.0, %v1280
  %v1282 = vpop.f32.mrf.mxu0
  %v1283 = vpop.f32.mrf.mxu0
  %v1284 = vadd.f32 0.0, %v1283
  %v1285 = vpop.f32.mrf.mxu0
  %1286 = vmatprep.mubr.bf16.mxu0 0
  %1287 = vmatmul.mubr.bf16.gmra.mxu0 %v1172
  %v1288 = vpop.f32.mrf.mxu0
  %v1289 = vadd.f32 0.0, %v1288
  %v1290 = vpop.f32.mrf.mxu0
  %v1291 = vpop.f32.mrf.mxu0
  %v1292 = vadd.f32 0.0, %v1291
  %v1293 = vpop.f32.mrf.mxu0
  %1294 = vmatprep.mubr.bf16.mxu0 0
  %1295 = vmatmul.mubr.bf16.gmra.mxu0 %v1175
  %v1296 = vpop.f32.mrf.mxu0
  %v1297 = vadd.f32 0.0, %v1296
  %v1298 = vpop.f32.mrf.mxu0
  %v1299 = vpop.f32.mrf.mxu0
  %v1300 = vadd.f32 0.0, %v1299
  %v1301 = vpop.f32.mrf.mxu0
  %1302 = vmatprep.mubr.bf16.mxu0 0
  %1303 = vmatmul.mubr.bf16.gmra.mxu0 %v1178
  %v1304 = vpop.f32.mrf.mxu0
  %v1305 = vadd.f32 0.0, %v1304
  %v1306 = vpop.f32.mrf.mxu0
  %v1307 = vpop.f32.mrf.mxu0
  %v1308 = vadd.f32 0.0, %v1307
  %v1309 = vpop.f32.mrf.mxu0
  %1310 = vmatprep.mubr.bf16.mxu0 0
  %1311 = vmatmul.mubr.bf16.gmra.mxu0 %v1181
  %v1312 = vpop.f32.mrf.mxu0
  %v1313 = vadd.f32 0.0, %v1312
  %v1314 = vpop.f32.mrf.mxu0
  %v1315 = vpop.f32.mrf.mxu0
  %v1316 = vadd.f32 0.0, %v1315
  %v1317 = vpop.f32.mrf.mxu0
  %1318 = vmatprep.mubr.bf16.mxu0 0
  %1319 = vmatmul.mubr.bf16.gmra.mxu0 %v1184
  %v1320 = vpop.f32.mrf.mxu0
  %v1321 = vadd.f32 0.0, %v1320
  %v1322 = vpop.f32.mrf.mxu0
  %v1323 = vpop.f32.mrf.mxu0
  %v1324 = vadd.f32 0.0, %v1323
  %v1325 = vpop.f32.mrf.mxu0
  %1326 = vmatprep.mubr.bf16.mxu0 0
  %1327 = vmatmul.mubr.bf16.gmra.mxu0 %v1187
  %v1328 = vpop.f32.mrf.mxu0
  %v1329 = vadd.f32 0.0, %v1328
  %v1330 = vpop.f32.mrf.mxu0
  %v1331 = vpop.f32.mrf.mxu0
  %v1332 = vadd.f32 0.0, %v1331
  %v1333 = vpop.f32.mrf.mxu0
  %1334 = vmatprep.mubr.bf16.mxu0 0
  %1335 = vmatmul.mubr.bf16.gmra.mxu0 %v1190
  %v1336 = vpop.f32.mrf.mxu0
  %v1337 = vadd.f32 0.0, %v1336
  %v1338 = vpop.f32.mrf.mxu0
  %v1339 = vpop.f32.mrf.mxu0
  %v1340 = vadd.f32 0.0, %v1339
  %v1341 = vpop.f32.mrf.mxu0
  %1342 = vmatprep.mubr.bf16.mxu0 0
  %1343 = vmatmul.mubr.bf16.gmra.mxu0 %v1193
  %v1344 = vpop.f32.mrf.mxu0
  %v1345 = vadd.f32 0.0, %v1344
  %v1346 = vpop.f32.mrf.mxu0
  %v1347 = vpop.f32.mrf.mxu0
  %v1348 = vadd.f32 0.0, %v1347
  %v1349 = vpop.f32.mrf.mxu0
  %1350 = vmatprep.mubr.bf16.mxu0 0
  %1351 = vmatmul.mubr.bf16.gmra.mxu0 %v1196
  %v1352 = vpop.f32.mrf.mxu0
  %v1353 = vadd.f32 0.0, %v1352
  %v1354 = vpop.f32.mrf.mxu0
  %v1355 = vpop.f32.mrf.mxu0
  %v1356 = vadd.f32 0.0, %v1355
  %v1357 = vpop.f32.mrf.mxu0
  %1358 = vdwg.mxu0
  %v1359 = vsel %vm477, %v1233, 0.0
  %v1360 = vsel %vm477, %v1236, 0.0
  %v1361 = vsel %vm477, %v1241, 0.0
  %v1362 = vsel %vm477, %v1244, 0.0
  %v1363 = vsel %vm477, %v1249, 0.0
  %v1364 = vsel %vm477, %v1252, 0.0
  %v1365 = vsel %vm477, %v1257, 0.0
  %v1366 = vsel %vm477, %v1260, 0.0
  %v1367 = vadd.f32 %v1359, 0.0
  %v1368 = vadd.f32 %v1360, 0.0
  %v1369 = vadd.f32 %v1361, 0.0
  %v1370 = vadd.f32 %v1362, 0.0
  %v1371 = vadd.f32 %v1363, 0.0
  %v1372 = vadd.f32 %v1364, 0.0
  %v1373 = vadd.f32 %v1365, 0.0
  %v1374 = vadd.f32 %v1366, 0.0
  %v1375 = vsel %vm490, %v1265, 0.0
  %v1376 = vsel %vm490, %v1268, 0.0
  %v1377 = vsel %vm490, %v1273, 0.0
  %v1378 = vsel %vm490, %v1276, 0.0
  %v1379 = vsel %vm490, %v1281, 0.0
  %v1380 = vsel %vm490, %v1284, 0.0
  %v1381 = vsel %vm490, %v1289, 0.0
  %v1382 = vsel %vm490, %v1292, 0.0
  %v1383 = vadd.f32 %v1367, %v1375
  %v1384 = vadd.f32 %v1368, %v1376
  %v1385 = vadd.f32 %v1369, %v1377
  %v1386 = vadd.f32 %v1370, %v1378
  %v1387 = vadd.f32 %v1371, %v1379
  %v1388 = vadd.f32 %v1372, %v1380
  %v1389 = vadd.f32 %v1373, %v1381
  %v1390 = vadd.f32 %v1374, %v1382
  %v1391 = vsel %vm503, %v1297, 0.0
  %v1392 = vsel %vm503, %v1300, 0.0
  %v1393 = vsel %vm503, %v1305, 0.0
  %v1394 = vsel %vm503, %v1308, 0.0
  %v1395 = vsel %vm503, %v1313, 0.0
  %v1396 = vsel %vm503, %v1316, 0.0
  %v1397 = vsel %vm503, %v1321, 0.0
  %v1398 = vsel %vm503, %v1324, 0.0
  %v1399 = vadd.f32 %v1383, %v1391
  %v1400 = vadd.f32 %v1384, %v1392
  %v1401 = vadd.f32 %v1385, %v1393
  %v1402 = vadd.f32 %v1386, %v1394
  %v1403 = vadd.f32 %v1387, %v1395
  %v1404 = vadd.f32 %v1388, %v1396
  %v1405 = vadd.f32 %v1389, %v1397
  %v1406 = vadd.f32 %v1390, %v1398
  %v1407 = vsel %vm516, %v1329, 0.0
  %v1408 = vsel %vm516, %v1332, 0.0
  %v1409 = vsel %vm516, %v1337, 0.0
  %v1410 = vsel %vm516, %v1340, 0.0
  %v1411 = vsel %vm516, %v1345, 0.0
  %v1412 = vsel %vm516, %v1348, 0.0
  %v1413 = vsel %vm516, %v1353, 0.0
  %v1414 = vsel %vm516, %v1356, 0.0
  %v1415 = vadd.f32 %v1399, %v1407
  %v1416 = vadd.f32 %v1400, %v1408
  %v1417 = vadd.f32 %v1401, %v1409
  %v1418 = vadd.f32 %v1402, %v1410
  %v1419 = vadd.f32 %v1403, %v1411
  %v1420 = vadd.f32 %v1404, %v1412
  %v1421 = vadd.f32 %v1405, %v1413
  %v1422 = vadd.f32 %v1406, %v1414
  %1423 = vst.msk [vmem:[#allocation2] sm:$0xff] %vm80, %v1415
  %1424 = vst.msk [vmem:[#allocation2 + $0x8] sm:$0xff] %vm80, %v1416
  %1425 = vst.msk [vmem:[#allocation2 + $0x10] sm:$0xff] %vm80, %v1417
  %1426 = vst.msk [vmem:[#allocation2 + $0x18] sm:$0xff] %vm80, %v1418
  %1427 = vst.msk [vmem:[#allocation2 + $0x20] sm:$0xff] %vm80, %v1419
  %1428 = vst.msk [vmem:[#allocation2 + $0x28] sm:$0xff] %vm80, %v1420
  %1429 = vst.msk [vmem:[#allocation2 + $0x30] sm:$0xff] %vm80, %v1421
  %1430 = vst.msk [vmem:[#allocation2 + $0x38] sm:$0xff] %vm80, %v1422
  %v1431 = vsel %vm484, %v442, 0
  %v1432 = vsel %vm484, %v443, 0
  %v1433 = vsel %vm484, %v444, 0
  %v1434 = vsel %vm484, %v445, 0
  %v1435 = vsel %vm497, %v442, 0
  %v1436 = vsel %vm497, %v443, 0
  %v1437 = vsel %vm497, %v444, 0
  %v1438 = vsel %vm497, %v445, 0
  %v1439 = vsel %vm510, %v442, 0
  %v1440 = vsel %vm510, %v443, 0
  %v1441 = vsel %vm510, %v444, 0
  %v1442 = vsel %vm510, %v445, 0
  %v1443 = vsel %vm523, %v442, 0
  %v1444 = vsel %vm523, %v443, 0
  %v1445 = vsel %vm523, %v444, 0
  %v1446 = vsel %vm523, %v445, 0
  %v1448 = vsel %vm80, %v1431, 0
  %v1451 = vsel %vm80, %v1432, 0
  %v1454 = vsel %vm80, %v1433, 0
  %v1457 = vsel %vm80, %v1434, 0
  %v1460 = vsel %vm80, %v1435, 0
  %v1463 = vsel %vm80, %v1436, 0
  %v1466 = vsel %vm80, %v1437, 0
  %v1469 = vsel %vm80, %v1438, 0
  %v1472 = vsel %vm80, %v1439, 0
  %v1475 = vsel %vm80, %v1440, 0
  %v1478 = vsel %vm80, %v1441, 0
  %v1481 = vsel %vm80, %v1442, 0
  %v1484 = vsel %vm80, %v1443, 0
  %v1487 = vsel %vm80, %v1444, 0
  %v1490 = vsel %vm80, %v1445, 0
  %v1493 = vsel %vm80, %v1446, 0
  %v1496 = vsel %vm80, %v450, 0
  %v1499 = vsel %vm80, %v451, 0
  %v1502 = vsel %vm80, %v452, 0
  %v1505 = vsel %vm80, %v453, 0
  %1507 = vmatprep.subr.bf16.mxu0 0
  %1508 = vmatpush1.bf16.xpose.msra.mxu0 0
  %1509 = vmatprep.subr.bf16.mxu0 0
  %1510 = vmatpush1.bf16.xpose.msra.mxu0 0
  %1511 = vmatprep.subr.bf16.mxu0 0
  %1512 = vmatpush1.bf16.xpose.msra.mxu0 0
  %1513 = vmatprep.subr.bf16.mxu0 0
  %1514 = vmatpush1.bf16.xpose.msra.mxu0 0
  %1515 = vmatprep.subr.bf16.mxu0 0
  %1516 = vmatpush1.bf16.xpose.msra.mxu0 %v1505
  %1517 = vmatprep.subr.bf16.mxu0 0
  %1518 = vmatpush1.bf16.xpose.msra.mxu0 %v1502
  %1519 = vmatprep.subr.bf16.mxu0 0
  %1520 = vmatpush1.bf16.xpose.msra.mxu0 %v1499
  %1521 = vmatprep.subr.bf16.mxu0 0
  %1522 = vmatpush1.bf16.xpose.msra.mxu0 %v1496
  %1523 = vmatprep.subr.bf16.mxu0 0
  %1524 = vmatpush2.bf16.xpose.msra.mxu0 0
  %1525 = vmatprep.subr.bf16.mxu0 0
  %1526 = vmatpush2.bf16.xpose.msra.mxu0 0
  %1527 = vmatprep.subr.bf16.mxu0 0
  %1528 = vmatpush2.bf16.xpose.msra.mxu0 0
  %1529 = vmatprep.subr.bf16.mxu0 0
  %1530 = vmatpush2.bf16.xpose.msra.mxu0 0
  %1531 = vmatprep.subr.bf16.mxu0 0
  %1532 = vmatpush2.bf16.xpose.msra.mxu0 0
  %1533 = vmatprep.subr.bf16.mxu0 0
  %1534 = vmatpush2.bf16.xpose.msra.mxu0 0
  %1535 = vmatprep.subr.bf16.mxu0 0
  %1536 = vmatpush2.bf16.xpose.msra.mxu0 0
  %1537 = vmatprep.subr.bf16.mxu0 0
  %1538 = vmatpush2.bf16.xpose.msra.mxu0 0
  %1539 = vmatprep.mubr.bf16.mxu0 0
  %1540 = vmatmul.mubr.bf16.gmra.mxu0 %v1448
  %v1541 = vpop.f32.mrf.mxu0
  %v1542 = vadd.f32 0.0, %v1541
  %v1543 = vpop.f32.mrf.mxu0
  %v1544 = vpop.f32.mrf.mxu0
  %v1545 = vadd.f32 0.0, %v1544
  %v1546 = vpop.f32.mrf.mxu0
  %1547 = vmatprep.mubr.bf16.mxu0 0
  %1548 = vmatmul.mubr.bf16.gmra.mxu0 %v1451
  %v1549 = vpop.f32.mrf.mxu0
  %v1550 = vadd.f32 0.0, %v1549
  %v1551 = vpop.f32.mrf.mxu0
  %v1552 = vpop.f32.mrf.mxu0
  %v1553 = vadd.f32 0.0, %v1552
  %v1554 = vpop.f32.mrf.mxu0
  %1555 = vmatprep.mubr.bf16.mxu0 0
  %1556 = vmatmul.mubr.bf16.gmra.mxu0 %v1454
  %v1557 = vpop.f32.mrf.mxu0
  %v1558 = vadd.f32 0.0, %v1557
  %v1559 = vpop.f32.mrf.mxu0
  %v1560 = vpop.f32.mrf.mxu0
  %v1561 = vadd.f32 0.0, %v1560
  %v1562 = vpop.f32.mrf.mxu0
  %1563 = vmatprep.mubr.bf16.mxu0 0
  %1564 = vmatmul.mubr.bf16.gmra.mxu0 %v1457
  %v1565 = vpop.f32.mrf.mxu0
  %v1566 = vadd.f32 0.0, %v1565
  %v1567 = vpop.f32.mrf.mxu0
  %v1568 = vpop.f32.mrf.mxu0
  %v1569 = vadd.f32 0.0, %v1568
  %v1570 = vpop.f32.mrf.mxu0
  %1571 = vmatprep.mubr.bf16.mxu0 0
  %1572 = vmatmul.mubr.bf16.gmra.mxu0 %v1460
  %v1573 = vpop.f32.mrf.mxu0
  %v1574 = vadd.f32 0.0, %v1573
  %v1575 = vpop.f32.mrf.mxu0
  %v1576 = vpop.f32.mrf.mxu0
  %v1577 = vadd.f32 0.0, %v1576
  %v1578 = vpop.f32.mrf.mxu0
  %1579 = vmatprep.mubr.bf16.mxu0 0
  %1580 = vmatmul.mubr.bf16.gmra.mxu0 %v1463
  %v1581 = vpop.f32.mrf.mxu0
  %v1582 = vadd.f32 0.0, %v1581
  %v1583 = vpop.f32.mrf.mxu0
  %v1584 = vpop.f32.mrf.mxu0
  %v1585 = vadd.f32 0.0, %v1584
  %v1586 = vpop.f32.mrf.mxu0
  %1587 = vmatprep.mubr.bf16.mxu0 0
  %1588 = vmatmul.mubr.bf16.gmra.mxu0 %v1466
  %v1589 = vpop.f32.mrf.mxu0
  %v1590 = vadd.f32 0.0, %v1589
  %v1591 = vpop.f32.mrf.mxu0
  %v1592 = vpop.f32.mrf.mxu0
  %v1593 = vadd.f32 0.0, %v1592
  %v1594 = vpop.f32.mrf.mxu0
  %1595 = vmatprep.mubr.bf16.mxu0 0
  %1596 = vmatmul.mubr.bf16.gmra.mxu0 %v1469
  %v1597 = vpop.f32.mrf.mxu0
  %v1598 = vadd.f32 0.0, %v1597
  %v1599 = vpop.f32.mrf.mxu0
  %v1600 = vpop.f32.mrf.mxu0
  %v1601 = vadd.f32 0.0, %v1600
  %v1602 = vpop.f32.mrf.mxu0
  %1603 = vmatprep.mubr.bf16.mxu0 0
  %1604 = vmatmul.mubr.bf16.gmra.mxu0 %v1472
  %v1605 = vpop.f32.mrf.mxu0
  %v1606 = vadd.f32 0.0, %v1605
  %v1607 = vpop.f32.mrf.mxu0
  %v1608 = vpop.f32.mrf.mxu0
  %v1609 = vadd.f32 0.0, %v1608
  %v1610 = vpop.f32.mrf.mxu0
  %1611 = vmatprep.mubr.bf16.mxu0 0
  %1612 = vmatmul.mubr.bf16.gmra.mxu0 %v1475
  %v1613 = vpop.f32.mrf.mxu0
  %v1614 = vadd.f32 0.0, %v1613
  %v1615 = vpop.f32.mrf.mxu0
  %v1616 = vpop.f32.mrf.mxu0
  %v1617 = vadd.f32 0.0, %v1616
  %v1618 = vpop.f32.mrf.mxu0
  %1619 = vmatprep.mubr.bf16.mxu0 0
  %1620 = vmatmul.mubr.bf16.gmra.mxu0 %v1478
  %v1621 = vpop.f32.mrf.mxu0
  %v1622 = vadd.f32 0.0, %v1621
  %v1623 = vpop.f32.mrf.mxu0
  %v1624 = vpop.f32.mrf.mxu0
  %v1625 = vadd.f32 0.0, %v1624
  %v1626 = vpop.f32.mrf.mxu0
  %1627 = vmatprep.mubr.bf16.mxu0 0
  %1628 = vmatmul.mubr.bf16.gmra.mxu0 %v1481
  %v1629 = vpop.f32.mrf.mxu0
  %v1630 = vadd.f32 0.0, %v1629
  %v1631 = vpop.f32.mrf.mxu0
  %v1632 = vpop.f32.mrf.mxu0
  %v1633 = vadd.f32 0.0, %v1632
  %v1634 = vpop.f32.mrf.mxu0
  %1635 = vmatprep.mubr.bf16.mxu0 0
  %1636 = vmatmul.mubr.bf16.gmra.mxu0 %v1484
  %v1637 = vpop.f32.mrf.mxu0
  %v1638 = vadd.f32 0.0, %v1637
  %v1639 = vpop.f32.mrf.mxu0
  %v1640 = vpop.f32.mrf.mxu0
  %v1641 = vadd.f32 0.0, %v1640
  %v1642 = vpop.f32.mrf.mxu0
  %1643 = vmatprep.mubr.bf16.mxu0 0
  %1644 = vmatmul.mubr.bf16.gmra.mxu0 %v1487
  %v1645 = vpop.f32.mrf.mxu0
  %v1646 = vadd.f32 0.0, %v1645
  %v1647 = vpop.f32.mrf.mxu0
  %v1648 = vpop.f32.mrf.mxu0
  %v1649 = vadd.f32 0.0, %v1648
  %v1650 = vpop.f32.mrf.mxu0
  %1651 = vmatprep.mubr.bf16.mxu0 0
  %1652 = vmatmul.mubr.bf16.gmra.mxu0 %v1490
  %v1653 = vpop.f32.mrf.mxu0
  %v1654 = vadd.f32 0.0, %v1653
  %v1655 = vpop.f32.mrf.mxu0
  %v1656 = vpop.f32.mrf.mxu0
  %v1657 = vadd.f32 0.0, %v1656
  %v1658 = vpop.f32.mrf.mxu0
  %1659 = vmatprep.mubr.bf16.mxu0 0
  %1660 = vmatmul.mubr.bf16.gmra.mxu0 %v1493
  %v1661 = vpop.f32.mrf.mxu0
  %v1662 = vadd.f32 0.0, %v1661
  %v1663 = vpop.f32.mrf.mxu0
  %v1664 = vpop.f32.mrf.mxu0
  %v1665 = vadd.f32 0.0, %v1664
  %v1666 = vpop.f32.mrf.mxu0
  %1667 = vdwg.mxu0
  %v1668 = vmul.f32 %v1542, 0.35355338
  %v1669 = vmul.f32 %v1545, 0.35355338
  %v1670 = vmul.f32 %v1550, 0.35355338
  %v1671 = vmul.f32 %v1553, 0.35355338
  %v1672 = vmul.f32 %v1558, 0.35355338
  %v1673 = vmul.f32 %v1561, 0.35355338
  %v1674 = vmul.f32 %v1566, 0.35355338
  %v1675 = vmul.f32 %v1569, 0.35355338
  %v1676 = vmul.f32 %v1574, 0.35355338
  %v1677 = vmul.f32 %v1577, 0.35355338
  %v1678 = vmul.f32 %v1582, 0.35355338
  %v1679 = vmul.f32 %v1585, 0.35355338
  %v1680 = vmul.f32 %v1590, 0.35355338
  %v1681 = vmul.f32 %v1593, 0.35355338
  %v1682 = vmul.f32 %v1598, 0.35355338
  %v1683 = vmul.f32 %v1601, 0.35355338
  %v1684 = vmul.f32 %v1606, 0.35355338
  %v1685 = vmul.f32 %v1609, 0.35355338
  %v1686 = vmul.f32 %v1614, 0.35355338
  %v1687 = vmul.f32 %v1617, 0.35355338
  %v1688 = vmul.f32 %v1622, 0.35355338
  %v1689 = vmul.f32 %v1625, 0.35355338
  %v1690 = vmul.f32 %v1630, 0.35355338
  %v1691 = vmul.f32 %v1633, 0.35355338
  %v1692 = vmul.f32 %v1638, 0.35355338
  %v1693 = vmul.f32 %v1641, 0.35355338
  %v1694 = vmul.f32 %v1646, 0.35355338
  %v1695 = vmul.f32 %v1649, 0.35355338
  %v1696 = vmul.f32 %v1654, 0.35355338
  %v1697 = vmul.f32 %v1657, 0.35355338
  %v1698 = vmul.f32 %v1662, 0.35355338
  %v1699 = vmul.f32 %v1665, 0.35355338
  %v1700 = vsel %vm781, %v1668, -inf
  %1701 = vmax.xlane.f32.xlu0 %v1700
  %v1702 = vpop.xlane.xlu0 %1701
  %v1703 = vsel %vm781, %v1669, -inf
  %1704 = vmax.xlane.f32.xlu0 %v1703
  %v1705 = vpop.xlane.xlu0 %1704
  %v1706 = vsel %vm781, %v1670, -inf
  %1707 = vmax.xlane.f32.xlu0 %v1706
  %v1708 = vpop.xlane.xlu0 %1707
  %v1709 = vsel %vm781, %v1671, -inf
  %1710 = vmax.xlane.f32.xlu0 %v1709
  %v1711 = vpop.xlane.xlu0 %1710
  %v1712 = vsel %vm781, %v1672, -inf
  %1713 = vmax.xlane.f32.xlu0 %v1712
  %v1714 = vpop.xlane.xlu0 %1713
  %v1715 = vsel %vm781, %v1673, -inf
  %1716 = vmax.xlane.f32.xlu0 %v1715
  %v1717 = vpop.xlane.xlu0 %1716
  %v1718 = vsel %vm781, %v1674, -inf
  %1719 = vmax.xlane.f32.xlu0 %v1718
  %v1720 = vpop.xlane.xlu0 %1719
  %v1721 = vsel %vm781, %v1675, -inf
  %1722 = vmax.xlane.f32.xlu0 %v1721
  %v1723 = vpop.xlane.xlu0 %1722
  %v1724 = vsel %vm781, %v1676, -inf
  %1725 = vmax.xlane.f32.xlu0 %v1724
  %v1726 = vpop.xlane.xlu0 %1725
  %v1727 = vsel %vm781, %v1677, -inf
  %1728 = vmax.xlane.f32.xlu0 %v1727
  %v1729 = vpop.xlane.xlu0 %1728
  %v1730 = vsel %vm781, %v1678, -inf
  %1731 = vmax.xlane.f32.xlu0 %v1730
  %v1732 = vpop.xlane.xlu0 %1731
  %v1733 = vsel %vm781, %v1679, -inf
  %1734 = vmax.xlane.f32.xlu0 %v1733
  %v1735 = vpop.xlane.xlu0 %1734
  %v1736 = vsel %vm781, %v1680, -inf
  %1737 = vmax.xlane.f32.xlu0 %v1736
  %v1738 = vpop.xlane.xlu0 %1737
  %v1739 = vsel %vm781, %v1681, -inf
  %1740 = vmax.xlane.f32.xlu0 %v1739
  %v1741 = vpop.xlane.xlu0 %1740
  %v1742 = vsel %vm781, %v1682, -inf
  %1743 = vmax.xlane.f32.xlu0 %v1742
  %v1744 = vpop.xlane.xlu0 %1743
  %v1745 = vsel %vm781, %v1683, -inf
  %1746 = vmax.xlane.f32.xlu0 %v1745
  %v1747 = vpop.xlane.xlu0 %1746
  %v1748 = vsel %vm781, %v1684, -inf
  %1749 = vmax.xlane.f32.xlu0 %v1748
  %v1750 = vpop.xlane.xlu0 %1749
  %v1751 = vsel %vm781, %v1685, -inf
  %1752 = vmax.xlane.f32.xlu0 %v1751
  %v1753 = vpop.xlane.xlu0 %1752
  %v1754 = vsel %vm781, %v1686, -inf
  %1755 = vmax.xlane.f32.xlu0 %v1754
  %v1756 = vpop.xlane.xlu0 %1755
  %v1757 = vsel %vm781, %v1687, -inf
  %1758 = vmax.xlane.f32.xlu0 %v1757
  %v1759 = vpop.xlane.xlu0 %1758
  %v1760 = vsel %vm781, %v1688, -inf
  %1761 = vmax.xlane.f32.xlu0 %v1760
  %v1762 = vpop.xlane.xlu0 %1761
  %v1763 = vsel %vm781, %v1689, -inf
  %1764 = vmax.xlane.f32.xlu0 %v1763
  %v1765 = vpop.xlane.xlu0 %1764
  %v1766 = vsel %vm781, %v1690, -inf
  %1767 = vmax.xlane.f32.xlu0 %v1766
  %v1768 = vpop.xlane.xlu0 %1767
  %v1769 = vsel %vm781, %v1691, -inf
  %1770 = vmax.xlane.f32.xlu0 %v1769
  %v1771 = vpop.xlane.xlu0 %1770
  %v1772 = vsel %vm781, %v1692, -inf
  %1773 = vmax.xlane.f32.xlu0 %v1772
  %v1774 = vpop.xlane.xlu0 %1773
  %v1775 = vsel %vm781, %v1693, -inf
  %1776 = vmax.xlane.f32.xlu0 %v1775
  %v1777 = vpop.xlane.xlu0 %1776
  %v1778 = vsel %vm781, %v1694, -inf
  %1779 = vmax.xlane.f32.xlu0 %v1778
  %v1780 = vpop.xlane.xlu0 %1779
  %v1781 = vsel %vm781, %v1695, -inf
  %1782 = vmax.xlane.f32.xlu0 %v1781
  %v1783 = vpop.xlane.xlu0 %1782
  %v1784 = vsel %vm781, %v1696, -inf
  %1785 = vmax.xlane.f32.xlu0 %v1784
  %v1786 = vpop.xlane.xlu0 %1785
  %v1787 = vsel %vm781, %v1697, -inf
  %1788 = vmax.xlane.f32.xlu0 %v1787
  %v1789 = vpop.xlane.xlu0 %1788
  %v1790 = vsel %vm781, %v1698, -inf
  %1791 = vmax.xlane.f32.xlu0 %v1790
  %v1792 = vpop.xlane.xlu0 %1791
  %v1793 = vsel %vm781, %v1699, -inf
  %1794 = vmax.xlane.f32.xlu0 %v1793
  %v1795 = vpop.xlane.xlu0 %1794
  %v1796 = vsub.f32 %v1668, %v1702
  %v1797 = vsub.f32 %v1669, %v1705
  %v1798 = vsub.f32 %v1670, %v1708
  %v1799 = vsub.f32 %v1671, %v1711
  %v1800 = vsub.f32 %v1672, %v1714
  %v1801 = vsub.f32 %v1673, %v1717
  %v1802 = vsub.f32 %v1674, %v1720
  %v1803 = vsub.f32 %v1675, %v1723
  %v1804 = vsub.f32 %v1676, %v1726
  %v1805 = vsub.f32 %v1677, %v1729
  %v1806 = vsub.f32 %v1678, %v1732
  %v1807 = vsub.f32 %v1679, %v1735
  %v1808 = vsub.f32 %v1680, %v1738
  %v1809 = vsub.f32 %v1681, %v1741
  %v1810 = vsub.f32 %v1682, %v1744
  %v1811 = vsub.f32 %v1683, %v1747
  %v1812 = vsub.f32 %v1684, %v1750
  %v1813 = vsub.f32 %v1685, %v1753
  %v1814 = vsub.f32 %v1686, %v1756
  %v1815 = vsub.f32 %v1687, %v1759
  %v1816 = vsub.f32 %v1688, %v1762
  %v1817 = vsub.f32 %v1689, %v1765
  %v1818 = vsub.f32 %v1690, %v1768
  %v1819 = vsub.f32 %v1691, %v1771
  %v1820 = vsub.f32 %v1692, %v1774
  %v1821 = vsub.f32 %v1693, %v1777
  %v1822 = vsub.f32 %v1694, %v1780
  %v1823 = vsub.f32 %v1695, %v1783
  %v1824 = vsub.f32 %v1696, %v1786
  %v1825 = vsub.f32 %v1697, %v1789
  %v1826 = vsub.f32 %v1698, %v1792
  %v1827 = vsub.f32 %v1699, %v1795
  %v1828 = vmul.f32 %v1796, 1.442695
  %v1829 = vpow.pop %v1828
  %v1830 = vmul.f32 %v1797, 1.442695
  %v1831 = vpow.pop %v1830
  %v1832 = vmul.f32 %v1798, 1.442695
  %v1833 = vpow.pop %v1832
  %v1834 = vmul.f32 %v1799, 1.442695
  %v1835 = vpow.pop %v1834
  %v1836 = vmul.f32 %v1800, 1.442695
  %v1837 = vpow.pop %v1836
  %v1838 = vmul.f32 %v1801, 1.442695
  %v1839 = vpow.pop %v1838
  %v1840 = vmul.f32 %v1802, 1.442695
  %v1841 = vpow.pop %v1840
  %v1842 = vmul.f32 %v1803, 1.442695
  %v1843 = vpow.pop %v1842
  %v1844 = vmul.f32 %v1804, 1.442695
  %v1845 = vpow.pop %v1844
  %v1846 = vmul.f32 %v1805, 1.442695
  %v1847 = vpow.pop %v1846
  %v1848 = vmul.f32 %v1806, 1.442695
  %v1849 = vpow.pop %v1848
  %v1850 = vmul.f32 %v1807, 1.442695
  %v1851 = vpow.pop %v1850
  %v1852 = vmul.f32 %v1808, 1.442695
  %v1853 = vpow.pop %v1852
  %v1854 = vmul.f32 %v1809, 1.442695
  %v1855 = vpow.pop %v1854
  %v1856 = vmul.f32 %v1810, 1.442695
  %v1857 = vpow.pop %v1856
  %v1858 = vmul.f32 %v1811, 1.442695
  %v1859 = vpow.pop %v1858
  %v1860 = vmul.f32 %v1812, 1.442695
  %v1861 = vpow.pop %v1860
  %v1862 = vmul.f32 %v1813, 1.442695
  %v1863 = vpow.pop %v1862
  %v1864 = vmul.f32 %v1814, 1.442695
  %v1865 = vpow.pop %v1864
  %v1866 = vmul.f32 %v1815, 1.442695
  %v1867 = vpow.pop %v1866
  %v1868 = vmul.f32 %v1816, 1.442695
  %v1869 = vpow.pop %v1868
  %v1870 = vmul.f32 %v1817, 1.442695
  %v1871 = vpow.pop %v1870
  %v1872 = vmul.f32 %v1818, 1.442695
  %v1873 = vpow.pop %v1872
  %v1874 = vmul.f32 %v1819, 1.442695
  %v1875 = vpow.pop %v1874
  %v1876 = vmul.f32 %v1820, 1.442695
  %v1877 = vpow.pop %v1876
  %v1878 = vmul.f32 %v1821, 1.442695
  %v1879 = vpow.pop %v1878
  %v1880 = vmul.f32 %v1822, 1.442695
  %v1881 = vpow.pop %v1880
  %v1882 = vmul.f32 %v1823, 1.442695
  %v1883 = vpow.pop %v1882
  %v1884 = vmul.f32 %v1824, 1.442695
  %v1885 = vpow.pop %v1884
  %v1886 = vmul.f32 %v1825, 1.442695
  %v1887 = vpow.pop %v1886
  %v1888 = vmul.f32 %v1826, 1.442695
  %v1889 = vpow.pop %v1888
  %v1890 = vmul.f32 %v1827, 1.442695
  %v1891 = vpow.pop %v1890
  %v1892 = vsel %vm781, %v1829, 0.0
  %1893 = vadd.xlane.f32.xlu0 %v1892
  %v1894 = vpop.xlane.xlu0 %1893
  %v1895 = vsel %vm781, %v1831, 0.0
  %1896 = vadd.xlane.f32.xlu0 %v1895
  %v1897 = vpop.xlane.xlu0 %1896
  %v1898 = vsel %vm781, %v1833, 0.0
  %1899 = vadd.xlane.f32.xlu0 %v1898
  %v1900 = vpop.xlane.xlu0 %1899
  %v1901 = vsel %vm781, %v1835, 0.0
  %1902 = vadd.xlane.f32.xlu0 %v1901
  %v1903 = vpop.xlane.xlu0 %1902
  %v1904 = vsel %vm781, %v1837, 0.0
  %1905 = vadd.xlane.f32.xlu0 %v1904
  %v1906 = vpop.xlane.xlu0 %1905
  %v1907 = vsel %vm781, %v1839, 0.0
  %1908 = vadd.xlane.f32.xlu0 %v1907
  %v1909 = vpop.xlane.xlu0 %1908
  %v1910 = vsel %vm781, %v1841, 0.0
  %1911 = vadd.xlane.f32.xlu0 %v1910
  %v1912 = vpop.xlane.xlu0 %1911
  %v1913 = vsel %vm781, %v1843, 0.0
  %1914 = vadd.xlane.f32.xlu0 %v1913
  %v1915 = vpop.xlane.xlu0 %1914
  %v1916 = vsel %vm781, %v1845, 0.0
  %1917 = vadd.xlane.f32.xlu0 %v1916
  %v1918 = vpop.xlane.xlu0 %1917
  %v1919 = vsel %vm781, %v1847, 0.0
  %1920 = vadd.xlane.f32.xlu0 %v1919
  %v1921 = vpop.xlane.xlu0 %1920
  %v1922 = vsel %vm781, %v1849, 0.0
  %1923 = vadd.xlane.f32.xlu0 %v1922
  %v1924 = vpop.xlane.xlu0 %1923
  %v1925 = vsel %vm781, %v1851, 0.0
  %1926 = vadd.xlane.f32.xlu0 %v1925
  %v1927 = vpop.xlane.xlu0 %1926
  %v1928 = vsel %vm781, %v1853, 0.0
  %1929 = vadd.xlane.f32.xlu0 %v1928
  %v1930 = vpop.xlane.xlu0 %1929
  %v1931 = vsel %vm781, %v1855, 0.0
  %1932 = vadd.xlane.f32.xlu0 %v1931
  %v1933 = vpop.xlane.xlu0 %1932
  %v1934 = vsel %vm781, %v1857, 0.0
  %1935 = vadd.xlane.f32.xlu0 %v1934
  %v1936 = vpop.xlane.xlu0 %1935
  %v1937 = vsel %vm781, %v1859, 0.0
  %1938 = vadd.xlane.f32.xlu0 %v1937
  %v1939 = vpop.xlane.xlu0 %1938
  %v1940 = vsel %vm781, %v1861, 0.0
  %1941 = vadd.xlane.f32.xlu0 %v1940
  %v1942 = vpop.xlane.xlu0 %1941
  %v1943 = vsel %vm781, %v1863, 0.0
  %1944 = vadd.xlane.f32.xlu0 %v1943
  %v1945 = vpop.xlane.xlu0 %1944
  %v1946 = vsel %vm781, %v1865, 0.0
  %1947 = vadd.xlane.f32.xlu0 %v1946
  %v1948 = vpop.xlane.xlu0 %1947
  %v1949 = vsel %vm781, %v1867, 0.0
  %1950 = vadd.xlane.f32.xlu0 %v1949
  %v1951 = vpop.xlane.xlu0 %1950
  %v1952 = vsel %vm781, %v1869, 0.0
  %1953 = vadd.xlane.f32.xlu0 %v1952
  %v1954 = vpop.xlane.xlu0 %1953
  %v1955 = vsel %vm781, %v1871, 0.0
  %1956 = vadd.xlane.f32.xlu0 %v1955
  %v1957 = vpop.xlane.xlu0 %1956
  %v1958 = vsel %vm781, %v1873, 0.0
  %1959 = vadd.xlane.f32.xlu0 %v1958
  %v1960 = vpop.xlane.xlu0 %1959
  %v1961 = vsel %vm781, %v1875, 0.0
  %1962 = vadd.xlane.f32.xlu0 %v1961
  %v1963 = vpop.xlane.xlu0 %1962
  %v1964 = vsel %vm781, %v1877, 0.0
  %1965 = vadd.xlane.f32.xlu0 %v1964
  %v1966 = vpop.xlane.xlu0 %1965
  %v1967 = vsel %vm781, %v1879, 0.0
  %1968 = vadd.xlane.f32.xlu0 %v1967
  %v1969 = vpop.xlane.xlu0 %1968
  %v1970 = vsel %vm781, %v1881, 0.0
  %1971 = vadd.xlane.f32.xlu0 %v1970
  %v1972 = vpop.xlane.xlu0 %1971
  %v1973 = vsel %vm781, %v1883, 0.0
  %1974 = vadd.xlane.f32.xlu0 %v1973
  %v1975 = vpop.xlane.xlu0 %1974
  %v1976 = vsel %vm781, %v1885, 0.0
  %1977 = vadd.xlane.f32.xlu0 %v1976
  %v1978 = vpop.xlane.xlu0 %1977
  %v1979 = vsel %vm781, %v1887, 0.0
  %1980 = vadd.xlane.f32.xlu0 %v1979
  %v1981 = vpop.xlane.xlu0 %1980
  %v1982 = vsel %vm781, %v1889, 0.0
  %1983 = vadd.xlane.f32.xlu0 %v1982
  %v1984 = vpop.xlane.xlu0 %1983
  %v1985 = vsel %vm781, %v1891, 0.0
  %1986 = vadd.xlane.f32.xlu0 %v1985
  %v1987 = vpop.xlane.xlu0 %1986
  %v1988 = vrcp.pop %v1894
  %v1989 = vrcp.pop %v1897
  %v1990 = vrcp.pop %v1900
  %v1991 = vrcp.pop %v1903
  %v1992 = vrcp.pop %v1906
  %v1993 = vrcp.pop %v1909
  %v1994 = vrcp.pop %v1912
  %v1995 = vrcp.pop %v1915
  %v1996 = vrcp.pop %v1918
  %v1997 = vrcp.pop %v1921
  %v1998 = vrcp.pop %v1924
  %v1999 = vrcp.pop %v1927
  %v2000 = vrcp.pop %v1930
  %v2001 = vrcp.pop %v1933
  %v2002 = vrcp.pop %v1936
  %v2003 = vrcp.pop %v1939
  %v2004 = vrcp.pop %v1942
  %v2005 = vrcp.pop %v1945
  %v2006 = vrcp.pop %v1948
  %v2007 = vrcp.pop %v1951
  %v2008 = vrcp.pop %v1954
  %v2009 = vrcp.pop %v1957
  %v2010 = vrcp.pop %v1960
  %v2011 = vrcp.pop %v1963
  %v2012 = vrcp.pop %v1966
  %v2013 = vrcp.pop %v1969
  %v2014 = vrcp.pop %v1972
  %v2015 = vrcp.pop %v1975
  %v2016 = vrcp.pop %v1978
  %v2017 = vrcp.pop %v1981
  %v2018 = vrcp.pop %v1984
  %v2019 = vrcp.pop %v1987
  %v2020 = vmul.f32 %v1829, %v1988
  %v2021 = vmul.f32 %v1831, %v1989
  %v2022 = vmul.f32 %v1833, %v1990
  %v2023 = vmul.f32 %v1835, %v1991
  %v2024 = vmul.f32 %v1837, %v1992
  %v2025 = vmul.f32 %v1839, %v1993
  %v2026 = vmul.f32 %v1841, %v1994
  %v2027 = vmul.f32 %v1843, %v1995
  %v2028 = vmul.f32 %v1845, %v1996
  %v2029 = vmul.f32 %v1847, %v1997
  %v2030 = vmul.f32 %v1849, %v1998
  %v2031 = vmul.f32 %v1851, %v1999
  %v2032 = vmul.f32 %v1853, %v2000
  %v2033 = vmul.f32 %v1855, %v2001
  %v2034 = vmul.f32 %v1857, %v2002
  %v2035 = vmul.f32 %v1859, %v2003
  %v2036 = vmul.f32 %v1861, %v2004
  %v2037 = vmul.f32 %v1863, %v2005
  %v2038 = vmul.f32 %v1865, %v2006
  %v2039 = vmul.f32 %v1867, %v2007
  %v2040 = vmul.f32 %v1869, %v2008
  %v2041 = vmul.f32 %v1871, %v2009
  %v2042 = vmul.f32 %v1873, %v2010
  %v2043 = vmul.f32 %v1875, %v2011
  %v2044 = vmul.f32 %v1877, %v2012
  %v2045 = vmul.f32 %v1879, %v2013
  %v2046 = vmul.f32 %v1881, %v2014
  %v2047 = vmul.f32 %v1883, %v2015
  %v2048 = vmul.f32 %v1885, %v2016
  %v2049 = vmul.f32 %v1887, %v2017
  %v2050 = vmul.f32 %v1889, %v2018
  %v2051 = vmul.f32 %v1891, %v2019
  %v2052 = vpack.c.bf16 %v2021, %v2020
  %v2053 = vpack.c.bf16 %v2023, %v2022
  %v2054 = vpack.c.bf16 %v2025, %v2024
  %v2055 = vpack.c.bf16 %v2027, %v2026
  %v2056 = vpack.c.bf16 %v2029, %v2028
  %v2057 = vpack.c.bf16 %v2031, %v2030
  %v2058 = vpack.c.bf16 %v2033, %v2032
  %v2059 = vpack.c.bf16 %v2035, %v2034
  %v2060 = vpack.c.bf16 %v2037, %v2036
  %v2061 = vpack.c.bf16 %v2039, %v2038
  %v2062 = vpack.c.bf16 %v2041, %v2040
  %v2063 = vpack.c.bf16 %v2043, %v2042
  %v2064 = vpack.c.bf16 %v2045, %v2044
  %v2065 = vpack.c.bf16 %v2047, %v2046
  %v2066 = vpack.c.bf16 %v2049, %v2048
  %v2067 = vpack.c.bf16 %v2051, %v2050
  %v2069 = vsel %vm781, %v2052, 0
  %v2072 = vsel %vm781, %v2053, 0
  %v2075 = vsel %vm781, %v2054, 0
  %v2078 = vsel %vm781, %v2055, 0
  %v2081 = vsel %vm781, %v2056, 0
  %v2084 = vsel %vm781, %v2057, 0
  %v2087 = vsel %vm781, %v2058, 0
  %v2090 = vsel %vm781, %v2059, 0
  %v2093 = vsel %vm781, %v2060, 0
  %v2096 = vsel %vm781, %v2061, 0
  %v2099 = vsel %vm781, %v2062, 0
  %v2102 = vsel %vm781, %v2063, 0
  %v2105 = vsel %vm781, %v2064, 0
  %v2108 = vsel %vm781, %v2065, 0
  %v2111 = vsel %vm781, %v2066, 0
  %v2114 = vsel %vm781, %v2067, 0
  %2116 = vmatprep.subr.bf16.mxu0 0
  %2117 = vmatpush1.bf16.msra.mxu0 0
  %2118 = vmatprep.subr.bf16.mxu0 0
  %2119 = vmatpush1.bf16.msra.mxu0 0
  %2120 = vmatprep.subr.bf16.mxu0 0
  %2121 = vmatpush1.bf16.msra.mxu0 0
  %2122 = vmatprep.subr.bf16.mxu0 0
  %2123 = vmatpush1.bf16.msra.mxu0 0
  %2124 = vmatprep.subr.bf16.mxu0 0
  %2125 = vmatpush1.bf16.msra.mxu0 %v461
  %2126 = vmatprep.subr.bf16.mxu0 0
  %2127 = vmatpush1.bf16.msra.mxu0 %v460
  %2128 = vmatprep.subr.bf16.mxu0 0
  %2129 = vmatpush1.bf16.msra.mxu0 %v459
  %2130 = vmatprep.subr.bf16.mxu0 0
  %2131 = vmatpush1.bf16.msra.mxu0 %v458
  %2132 = vmatprep.subr.bf16.mxu0 0
  %2133 = vmatpush2.bf16.msra.mxu0 0
  %2134 = vmatprep.subr.bf16.mxu0 0
  %2135 = vmatpush2.bf16.msra.mxu0 0
  %2136 = vmatprep.subr.bf16.mxu0 0
  %2137 = vmatpush2.bf16.msra.mxu0 0
  %2138 = vmatprep.subr.bf16.mxu0 0
  %2139 = vmatpush2.bf16.msra.mxu0 0
  %2140 = vmatprep.subr.bf16.mxu0 0
  %2141 = vmatpush2.bf16.msra.mxu0 0
  %2142 = vmatprep.subr.bf16.mxu0 0
  %2143 = vmatpush2.bf16.msra.mxu0 0
  %2144 = vmatprep.subr.bf16.mxu0 0
  %2145 = vmatpush2.bf16.msra.mxu0 0
  %2146 = vmatprep.subr.bf16.mxu0 0
  %2147 = vmatpush2.bf16.msra.mxu0 0
  %2148 = vmatprep.mubr.bf16.mxu0 0
  %2149 = vmatmul.mubr.bf16.gmra.mxu0 %v2069
  %v2150 = vpop.f32.mrf.mxu0
  %v2151 = vadd.f32 0.0, %v2150
  %v2152 = vpop.f32.mrf.mxu0
  %v2153 = vpop.f32.mrf.mxu0
  %v2154 = vadd.f32 0.0, %v2153
  %v2155 = vpop.f32.mrf.mxu0
  %2156 = vmatprep.mubr.bf16.mxu0 0
  %2157 = vmatmul.mubr.bf16.gmra.mxu0 %v2072
  %v2158 = vpop.f32.mrf.mxu0
  %v2159 = vadd.f32 0.0, %v2158
  %v2160 = vpop.f32.mrf.mxu0
  %v2161 = vpop.f32.mrf.mxu0
  %v2162 = vadd.f32 0.0, %v2161
  %v2163 = vpop.f32.mrf.mxu0
  %2164 = vmatprep.mubr.bf16.mxu0 0
  %2165 = vmatmul.mubr.bf16.gmra.mxu0 %v2075
  %v2166 = vpop.f32.mrf.mxu0
  %v2167 = vadd.f32 0.0, %v2166
  %v2168 = vpop.f32.mrf.mxu0
  %v2169 = vpop.f32.mrf.mxu0
  %v2170 = vadd.f32 0.0, %v2169
  %v2171 = vpop.f32.mrf.mxu0
  %2172 = vmatprep.mubr.bf16.mxu0 0
  %2173 = vmatmul.mubr.bf16.gmra.mxu0 %v2078
  %v2174 = vpop.f32.mrf.mxu0
  %v2175 = vadd.f32 0.0, %v2174
  %v2176 = vpop.f32.mrf.mxu0
  %v2177 = vpop.f32.mrf.mxu0
  %v2178 = vadd.f32 0.0, %v2177
  %v2179 = vpop.f32.mrf.mxu0
  %2180 = vmatprep.mubr.bf16.mxu0 0
  %2181 = vmatmul.mubr.bf16.gmra.mxu0 %v2081
  %v2182 = vpop.f32.mrf.mxu0
  %v2183 = vadd.f32 0.0, %v2182
  %v2184 = vpop.f32.mrf.mxu0
  %v2185 = vpop.f32.mrf.mxu0
  %v2186 = vadd.f32 0.0, %v2185
  %v2187 = vpop.f32.mrf.mxu0
  %2188 = vmatprep.mubr.bf16.mxu0 0
  %2189 = vmatmul.mubr.bf16.gmra.mxu0 %v2084
  %v2190 = vpop.f32.mrf.mxu0
  %v2191 = vadd.f32 0.0, %v2190
  %v2192 = vpop.f32.mrf.mxu0
  %v2193 = vpop.f32.mrf.mxu0
  %v2194 = vadd.f32 0.0, %v2193
  %v2195 = vpop.f32.mrf.mxu0
  %2196 = vmatprep.mubr.bf16.mxu0 0
  %2197 = vmatmul.mubr.bf16.gmra.mxu0 %v2087
  %v2198 = vpop.f32.mrf.mxu0
  %v2199 = vadd.f32 0.0, %v2198
  %v2200 = vpop.f32.mrf.mxu0
  %v2201 = vpop.f32.mrf.mxu0
  %v2202 = vadd.f32 0.0, %v2201
  %v2203 = vpop.f32.mrf.mxu0
  %2204 = vmatprep.mubr.bf16.mxu0 0
  %2205 = vmatmul.mubr.bf16.gmra.mxu0 %v2090
  %v2206 = vpop.f32.mrf.mxu0
  %v2207 = vadd.f32 0.0, %v2206
  %v2208 = vpop.f32.mrf.mxu0
  %v2209 = vpop.f32.mrf.mxu0
  %v2210 = vadd.f32 0.0, %v2209
  %v2211 = vpop.f32.mrf.mxu0
  %2212 = vmatprep.mubr.bf16.mxu0 0
  %2213 = vmatmul.mubr.bf16.gmra.mxu0 %v2093
  %v2214 = vpop.f32.mrf.mxu0
  %v2215 = vadd.f32 0.0, %v2214
  %v2216 = vpop.f32.mrf.mxu0
  %v2217 = vpop.f32.mrf.mxu0
  %v2218 = vadd.f32 0.0, %v2217
  %v2219 = vpop.f32.mrf.mxu0
  %2220 = vmatprep.mubr.bf16.mxu0 0
  %2221 = vmatmul.mubr.bf16.gmra.mxu0 %v2096
  %v2222 = vpop.f32.mrf.mxu0
  %v2223 = vadd.f32 0.0, %v2222
  %v2224 = vpop.f32.mrf.mxu0
  %v2225 = vpop.f32.mrf.mxu0
  %v2226 = vadd.f32 0.0, %v2225
  %v2227 = vpop.f32.mrf.mxu0
  %2228 = vmatprep.mubr.bf16.mxu0 0
  %2229 = vmatmul.mubr.bf16.gmra.mxu0 %v2099
  %v2230 = vpop.f32.mrf.mxu0
  %v2231 = vadd.f32 0.0, %v2230
  %v2232 = vpop.f32.mrf.mxu0
  %v2233 = vpop.f32.mrf.mxu0
  %v2234 = vadd.f32 0.0, %v2233
  %v2235 = vpop.f32.mrf.mxu0
  %2236 = vmatprep.mubr.bf16.mxu0 0
  %2237 = vmatmul.mubr.bf16.gmra.mxu0 %v2102
  %v2238 = vpop.f32.mrf.mxu0
  %v2239 = vadd.f32 0.0, %v2238
  %v2240 = vpop.f32.mrf.mxu0
  %v2241 = vpop.f32.mrf.mxu0
  %v2242 = vadd.f32 0.0, %v2241
  %v2243 = vpop.f32.mrf.mxu0
  %2244 = vmatprep.mubr.bf16.mxu0 0
  %2245 = vmatmul.mubr.bf16.gmra.mxu0 %v2105
  %v2246 = vpop.f32.mrf.mxu0
  %v2247 = vadd.f32 0.0, %v2246
  %v2248 = vpop.f32.mrf.mxu0
  %v2249 = vpop.f32.mrf.mxu0
  %v2250 = vadd.f32 0.0, %v2249
  %v2251 = vpop.f32.mrf.mxu0
  %2252 = vmatprep.mubr.bf16.mxu0 0
  %2253 = vmatmul.mubr.bf16.gmra.mxu0 %v2108
  %v2254 = vpop.f32.mrf.mxu0
  %v2255 = vadd.f32 0.0, %v2254
  %v2256 = vpop.f32.mrf.mxu0
  %v2257 = vpop.f32.mrf.mxu0
  %v2258 = vadd.f32 0.0, %v2257
  %v2259 = vpop.f32.mrf.mxu0
  %2260 = vmatprep.mubr.bf16.mxu0 0
  %2261 = vmatmul.mubr.bf16.gmra.mxu0 %v2111
  %v2262 = vpop.f32.mrf.mxu0
  %v2263 = vadd.f32 0.0, %v2262
  %v2264 = vpop.f32.mrf.mxu0
  %v2265 = vpop.f32.mrf.mxu0
  %v2266 = vadd.f32 0.0, %v2265
  %v2267 = vpop.f32.mrf.mxu0
  %2268 = vmatprep.mubr.bf16.mxu0 0
  %2269 = vmatmul.mubr.bf16.gmra.mxu0 %v2114
  %v2270 = vpop.f32.mrf.mxu0
  %v2271 = vadd.f32 0.0, %v2270
  %v2272 = vpop.f32.mrf.mxu0
  %v2273 = vpop.f32.mrf.mxu0
  %v2274 = vadd.f32 0.0, %v2273
  %v2275 = vpop.f32.mrf.mxu0
  %2276 = vdwg.mxu0
  %v2277 = vsel %vm477, %v2151, 0.0
  %v2278 = vsel %vm477, %v2154, 0.0
  %v2279 = vsel %vm477, %v2159, 0.0
  %v2280 = vsel %vm477, %v2162, 0.0
  %v2281 = vsel %vm477, %v2167, 0.0
  %v2282 = vsel %vm477, %v2170, 0.0
  %v2283 = vsel %vm477, %v2175, 0.0
  %v2284 = vsel %vm477, %v2178, 0.0
  %v2285 = vadd.f32 %v2277, 0.0
  %v2286 = vadd.f32 %v2278, 0.0
  %v2287 = vadd.f32 %v2279, 0.0
  %v2288 = vadd.f32 %v2280, 0.0
  %v2289 = vadd.f32 %v2281, 0.0
  %v2290 = vadd.f32 %v2282, 0.0
  %v2291 = vadd.f32 %v2283, 0.0
  %v2292 = vadd.f32 %v2284, 0.0
  %v2293 = vsel %vm490, %v2183, 0.0
  %v2294 = vsel %vm490, %v2186, 0.0
  %v2295 = vsel %vm490, %v2191, 0.0
  %v2296 = vsel %vm490, %v2194, 0.0
  %v2297 = vsel %vm490, %v2199, 0.0
  %v2298 = vsel %vm490, %v2202, 0.0
  %v2299 = vsel %vm490, %v2207, 0.0
  %v2300 = vsel %vm490, %v2210, 0.0
  %v2301 = vadd.f32 %v2285, %v2293
  %v2302 = vadd.f32 %v2286, %v2294
  %v2303 = vadd.f32 %v2287, %v2295
  %v2304 = vadd.f32 %v2288, %v2296
  %v2305 = vadd.f32 %v2289, %v2297
  %v2306 = vadd.f32 %v2290, %v2298
  %v2307 = vadd.f32 %v2291, %v2299
  %v2308 = vadd.f32 %v2292, %v2300
  %v2309 = vsel %vm503, %v2215, 0.0
  %v2310 = vsel %vm503, %v2218, 0.0
  %v2311 = vsel %vm503, %v2223, 0.0
  %v2312 = vsel %vm503, %v2226, 0.0
  %v2313 = vsel %vm503, %v2231, 0.0
  %v2314 = vsel %vm503, %v2234, 0.0
  %v2315 = vsel %vm503, %v2239, 0.0
  %v2316 = vsel %vm503, %v2242, 0.0
  %v2317 = vadd.f32 %v2301, %v2309
  %v2318 = vadd.f32 %v2302, %v2310
  %v2319 = vadd.f32 %v2303, %v2311
  %v2320 = vadd.f32 %v2304, %v2312
  %v2321 = vadd.f32 %v2305, %v2313
  %v2322 = vadd.f32 %v2306, %v2314
  %v2323 = vadd.f32 %v2307, %v2315
  %v2324 = vadd.f32 %v2308, %v2316
  %v2325 = vsel %vm516, %v2247, 0.0
  %v2326 = vsel %vm516, %v2250, 0.0
  %v2327 = vsel %vm516, %v2255, 0.0
  %v2328 = vsel %vm516, %v2258, 0.0
  %v2329 = vsel %vm516, %v2263, 0.0
  %v2330 = vsel %vm516, %v2266, 0.0
  %v2331 = vsel %vm516, %v2271, 0.0
  %v2332 = vsel %vm516, %v2274, 0.0
  %v2333 = vadd.f32 %v2317, %v2325
  %v2334 = vadd.f32 %v2318, %v2326
  %v2335 = vadd.f32 %v2319, %v2327
  %v2336 = vadd.f32 %v2320, %v2328
  %v2337 = vadd.f32 %v2321, %v2329
  %v2338 = vadd.f32 %v2322, %v2330
  %v2339 = vadd.f32 %v2323, %v2331
  %v2340 = vadd.f32 %v2324, %v2332
  %2341 = vst.msk [vmem:[#allocation2 + $0x40] sm:$0xff] %vm80, %v2333
  %2342 = vst.msk [vmem:[#allocation2 + $0x48] sm:$0xff] %vm80, %v2334
  %2343 = vst.msk [vmem:[#allocation2 + $0x50] sm:$0xff] %vm80, %v2335
  %2344 = vst.msk [vmem:[#allocation2 + $0x58] sm:$0xff] %vm80, %v2336
  %2345 = vst.msk [vmem:[#allocation2 + $0x60] sm:$0xff] %vm80, %v2337
  %2346 = vst.msk [vmem:[#allocation2 + $0x68] sm:$0xff] %vm80, %v2338
  %2347 = vst.msk [vmem:[#allocation2 + $0x70] sm:$0xff] %vm80, %v2339
  %2348 = vst.msk [vmem:[#allocation2 + $0x78] sm:$0xff] %vm80, %v2340
  %v2349 = vld [vmem:[#allocation2] sm:$0xff]
  %v2350 = vld [vmem:[#allocation2 + $0x8] sm:$0xff]
  %v2351 = vld [vmem:[#allocation2 + $0x10] sm:$0xff]
  %v2352 = vld [vmem:[#allocation2 + $0x18] sm:$0xff]
  %v2353 = vld [vmem:[#allocation2 + $0x20] sm:$0xff]
  %v2354 = vld [vmem:[#allocation2 + $0x28] sm:$0xff]
  %v2355 = vld [vmem:[#allocation2 + $0x30] sm:$0xff]
  %v2356 = vld [vmem:[#allocation2 + $0x38] sm:$0xff]
  %v2357 = vld [vmem:[#allocation2 + $0x40] sm:$0xff]
  %v2358 = vld [vmem:[#allocation2 + $0x48] sm:$0xff]
  %v2359 = vld [vmem:[#allocation2 + $0x50] sm:$0xff]
  %v2360 = vld [vmem:[#allocation2 + $0x58] sm:$0xff]
  %v2361 = vld [vmem:[#allocation2 + $0x60] sm:$0xff]
  %v2362 = vld [vmem:[#allocation2 + $0x68] sm:$0xff]
  %v2363 = vld [vmem:[#allocation2 + $0x70] sm:$0xff]
  %v2364 = vld [vmem:[#allocation2 + $0x78] sm:$0xff]
  %v2365 = vpack.c.bf16 %v2350, %v2349
  %v2366 = vpack.c.bf16 %v2352, %v2351
  %v2367 = vpack.c.bf16 %v2354, %v2353
  %v2368 = vpack.c.bf16 %v2356, %v2355
  %v2369 = vpack.c.bf16 %v2358, %v2357
  %v2370 = vpack.c.bf16 %v2360, %v2359
  %v2371 = vpack.c.bf16 %v2362, %v2361
  %v2372 = vpack.c.bf16 %v2364, %v2363
  %v2373 = vld [vmem:[%s4] sm:$0xf]
  %v2374 = vld [vmem:[%s4 + $0x4] sm:$0xf]
  %v2375 = vld [vmem:[%s4 + $0x8] sm:$0xf]
  %v2376 = vld [vmem:[%s4 + $0xc] sm:$0xf]
  %v2377 = vld [vmem:[%s8 + $0x3] sm:$0x1]
  %v2378 = vlaneseq
  %v2379 = vshrl.u32 %v2378, 7
  %v2380 = vsub.s32 0, %v2379
  %v2381 = vrot.slane %v2377, %v2380
  %v2386 = vunpack.c.l.b16 %v2373
  %v2387 = vunpack.c.l.b16 %v2374
  %v2388 = vunpack.c.l.b16 %v2375
  %v2389 = vunpack.c.l.b16 %v2376
  %v2390 = vpack.c.b16 %v2387, %v2386
  %v2391 = vpack.c.b16 %v2389, %v2388
  %v2395 = vsel %vm80, %v2365, 0
  %v2398 = vsel %vm80, %v2366, 0
  %v2401 = vsel %vm80, %v2367, 0
  %v2404 = vsel %vm80, %v2368, 0
  %v2407 = vsel %vm80, %v2369, 0
  %v2410 = vsel %vm80, %v2370, 0
  %v2413 = vsel %vm80, %v2371, 0
  %v2416 = vsel %vm80, %v2372, 0
  %2418 = vmatprep.subr.bf16.mxu0 0
  %2419 = vmatpush1.bf16.msra.mxu0 0
  %2420 = vmatprep.subr.bf16.mxu0 0
  %2421 = vmatpush1.bf16.msra.mxu0 0
  %2422 = vmatprep.subr.bf16.mxu0 0
  %2423 = vmatpush1.bf16.msra.mxu0 0
  %2424 = vmatprep.subr.bf16.mxu0 0
  %2425 = vmatpush1.bf16.msra.mxu0 0
  %2426 = vmatprep.subr.bf16.mxu0 0
  %2427 = vmatpush1.bf16.msra.mxu0 0
  %2428 = vmatprep.subr.bf16.mxu0 0
  %2429 = vmatpush1.bf16.msra.mxu0 0
  %2430 = vmatprep.subr.bf16.mxu0 0
  %2431 = vmatpush1.bf16.msra.mxu0 %v2391
  %2432 = vmatprep.subr.bf16.mxu0 0
  %2433 = vmatpush1.bf16.msra.mxu0 %v2390
  %2434 = vmatprep.subr.bf16.mxu0 0
  %2435 = vmatpush2.bf16.msra.mxu0 0
  %2436 = vmatprep.subr.bf16.mxu0 0
  %2437 = vmatpush2.bf16.msra.mxu0 0
  %2438 = vmatprep.subr.bf16.mxu0 0
  %2439 = vmatpush2.bf16.msra.mxu0 0
  %2440 = vmatprep.subr.bf16.mxu0 0
  %2441 = vmatpush2.bf16.msra.mxu0 0
  %2442 = vmatprep.subr.bf16.mxu0 0
  %2443 = vmatpush2.bf16.msra.mxu0 0
  %2444 = vmatprep.subr.bf16.mxu0 0
  %2445 = vmatpush2.bf16.msra.mxu0 0
  %2446 = vmatprep.subr.bf16.mxu0 0
  %2447 = vmatpush2.bf16.msra.mxu0 0
  %2448 = vmatprep.subr.bf16.mxu0 0
  %2449 = vmatpush2.bf16.msra.mxu0 0
  %2450 = vmatprep.mubr.bf16.mxu0 0
  %2451 = vmatmul.mubr.bf16.gmra.mxu0 %v2395
  %v2452 = vpop.f32.mrf.mxu0
  %v2453 = vadd.f32 %v2381, %v2452
  %v2454 = vpop.f32.mrf.mxu0
  %v2455 = vpop.f32.mrf.mxu0
  %v2456 = vadd.f32 %v2381, %v2455
  %v2457 = vpop.f32.mrf.mxu0
  %2458 = vmatprep.mubr.bf16.mxu0 0
  %2459 = vmatmul.mubr.bf16.gmra.mxu0 %v2398
  %v2460 = vpop.f32.mrf.mxu0
  %v2461 = vadd.f32 %v2381, %v2460
  %v2462 = vpop.f32.mrf.mxu0
  %v2463 = vpop.f32.mrf.mxu0
  %v2464 = vadd.f32 %v2381, %v2463
  %v2465 = vpop.f32.mrf.mxu0
  %2466 = vmatprep.mubr.bf16.mxu0 0
  %2467 = vmatmul.mubr.bf16.gmra.mxu0 %v2401
  %v2468 = vpop.f32.mrf.mxu0
  %v2469 = vadd.f32 %v2381, %v2468
  %v2470 = vpop.f32.mrf.mxu0
  %v2471 = vpop.f32.mrf.mxu0
  %v2472 = vadd.f32 %v2381, %v2471
  %v2473 = vpop.f32.mrf.mxu0
  %2474 = vmatprep.mubr.bf16.mxu0 0
  %2475 = vmatmul.mubr.bf16.gmra.mxu0 %v2404
  %v2476 = vpop.f32.mrf.mxu0
  %v2477 = vadd.f32 %v2381, %v2476
  %v2478 = vpop.f32.mrf.mxu0
  %v2479 = vpop.f32.mrf.mxu0
  %v2480 = vadd.f32 %v2381, %v2479
  %v2481 = vpop.f32.mrf.mxu0
  %2482 = vmatprep.mubr.bf16.mxu0 0
  %2483 = vmatmul.mubr.bf16.gmra.mxu0 %v2407
  %v2484 = vpop.f32.mrf.mxu0
  %v2485 = vadd.f32 %v2381, %v2484
  %v2486 = vpop.f32.mrf.mxu0
  %v2487 = vpop.f32.mrf.mxu0
  %v2488 = vadd.f32 %v2381, %v2487
  %v2489 = vpop.f32.mrf.mxu0
  %2490 = vmatprep.mubr.bf16.mxu0 0
  %2491 = vmatmul.mubr.bf16.gmra.mxu0 %v2410
  %v2492 = vpop.f32.mrf.mxu0
  %v2493 = vadd.f32 %v2381, %v2492
  %v2494 = vpop.f32.mrf.mxu0
  %v2495 = vpop.f32.mrf.mxu0
  %v2496 = vadd.f32 %v2381, %v2495
  %v2497 = vpop.f32.mrf.mxu0
  %2498 = vmatprep.mubr.bf16.mxu0 0
  %2499 = vmatmul.mubr.bf16.gmra.mxu0 %v2413
  %v2500 = vpop.f32.mrf.mxu0
  %v2501 = vadd.f32 %v2381, %v2500
  %v2502 = vpop.f32.mrf.mxu0
  %v2503 = vpop.f32.mrf.mxu0
  %v2504 = vadd.f32 %v2381, %v2503
  %v2505 = vpop.f32.mrf.mxu0
  %2506 = vmatprep.mubr.bf16.mxu0 0
  %2507 = vmatmul.mubr.bf16.gmra.mxu0 %v2416
  %v2508 = vpop.f32.mrf.mxu0
  %v2509 = vadd.f32 %v2381, %v2508
  %v2510 = vpop.f32.mrf.mxu0
  %v2511 = vpop.f32.mrf.mxu0
  %v2512 = vadd.f32 %v2381, %v2511
  %v2513 = vpop.f32.mrf.mxu0
  %2514 = vdwg.mxu0
  %v2515 = vadd.f32 %v35, %v2453
  %v2516 = vadd.f32 %v36, %v2456
  %v2517 = vadd.f32 %v37, %v2461
  %v2518 = vadd.f32 %v38, %v2464
  %v2519 = vadd.f32 %v39, %v2469
  %v2520 = vadd.f32 %v40, %v2472
  %v2521 = vadd.f32 %v41, %v2477
  %v2522 = vadd.f32 %v42, %v2480
  %v2523 = vadd.f32 %v43, %v2485
  %v2524 = vadd.f32 %v44, %v2488
  %v2525 = vadd.f32 %v45, %v2493
  %v2526 = vadd.f32 %v46, %v2496
  %v2527 = vadd.f32 %v47, %v2501
  %v2528 = vadd.f32 %v48, %v2504
  %v2529 = vadd.f32 %v49, %v2509
  %v2530 = vadd.f32 %v50, %v2512
  %v2531 = vsel %vm80, %v2515, 0.0
  %2532 = vadd.xlane.f32.xlu0 %v2531
  %v2533 = vpop.xlane.xlu0 %2532
  %v2534 = vsel %vm80, %v2516, 0.0
  %2535 = vadd.xlane.f32.xlu0 %v2534
  %v2536 = vpop.xlane.xlu0 %2535
  %v2537 = vsel %vm80, %v2517, 0.0
  %2538 = vadd.xlane.f32.xlu0 %v2537
  %v2539 = vpop.xlane.xlu0 %2538
  %v2540 = vsel %vm80, %v2518, 0.0
  %2541 = vadd.xlane.f32.xlu0 %v2540
  %v2542 = vpop.xlane.xlu0 %2541
  %v2543 = vsel %vm80, %v2519, 0.0
  %2544 = vadd.xlane.f32.xlu0 %v2543
  %v2545 = vpop.xlane.xlu0 %2544
  %v2546 = vsel %vm80, %v2520, 0.0
  %2547 = vadd.xlane.f32.xlu0 %v2546
  %v2548 = vpop.xlane.xlu0 %2547
  %v2549 = vsel %vm80, %v2521, 0.0
  %2550 = vadd.xlane.f32.xlu0 %v2549
  %v2551 = vpop.xlane.xlu0 %2550
  %v2552 = vsel %vm80, %v2522, 0.0
  %2553 = vadd.xlane.f32.xlu0 %v2552
  %v2554 = vpop.xlane.xlu0 %2553
  %v2555 = vsel %vm80, %v2523, 0.0
  %2556 = vadd.xlane.f32.xlu0 %v2555
  %v2557 = vpop.xlane.xlu0 %2556
  %v2558 = vsel %vm80, %v2524, 0.0
  %2559 = vadd.xlane.f32.xlu0 %v2558
  %v2560 = vpop.xlane.xlu0 %2559
  %v2561 = vsel %vm80, %v2525, 0.0
  %2562 = vadd.xlane.f32.xlu0 %v2561
  %v2563 = vpop.xlane.xlu0 %2562
  %v2564 = vsel %vm80, %v2526, 0.0
  %2565 = vadd.xlane.f32.xlu0 %v2564
  %v2566 = vpop.xlane.xlu0 %2565
  %v2567 = vsel %vm80, %v2527, 0.0
  %2568 = vadd.xlane.f32.xlu0 %v2567
  %v2569 = vpop.xlane.xlu0 %2568
  %v2570 = vsel %vm80, %v2528, 0.0
  %2571 = vadd.xlane.f32.xlu0 %v2570
  %v2572 = vpop.xlane.xlu0 %2571
  %v2573 = vsel %vm80, %v2529, 0.0
  %2574 = vadd.xlane.f32.xlu0 %v2573
  %v2575 = vpop.xlane.xlu0 %2574
  %v2576 = vsel %vm80, %v2530, 0.0
  %2577 = vadd.xlane.f32.xlu0 %v2576
  %v2578 = vpop.xlane.xlu0 %2577
  %v2579 = vrcp.pop 32.0
  %v2580 = vmul.f32 %v2533, %v2579
  %v2581 = vmul.f32 %v2536, %v2579
  %v2582 = vmul.f32 %v2539, %v2579
  %v2583 = vmul.f32 %v2542, %v2579
  %v2584 = vmul.f32 %v2545, %v2579
  %v2585 = vmul.f32 %v2548, %v2579
  %v2586 = vmul.f32 %v2551, %v2579
  %v2587 = vmul.f32 %v2554, %v2579
  %v2588 = vmul.f32 %v2557, %v2579
  %v2589 = vmul.f32 %v2560, %v2579
  %v2590 = vmul.f32 %v2563, %v2579
  %v2591 = vmul.f32 %v2566, %v2579
  %v2592 = vmul.f32 %v2569, %v2579
  %v2593 = vmul.f32 %v2572, %v2579
  %v2594 = vmul.f32 %v2575, %v2579
  %v2595 = vmul.f32 %v2578, %v2579
  %v2596 = vsub.f32 %v2515, %v2580
  %v2597 = vsub.f32 %v2516, %v2581
  %v2598 = vsub.f32 %v2517, %v2582
  %v2599 = vsub.f32 %v2518, %v2583
  %v2600 = vsub.f32 %v2519, %v2584
  %v2601 = vsub.f32 %v2520, %v2585
  %v2602 = vsub.f32 %v2521, %v2586
  %v2603 = vsub.f32 %v2522, %v2587
  %v2604 = vsub.f32 %v2523, %v2588
  %v2605 = vsub.f32 %v2524, %v2589
  %v2606 = vsub.f32 %v2525, %v2590
  %v2607 = vsub.f32 %v2526, %v2591
  %v2608 = vsub.f32 %v2527, %v2592
  %v2609 = vsub.f32 %v2528, %v2593
  %v2610 = vsub.f32 %v2529, %v2594
  %v2611 = vsub.f32 %v2530, %v2595
  %v2612 = vmul.f32 %v2596, %v2596
  %v2613 = vmul.f32 %v2597, %v2597
  %v2614 = vmul.f32 %v2598, %v2598
  %v2615 = vmul.f32 %v2599, %v2599
  %v2616 = vmul.f32 %v2600, %v2600
  %v2617 = vmul.f32 %v2601, %v2601
  %v2618 = vmul.f32 %v2602, %v2602
  %v2619 = vmul.f32 %v2603, %v2603
  %v2620 = vmul.f32 %v2604, %v2604
  %v2621 = vmul.f32 %v2605, %v2605
  %v2622 = vmul.f32 %v2606, %v2606
  %v2623 = vmul.f32 %v2607, %v2607
  %v2624 = vmul.f32 %v2608, %v2608
  %v2625 = vmul.f32 %v2609, %v2609
  %v2626 = vmul.f32 %v2610, %v2610
  %v2627 = vmul.f32 %v2611, %v2611
  %v2628 = vsel %vm80, %v2612, 0.0
  %2629 = vadd.xlane.f32.xlu0 %v2628
  %v2630 = vpop.xlane.xlu0 %2629
  %v2631 = vsel %vm80, %v2613, 0.0
  %2632 = vadd.xlane.f32.xlu0 %v2631
  %v2633 = vpop.xlane.xlu0 %2632
  %v2634 = vsel %vm80, %v2614, 0.0
  %2635 = vadd.xlane.f32.xlu0 %v2634
  %v2636 = vpop.xlane.xlu0 %2635
  %v2637 = vsel %vm80, %v2615, 0.0
  %2638 = vadd.xlane.f32.xlu0 %v2637
  %v2639 = vpop.xlane.xlu0 %2638
  %v2640 = vsel %vm80, %v2616, 0.0
  %2641 = vadd.xlane.f32.xlu0 %v2640
  %v2642 = vpop.xlane.xlu0 %2641
  %v2643 = vsel %vm80, %v2617, 0.0
  %2644 = vadd.xlane.f32.xlu0 %v2643
  %v2645 = vpop.xlane.xlu0 %2644
  %v2646 = vsel %vm80, %v2618, 0.0
  %2647 = vadd.xlane.f32.xlu0 %v2646
  %v2648 = vpop.xlane.xlu0 %2647
  %v2649 = vsel %vm80, %v2619, 0.0
  %2650 = vadd.xlane.f32.xlu0 %v2649
  %v2651 = vpop.xlane.xlu0 %2650
  %v2652 = vsel %vm80, %v2620, 0.0
  %2653 = vadd.xlane.f32.xlu0 %v2652
  %v2654 = vpop.xlane.xlu0 %2653
  %v2655 = vsel %vm80, %v2621, 0.0
  %2656 = vadd.xlane.f32.xlu0 %v2655
  %v2657 = vpop.xlane.xlu0 %2656
  %v2658 = vsel %vm80, %v2622, 0.0
  %2659 = vadd.xlane.f32.xlu0 %v2658
  %v2660 = vpop.xlane.xlu0 %2659
  %v2661 = vsel %vm80, %v2623, 0.0
  %2662 = vadd.xlane.f32.xlu0 %v2661
  %v2663 = vpop.xlane.xlu0 %2662
  %v2664 = vsel %vm80, %v2624, 0.0
  %2665 = vadd.xlane.f32.xlu0 %v2664
  %v2666 = vpop.xlane.xlu0 %2665
  %v2667 = vsel %vm80, %v2625, 0.0
  %2668 = vadd.xlane.f32.xlu0 %v2667
  %v2669 = vpop.xlane.xlu0 %2668
  %v2670 = vsel %vm80, %v2626, 0.0
  %2671 = vadd.xlane.f32.xlu0 %v2670
  %v2672 = vpop.xlane.xlu0 %2671
  %v2673 = vsel %vm80, %v2627, 0.0
  %2674 = vadd.xlane.f32.xlu0 %v2673
  %v2675 = vpop.xlane.xlu0 %2674
  %v2676 = vmul.f32 %v2630, %v2579
  %v2677 = vmul.f32 %v2633, %v2579
  %v2678 = vmul.f32 %v2636, %v2579
  %v2679 = vmul.f32 %v2639, %v2579
  %v2680 = vmul.f32 %v2642, %v2579
  %v2681 = vmul.f32 %v2645, %v2579
  %v2682 = vmul.f32 %v2648, %v2579
  %v2683 = vmul.f32 %v2651, %v2579
  %v2684 = vmul.f32 %v2654, %v2579
  %v2685 = vmul.f32 %v2657, %v2579
  %v2686 = vmul.f32 %v2660, %v2579
  %v2687 = vmul.f32 %v2663, %v2579
  %v2688 = vmul.f32 %v2666, %v2579
  %v2689 = vmul.f32 %v2669, %v2579
  %v2690 = vmul.f32 %v2672, %v2579
  %v2691 = vmul.f32 %v2675, %v2579
  %v2692 = vadd.f32 %v2676, 1e-05
  %v2693 = vadd.f32 %v2677, 1e-05
  %v2694 = vadd.f32 %v2678, 1e-05
  %v2695 = vadd.f32 %v2679, 1e-05
  %v2696 = vadd.f32 %v2680, 1e-05
  %v2697 = vadd.f32 %v2681, 1e-05
  %v2698 = vadd.f32 %v2682, 1e-05
  %v2699 = vadd.f32 %v2683, 1e-05
  %v2700 = vadd.f32 %v2684, 1e-05
  %v2701 = vadd.f32 %v2685, 1e-05
  %v2702 = vadd.f32 %v2686, 1e-05
  %v2703 = vadd.f32 %v2687, 1e-05
  %v2704 = vadd.f32 %v2688, 1e-05
  %v2705 = vadd.f32 %v2689, 1e-05
  %v2706 = vadd.f32 %v2690, 1e-05
  %v2707 = vadd.f32 %v2691, 1e-05
  %v2708 = vrsqrt.pop %v2692
  %v2709 = vrsqrt.pop %v2693
  %v2710 = vrsqrt.pop %v2694
  %v2711 = vrsqrt.pop %v2695
  %v2712 = vrsqrt.pop %v2696
  %v2713 = vrsqrt.pop %v2697
  %v2714 = vrsqrt.pop %v2698
  %v2715 = vrsqrt.pop %v2699
  %v2716 = vrsqrt.pop %v2700
  %v2717 = vrsqrt.pop %v2701
  %v2718 = vrsqrt.pop %v2702
  %v2719 = vrsqrt.pop %v2703
  %v2720 = vrsqrt.pop %v2704
  %v2721 = vrsqrt.pop %v2705
  %v2722 = vrsqrt.pop %v2706
  %v2723 = vrsqrt.pop %v2707
  %v2724 = vmul.f32 %v2596, %v2708
  %v2725 = vmul.f32 %v2597, %v2709
  %v2726 = vmul.f32 %v2598, %v2710
  %v2727 = vmul.f32 %v2599, %v2711
  %v2728 = vmul.f32 %v2600, %v2712
  %v2729 = vmul.f32 %v2601, %v2713
  %v2730 = vmul.f32 %v2602, %v2714
  %v2731 = vmul.f32 %v2603, %v2715
  %v2732 = vmul.f32 %v2604, %v2716
  %v2733 = vmul.f32 %v2605, %v2717
  %v2734 = vmul.f32 %v2606, %v2718
  %v2735 = vmul.f32 %v2607, %v2719
  %v2736 = vmul.f32 %v2608, %v2720
  %v2737 = vmul.f32 %v2609, %v2721
  %v2738 = vmul.f32 %v2610, %v2722
  %v2739 = vmul.f32 %v2611, %v2723
  %v2740 = vld [vmem:[%s8 + $0x4] sm:$0x1]
  %v2741 = vlaneseq
  %v2742 = vshrl.u32 %v2741, 7
  %v2743 = vsub.s32 0, %v2742
  %v2744 = vrot.slane %v2740, %v2743
  %v2745 = vmul.f32 %v2724, %v2744
  %v2746 = vmul.f32 %v2725, %v2744
  %v2747 = vmul.f32 %v2726, %v2744
  %v2748 = vmul.f32 %v2727, %v2744
  %v2749 = vmul.f32 %v2728, %v2744
  %v2750 = vmul.f32 %v2729, %v2744
  %v2751 = vmul.f32 %v2730, %v2744
  %v2752 = vmul.f32 %v2731, %v2744
  %v2753 = vmul.f32 %v2732, %v2744
  %v2754 = vmul.f32 %v2733, %v2744
  %v2755 = vmul.f32 %v2734, %v2744
  %v2756 = vmul.f32 %v2735, %v2744
  %v2757 = vmul.f32 %v2736, %v2744
  %v2758 = vmul.f32 %v2737, %v2744
  %v2759 = vmul.f32 %v2738, %v2744
  %v2760 = vmul.f32 %v2739, %v2744
  %v2761 = vld [vmem:[%s8 + $0x5] sm:$0x1]
  %v2762 = vlaneseq
  %v2763 = vshrl.u32 %v2762, 7
  %v2764 = vsub.s32 0, %v2763
  %v2765 = vrot.slane %v2761, %v2764
  %v2766 = vadd.f32 %v2745, %v2765
  %v2767 = vadd.f32 %v2746, %v2765
  %v2768 = vadd.f32 %v2747, %v2765
  %v2769 = vadd.f32 %v2748, %v2765
  %v2770 = vadd.f32 %v2749, %v2765
  %v2771 = vadd.f32 %v2750, %v2765
  %v2772 = vadd.f32 %v2751, %v2765
  %v2773 = vadd.f32 %v2752, %v2765
  %v2774 = vadd.f32 %v2753, %v2765
  %v2775 = vadd.f32 %v2754, %v2765
  %v2776 = vadd.f32 %v2755, %v2765
  %v2777 = vadd.f32 %v2756, %v2765
  %v2778 = vadd.f32 %v2757, %v2765
  %v2779 = vadd.f32 %v2758, %v2765
  %v2780 = vadd.f32 %v2759, %v2765
  %v2781 = vadd.f32 %v2760, %v2765
  %v2782 = vpack.c.bf16 %v2767, %v2766
  %v2783 = vpack.c.bf16 %v2769, %v2768
  %v2784 = vpack.c.bf16 %v2771, %v2770
  %v2785 = vpack.c.bf16 %v2773, %v2772
  %v2786 = vpack.c.bf16 %v2775, %v2774
  %v2787 = vpack.c.bf16 %v2777, %v2776
  %v2788 = vpack.c.bf16 %v2779, %v2778
  %v2789 = vpack.c.bf16 %v2781, %v2780
  %v2790 = vld [vmem:[%s5] sm:$0xf]
  %v2791 = vld [vmem:[%s5 + $0x4] sm:$0xf]
  %v2792 = vld [vmem:[%s5 + $0x8] sm:$0xf]
  %v2793 = vld [vmem:[%s5 + $0xc] sm:$0xf]
  %v2794 = vld [vmem:[%s7] sm:$0x1]
  %v2796 = vlaneseq
  %v2797 = vshrl.u32 %v2796, 7
  %v2798 = vsub.s32 0, %v2797
  %v2799 = vrot.slane %v2794, %v2798
  %v2805 = vunpack.c.l.b16 %v2790
  %v2806 = vunpack.c.l.b16 %v2791
  %v2807 = vunpack.c.l.b16 %v2792
  %v2808 = vunpack.c.l.b16 %v2793
  %v2809 = vpack.c.b16 %v2806, %v2805
  %v2810 = vpack.c.b16 %v2808, %v2807
  %v2814 = vsel %vm80, %v2782, 0
  %v2817 = vsel %vm80, %v2783, 0
  %v2820 = vsel %vm80, %v2784, 0
  %v2823 = vsel %vm80, %v2785, 0
  %v2826 = vsel %vm80, %v2786, 0
  %v2829 = vsel %vm80, %v2787, 0
  %v2832 = vsel %vm80, %v2788, 0
  %v2835 = vsel %vm80, %v2789, 0
  %2837 = vmatprep.subr.bf16.mxu0 0
  %2838 = vmatpush1.bf16.msra.mxu0 0
  %2839 = vmatprep.subr.bf16.mxu0 0
  %2840 = vmatpush1.bf16.msra.mxu0 0
  %2841 = vmatprep.subr.bf16.mxu0 0
  %2842 = vmatpush1.bf16.msra.mxu0 0
  %2843 = vmatprep.subr.bf16.mxu0 0
  %2844 = vmatpush1.bf16.msra.mxu0 0
  %2845 = vmatprep.subr.bf16.mxu0 0
  %2846 = vmatpush1.bf16.msra.mxu0 0
  %2847 = vmatprep.subr.bf16.mxu0 0
  %2848 = vmatpush1.bf16.msra.mxu0 0
  %2849 = vmatprep.subr.bf16.mxu0 0
  %2850 = vmatpush1.bf16.msra.mxu0 %v2810
  %2851 = vmatprep.subr.bf16.mxu0 0
  %2852 = vmatpush1.bf16.msra.mxu0 %v2809
  %2853 = vmatprep.subr.bf16.mxu0 0
  %2854 = vmatpush2.bf16.msra.mxu0 0
  %2855 = vmatprep.subr.bf16.mxu0 0
  %2856 = vmatpush2.bf16.msra.mxu0 0
  %2857 = vmatprep.subr.bf16.mxu0 0
  %2858 = vmatpush2.bf16.msra.mxu0 0
  %2859 = vmatprep.subr.bf16.mxu0 0
  %2860 = vmatpush2.bf16.msra.mxu0 0
  %2861 = vmatprep.subr.bf16.mxu0 0
  %2862 = vmatpush2.bf16.msra.mxu0 0
  %2863 = vmatprep.subr.bf16.mxu0 0
  %2864 = vmatpush2.bf16.msra.mxu0 0
  %2865 = vmatprep.subr.bf16.mxu0 0
  %2866 = vmatpush2.bf16.msra.mxu0 0
  %2867 = vmatprep.subr.bf16.mxu0 0
  %2868 = vmatpush2.bf16.msra.mxu0 0
  %2869 = vmatprep.mubr.bf16.mxu0 0
  %2870 = vmatmul.mubr.bf16.gmra.mxu0 %v2814
  %v2871 = vpop.f32.mrf.mxu0
  %v2872 = vadd.f32 %v2799, %v2871
  %v2873 = vpop.f32.mrf.mxu0
  %v2874 = vpop.f32.mrf.mxu0
  %v2875 = vadd.f32 %v2799, %v2874
  %v2876 = vpop.f32.mrf.mxu0
  %2877 = vmatprep.mubr.bf16.mxu0 0
  %2878 = vmatmul.mubr.bf16.gmra.mxu0 %v2817
  %v2879 = vpop.f32.mrf.mxu0
  %v2880 = vadd.f32 %v2799, %v2879
  %v2881 = vpop.f32.mrf.mxu0
  %v2882 = vpop.f32.mrf.mxu0
  %v2883 = vadd.f32 %v2799, %v2882
  %v2884 = vpop.f32.mrf.mxu0
  %2885 = vmatprep.mubr.bf16.mxu0 0
  %2886 = vmatmul.mubr.bf16.gmra.mxu0 %v2820
  %v2887 = vpop.f32.mrf.mxu0
  %v2888 = vadd.f32 %v2799, %v2887
  %v2889 = vpop.f32.mrf.mxu0
  %v2890 = vpop.f32.mrf.mxu0
  %v2891 = vadd.f32 %v2799, %v2890
  %v2892 = vpop.f32.mrf.mxu0
  %2893 = vmatprep.mubr.bf16.mxu0 0
  %2894 = vmatmul.mubr.bf16.gmra.mxu0 %v2823
  %v2895 = vpop.f32.mrf.mxu0
  %v2896 = vadd.f32 %v2799, %v2895
  %v2897 = vpop.f32.mrf.mxu0
  %v2898 = vpop.f32.mrf.mxu0
  %v2899 = vadd.f32 %v2799, %v2898
  %v2900 = vpop.f32.mrf.mxu0
  %2901 = vmatprep.mubr.bf16.mxu0 0
  %2902 = vmatmul.mubr.bf16.gmra.mxu0 %v2826
  %v2903 = vpop.f32.mrf.mxu0
  %v2904 = vadd.f32 %v2799, %v2903
  %v2905 = vpop.f32.mrf.mxu0
  %v2906 = vpop.f32.mrf.mxu0
  %v2907 = vadd.f32 %v2799, %v2906
  %v2908 = vpop.f32.mrf.mxu0
  %2909 = vmatprep.mubr.bf16.mxu0 0
  %2910 = vmatmul.mubr.bf16.gmra.mxu0 %v2829
  %v2911 = vpop.f32.mrf.mxu0
  %v2912 = vadd.f32 %v2799, %v2911
  %v2913 = vpop.f32.mrf.mxu0
  %v2914 = vpop.f32.mrf.mxu0
  %v2915 = vadd.f32 %v2799, %v2914
  %v2916 = vpop.f32.mrf.mxu0
  %2917 = vmatprep.mubr.bf16.mxu0 0
  %2918 = vmatmul.mubr.bf16.gmra.mxu0 %v2832
  %v2919 = vpop.f32.mrf.mxu0
  %v2920 = vadd.f32 %v2799, %v2919
  %v2921 = vpop.f32.mrf.mxu0
  %v2922 = vpop.f32.mrf.mxu0
  %v2923 = vadd.f32 %v2799, %v2922
  %v2924 = vpop.f32.mrf.mxu0
  %2925 = vmatprep.mubr.bf16.mxu0 0
  %2926 = vmatmul.mubr.bf16.gmra.mxu0 %v2835
  %v2927 = vpop.f32.mrf.mxu0
  %v2928 = vadd.f32 %v2799, %v2927
  %v2929 = vpop.f32.mrf.mxu0
  %v2930 = vpop.f32.mrf.mxu0
  %v2931 = vadd.f32 %v2799, %v2930
  %v2932 = vpop.f32.mrf.mxu0
  %2933 = vdwg.mxu0
  %v2934 = vmax.f32 %v2872, 0.0
  %v2935 = vmax.f32 %v2875, 0.0
  %v2936 = vmax.f32 %v2880, 0.0
  %v2937 = vmax.f32 %v2883, 0.0
  %v2938 = vmax.f32 %v2888, 0.0
  %v2939 = vmax.f32 %v2891, 0.0
  %v2940 = vmax.f32 %v2896, 0.0
  %v2941 = vmax.f32 %v2899, 0.0
  %v2942 = vmax.f32 %v2904, 0.0
  %v2943 = vmax.f32 %v2907, 0.0
  %v2944 = vmax.f32 %v2912, 0.0
  %v2945 = vmax.f32 %v2915, 0.0
  %v2946 = vmax.f32 %v2920, 0.0
  %v2947 = vmax.f32 %v2923, 0.0
  %v2948 = vmax.f32 %v2928, 0.0
  %v2949 = vmax.f32 %v2931, 0.0
  %v2950 = vpack.c.bf16 %v2935, %v2934
  %v2951 = vpack.c.bf16 %v2937, %v2936
  %v2952 = vpack.c.bf16 %v2939, %v2938
  %v2953 = vpack.c.bf16 %v2941, %v2940
  %v2954 = vpack.c.bf16 %v2943, %v2942
  %v2955 = vpack.c.bf16 %v2945, %v2944
  %v2956 = vpack.c.bf16 %v2947, %v2946
  %v2957 = vpack.c.bf16 %v2949, %v2948
  %v2958 = vld [vmem:[%s6] sm:$0xf]
  %v2959 = vld [vmem:[%s6 + $0x4] sm:$0xf]
  %v2960 = vld [vmem:[%s6 + $0x8] sm:$0xf]
  %v2961 = vld [vmem:[%s6 + $0xc] sm:$0xf]
  %v2962 = vld [vmem:[%s6 + $0x10] sm:$0xf]
  %v2963 = vld [vmem:[%s6 + $0x14] sm:$0xf]
  %v2964 = vld [vmem:[%s6 + $0x18] sm:$0xf]
  %v2965 = vld [vmem:[%s6 + $0x1c] sm:$0xf]
  %v2966 = vld [vmem:[%s8 + $0x6] sm:$0x1]
  %v2967 = vlaneseq
  %v2968 = vshrl.u32 %v2967, 7
  %v2969 = vsub.s32 0, %v2968
  %v2970 = vrot.slane %v2966, %v2969
  %v2979 = vunpack.c.l.b16 %v2958
  %v2980 = vunpack.c.l.b16 %v2959
  %v2981 = vunpack.c.l.b16 %v2960
  %v2982 = vunpack.c.l.b16 %v2961
  %v2983 = vunpack.c.l.b16 %v2962
  %v2984 = vunpack.c.l.b16 %v2963
  %v2985 = vunpack.c.l.b16 %v2964
  %v2986 = vunpack.c.l.b16 %v2965
  %v2987 = vpack.c.b16 %v2980, %v2979
  %v2988 = vpack.c.b16 %v2982, %v2981
  %v2989 = vpack.c.b16 %v2984, %v2983
  %v2990 = vpack.c.b16 %v2986, %v2985
  %v2996 = vsel %vm781, %v2950, 0
  %v2999 = vsel %vm781, %v2951, 0
  %v3002 = vsel %vm781, %v2952, 0
  %v3005 = vsel %vm781, %v2953, 0
  %v3008 = vsel %vm781, %v2954, 0
  %v3011 = vsel %vm781, %v2955, 0
  %v3014 = vsel %vm781, %v2956, 0
  %v3017 = vsel %vm781, %v2957, 0
  %3019 = vmatprep.subr.bf16.mxu0 0
  %3020 = vmatpush1.bf16.msra.mxu0 0
  %3021 = vmatprep.subr.bf16.mxu0 0
  %3022 = vmatpush1.bf16.msra.mxu0 0
  %3023 = vmatprep.subr.bf16.mxu0 0
  %3024 = vmatpush1.bf16.msra.mxu0 0
  %3025 = vmatprep.subr.bf16.mxu0 0
  %3026 = vmatpush1.bf16.msra.mxu0 0
  %3027 = vmatprep.subr.bf16.mxu0 0
  %3028 = vmatpush1.bf16.msra.mxu0 %v2990
  %3029 = vmatprep.subr.bf16.mxu0 0
  %3030 = vmatpush1.bf16.msra.mxu0 %v2989
  %3031 = vmatprep.subr.bf16.mxu0 0
  %3032 = vmatpush1.bf16.msra.mxu0 %v2988
  %3033 = vmatprep.subr.bf16.mxu0 0
  %3034 = vmatpush1.bf16.msra.mxu0 %v2987
  %3035 = vmatprep.subr.bf16.mxu0 0
  %3036 = vmatpush2.bf16.msra.mxu0 0
  %3037 = vmatprep.subr.bf16.mxu0 0
  %3038 = vmatpush2.bf16.msra.mxu0 0
  %3039 = vmatprep.subr.bf16.mxu0 0
  %3040 = vmatpush2.bf16.msra.mxu0 0
  %3041 = vmatprep.subr.bf16.mxu0 0
  %3042 = vmatpush2.bf16.msra.mxu0 0
  %3043 = vmatprep.subr.bf16.mxu0 0
  %3044 = vmatpush2.bf16.msra.mxu0 0
  %3045 = vmatprep.subr.bf16.mxu0 0
  %3046 = vmatpush2.bf16.msra.mxu0 0
  %3047 = vmatprep.subr.bf16.mxu0 0
  %3048 = vmatpush2.bf16.msra.mxu0 0
  %3049 = vmatprep.subr.bf16.mxu0 0
  %3050 = vmatpush2.bf16.msra.mxu0 0
  %3051 = vmatprep.mubr.bf16.mxu0 0
  %3052 = vmatmul.mubr.bf16.gmra.mxu0 %v2996
  %v3053 = vpop.f32.mrf.mxu0
  %v3054 = vadd.f32 %v2970, %v3053
  %v3055 = vpop.f32.mrf.mxu0
  %v3056 = vpop.f32.mrf.mxu0
  %v3057 = vadd.f32 %v2970, %v3056
  %v3058 = vpop.f32.mrf.mxu0
  %3059 = vmatprep.mubr.bf16.mxu0 0
  %3060 = vmatmul.mubr.bf16.gmra.mxu0 %v2999
  %v3061 = vpop.f32.mrf.mxu0
  %v3062 = vadd.f32 %v2970, %v3061
  %v3063 = vpop.f32.mrf.mxu0
  %v3064 = vpop.f32.mrf.mxu0
  %v3065 = vadd.f32 %v2970, %v3064
  %v3066 = vpop.f32.mrf.mxu0
  %3067 = vmatprep.mubr.bf16.mxu0 0
  %3068 = vmatmul.mubr.bf16.gmra.mxu0 %v3002
  %v3069 = vpop.f32.mrf.mxu0
  %v3070 = vadd.f32 %v2970, %v3069
  %v3071 = vpop.f32.mrf.mxu0
  %v3072 = vpop.f32.mrf.mxu0
  %v3073 = vadd.f32 %v2970, %v3072
  %v3074 = vpop.f32.mrf.mxu0
  %3075 = vmatprep.mubr.bf16.mxu0 0
  %3076 = vmatmul.mubr.bf16.gmra.mxu0 %v3005
  %v3077 = vpop.f32.mrf.mxu0
  %v3078 = vadd.f32 %v2970, %v3077
  %v3079 = vpop.f32.mrf.mxu0
  %v3080 = vpop.f32.mrf.mxu0
  %v3081 = vadd.f32 %v2970, %v3080
  %v3082 = vpop.f32.mrf.mxu0
  %3083 = vmatprep.mubr.bf16.mxu0 0
  %3084 = vmatmul.mubr.bf16.gmra.mxu0 %v3008
  %v3085 = vpop.f32.mrf.mxu0
  %v3086 = vadd.f32 %v2970, %v3085
  %v3087 = vpop.f32.mrf.mxu0
  %v3088 = vpop.f32.mrf.mxu0
  %v3089 = vadd.f32 %v2970, %v3088
  %v3090 = vpop.f32.mrf.mxu0
  %3091 = vmatprep.mubr.bf16.mxu0 0
  %3092 = vmatmul.mubr.bf16.gmra.mxu0 %v3011
  %v3093 = vpop.f32.mrf.mxu0
  %v3094 = vadd.f32 %v2970, %v3093
  %v3095 = vpop.f32.mrf.mxu0
  %v3096 = vpop.f32.mrf.mxu0
  %v3097 = vadd.f32 %v2970, %v3096
  %v3098 = vpop.f32.mrf.mxu0
  %3099 = vmatprep.mubr.bf16.mxu0 0
  %3100 = vmatmul.mubr.bf16.gmra.mxu0 %v3014
  %v3101 = vpop.f32.mrf.mxu0
  %v3102 = vadd.f32 %v2970, %v3101
  %v3103 = vpop.f32.mrf.mxu0
  %v3104 = vpop.f32.mrf.mxu0
  %v3105 = vadd.f32 %v2970, %v3104
  %v3106 = vpop.f32.mrf.mxu0
  %3107 = vmatprep.mubr.bf16.mxu0 0
  %3108 = vmatmul.mubr.bf16.gmra.mxu0 %v3017
  %v3109 = vpop.f32.mrf.mxu0
  %v3110 = vadd.f32 %v2970, %v3109
  %v3111 = vpop.f32.mrf.mxu0
  %v3112 = vpop.f32.mrf.mxu0
  %v3113 = vadd.f32 %v2970, %v3112
  %v3114 = vpop.f32.mrf.mxu0
  %3115 = vdwg.mxu0
  %v3116 = vadd.f32 %v2766, %v3054
  %v3117 = vadd.f32 %v2767, %v3057
  %v3118 = vadd.f32 %v2768, %v3062
  %v3119 = vadd.f32 %v2769, %v3065
  %v3120 = vadd.f32 %v2770, %v3070
  %v3121 = vadd.f32 %v2771, %v3073
  %v3122 = vadd.f32 %v2772, %v3078
  %v3123 = vadd.f32 %v2773, %v3081
  %v3124 = vadd.f32 %v2774, %v3086
  %v3125 = vadd.f32 %v2775, %v3089
  %v3126 = vadd.f32 %v2776, %v3094
  %v3127 = vadd.f32 %v2777, %v3097
  %v3128 = vadd.f32 %v2778, %v3102
  %v3129 = vadd.f32 %v2779, %v3105
  %v3130 = vadd.f32 %v2780, %v3110
  %v3131 = vadd.f32 %v2781, %v3113
  %v3132 = vsel %vm80, %v3116, 0.0
  %3133 = vadd.xlane.f32.xlu0 %v3132
  %v3134 = vpop.xlane.xlu0 %3133
  %v3135 = vsel %vm80, %v3117, 0.0
  %3136 = vadd.xlane.f32.xlu0 %v3135
  %v3137 = vpop.xlane.xlu0 %3136
  %v3138 = vsel %vm80, %v3118, 0.0
  %3139 = vadd.xlane.f32.xlu0 %v3138
  %v3140 = vpop.xlane.xlu0 %3139
  %v3141 = vsel %vm80, %v3119, 0.0
  %3142 = vadd.xlane.f32.xlu0 %v3141
  %v3143 = vpop.xlane.xlu0 %3142
  %v3144 = vsel %vm80, %v3120, 0.0
  %3145 = vadd.xlane.f32.xlu0 %v3144
  %v3146 = vpop.xlane.xlu0 %3145
  %v3147 = vsel %vm80, %v3121, 0.0
  %3148 = vadd.xlane.f32.xlu0 %v3147
  %v3149 = vpop.xlane.xlu0 %3148
  %v3150 = vsel %vm80, %v3122, 0.0
  %3151 = vadd.xlane.f32.xlu0 %v3150
  %v3152 = vpop.xlane.xlu0 %3151
  %v3153 = vsel %vm80, %v3123, 0.0
  %3154 = vadd.xlane.f32.xlu0 %v3153
  %v3155 = vpop.xlane.xlu0 %3154
  %v3156 = vsel %vm80, %v3124, 0.0
  %3157 = vadd.xlane.f32.xlu0 %v3156
  %v3158 = vpop.xlane.xlu0 %3157
  %v3159 = vsel %vm80, %v3125, 0.0
  %3160 = vadd.xlane.f32.xlu0 %v3159
  %v3161 = vpop.xlane.xlu0 %3160
  %v3162 = vsel %vm80, %v3126, 0.0
  %3163 = vadd.xlane.f32.xlu0 %v3162
  %v3164 = vpop.xlane.xlu0 %3163
  %v3165 = vsel %vm80, %v3127, 0.0
  %3166 = vadd.xlane.f32.xlu0 %v3165
  %v3167 = vpop.xlane.xlu0 %3166
  %v3168 = vsel %vm80, %v3128, 0.0
  %3169 = vadd.xlane.f32.xlu0 %v3168
  %v3170 = vpop.xlane.xlu0 %3169
  %v3171 = vsel %vm80, %v3129, 0.0
  %3172 = vadd.xlane.f32.xlu0 %v3171
  %v3173 = vpop.xlane.xlu0 %3172
  %v3174 = vsel %vm80, %v3130, 0.0
  %3175 = vadd.xlane.f32.xlu0 %v3174
  %v3176 = vpop.xlane.xlu0 %3175
  %v3177 = vsel %vm80, %v3131, 0.0
  %3178 = vadd.xlane.f32.xlu0 %v3177
  %v3179 = vpop.xlane.xlu0 %3178
  %v3180 = vmul.f32 %v3134, %v2579
  %v3181 = vmul.f32 %v3137, %v2579
  %v3182 = vmul.f32 %v3140, %v2579
  %v3183 = vmul.f32 %v3143, %v2579
  %v3184 = vmul.f32 %v3146, %v2579
  %v3185 = vmul.f32 %v3149, %v2579
  %v3186 = vmul.f32 %v3152, %v2579
  %v3187 = vmul.f32 %v3155, %v2579
  %v3188 = vmul.f32 %v3158, %v2579
  %v3189 = vmul.f32 %v3161, %v2579
  %v3190 = vmul.f32 %v3164, %v2579
  %v3191 = vmul.f32 %v3167, %v2579
  %v3192 = vmul.f32 %v3170, %v2579
  %v3193 = vmul.f32 %v3173, %v2579
  %v3194 = vmul.f32 %v3176, %v2579
  %v3195 = vmul.f32 %v3179, %v2579
  %v3196 = vsub.f32 %v3116, %v3180
  %v3197 = vsub.f32 %v3117, %v3181
  %v3198 = vsub.f32 %v3118, %v3182
  %v3199 = vsub.f32 %v3119, %v3183
  %v3200 = vsub.f32 %v3120, %v3184
  %v3201 = vsub.f32 %v3121, %v3185
  %v3202 = vsub.f32 %v3122, %v3186
  %v3203 = vsub.f32 %v3123, %v3187
  %v3204 = vsub.f32 %v3124, %v3188
  %v3205 = vsub.f32 %v3125, %v3189
  %v3206 = vsub.f32 %v3126, %v3190
  %v3207 = vsub.f32 %v3127, %v3191
  %v3208 = vsub.f32 %v3128, %v3192
  %v3209 = vsub.f32 %v3129, %v3193
  %v3210 = vsub.f32 %v3130, %v3194
  %v3211 = vsub.f32 %v3131, %v3195
  %v3212 = vmul.f32 %v3196, %v3196
  %v3213 = vmul.f32 %v3197, %v3197
  %v3214 = vmul.f32 %v3198, %v3198
  %v3215 = vmul.f32 %v3199, %v3199
  %v3216 = vmul.f32 %v3200, %v3200
  %v3217 = vmul.f32 %v3201, %v3201
  %v3218 = vmul.f32 %v3202, %v3202
  %v3219 = vmul.f32 %v3203, %v3203
  %v3220 = vmul.f32 %v3204, %v3204
  %v3221 = vmul.f32 %v3205, %v3205
  %v3222 = vmul.f32 %v3206, %v3206
  %v3223 = vmul.f32 %v3207, %v3207
  %v3224 = vmul.f32 %v3208, %v3208
  %v3225 = vmul.f32 %v3209, %v3209
  %v3226 = vmul.f32 %v3210, %v3210
  %v3227 = vmul.f32 %v3211, %v3211
  %v3228 = vsel %vm80, %v3212, 0.0
  %3229 = vadd.xlane.f32.xlu0 %v3228
  %v3230 = vpop.xlane.xlu0 %3229
  %v3231 = vsel %vm80, %v3213, 0.0
  %3232 = vadd.xlane.f32.xlu0 %v3231
  %v3233 = vpop.xlane.xlu0 %3232
  %v3234 = vsel %vm80, %v3214, 0.0
  %3235 = vadd.xlane.f32.xlu0 %v3234
  %v3236 = vpop.xlane.xlu0 %3235
  %v3237 = vsel %vm80, %v3215, 0.0
  %3238 = vadd.xlane.f32.xlu0 %v3237
  %v3239 = vpop.xlane.xlu0 %3238
  %v3240 = vsel %vm80, %v3216, 0.0
  %3241 = vadd.xlane.f32.xlu0 %v3240
  %v3242 = vpop.xlane.xlu0 %3241
  %v3243 = vsel %vm80, %v3217, 0.0
  %3244 = vadd.xlane.f32.xlu0 %v3243
  %v3245 = vpop.xlane.xlu0 %3244
  %v3246 = vsel %vm80, %v3218, 0.0
  %3247 = vadd.xlane.f32.xlu0 %v3246
  %v3248 = vpop.xlane.xlu0 %3247
  %v3249 = vsel %vm80, %v3219, 0.0
  %3250 = vadd.xlane.f32.xlu0 %v3249
  %v3251 = vpop.xlane.xlu0 %3250
  %v3252 = vsel %vm80, %v3220, 0.0
  %3253 = vadd.xlane.f32.xlu0 %v3252
  %v3254 = vpop.xlane.xlu0 %3253
  %v3255 = vsel %vm80, %v3221, 0.0
  %3256 = vadd.xlane.f32.xlu0 %v3255
  %v3257 = vpop.xlane.xlu0 %3256
  %v3258 = vsel %vm80, %v3222, 0.0
  %3259 = vadd.xlane.f32.xlu0 %v3258
  %v3260 = vpop.xlane.xlu0 %3259
  %v3261 = vsel %vm80, %v3223, 0.0
  %3262 = vadd.xlane.f32.xlu0 %v3261
  %v3263 = vpop.xlane.xlu0 %3262
  %v3264 = vsel %vm80, %v3224, 0.0
  %3265 = vadd.xlane.f32.xlu0 %v3264
  %v3266 = vpop.xlane.xlu0 %3265
  %v3267 = vsel %vm80, %v3225, 0.0
  %3268 = vadd.xlane.f32.xlu0 %v3267
  %v3269 = vpop.xlane.xlu0 %3268
  %v3270 = vsel %vm80, %v3226, 0.0
  %3271 = vadd.xlane.f32.xlu0 %v3270
  %v3272 = vpop.xlane.xlu0 %3271
  %v3273 = vsel %vm80, %v3227, 0.0
  %3274 = vadd.xlane.f32.xlu0 %v3273
  %v3275 = vpop.xlane.xlu0 %3274
  %v3276 = vmul.f32 %v3230, %v2579
  %v3277 = vmul.f32 %v3233, %v2579
  %v3278 = vmul.f32 %v3236, %v2579
  %v3279 = vmul.f32 %v3239, %v2579
  %v3280 = vmul.f32 %v3242, %v2579
  %v3281 = vmul.f32 %v3245, %v2579
  %v3282 = vmul.f32 %v3248, %v2579
  %v3283 = vmul.f32 %v3251, %v2579
  %v3284 = vmul.f32 %v3254, %v2579
  %v3285 = vmul.f32 %v3257, %v2579
  %v3286 = vmul.f32 %v3260, %v2579
  %v3287 = vmul.f32 %v3263, %v2579
  %v3288 = vmul.f32 %v3266, %v2579
  %v3289 = vmul.f32 %v3269, %v2579
  %v3290 = vmul.f32 %v3272, %v2579
  %v3291 = vmul.f32 %v3275, %v2579
  %v3292 = vadd.f32 %v3276, 1e-05
  %v3293 = vadd.f32 %v3277, 1e-05
  %v3294 = vadd.f32 %v3278, 1e-05
  %v3295 = vadd.f32 %v3279, 1e-05
  %v3296 = vadd.f32 %v3280, 1e-05
  %v3297 = vadd.f32 %v3281, 1e-05
  %v3298 = vadd.f32 %v3282, 1e-05
  %v3299 = vadd.f32 %v3283, 1e-05
  %v3300 = vadd.f32 %v3284, 1e-05
  %v3301 = vadd.f32 %v3285, 1e-05
  %v3302 = vadd.f32 %v3286, 1e-05
  %v3303 = vadd.f32 %v3287, 1e-05
  %v3304 = vadd.f32 %v3288, 1e-05
  %v3305 = vadd.f32 %v3289, 1e-05
  %v3306 = vadd.f32 %v3290, 1e-05
  %v3307 = vadd.f32 %v3291, 1e-05
  %v3308 = vrsqrt.pop %v3292
  %v3309 = vrsqrt.pop %v3293
  %v3310 = vrsqrt.pop %v3294
  %v3311 = vrsqrt.pop %v3295
  %v3312 = vrsqrt.pop %v3296
  %v3313 = vrsqrt.pop %v3297
  %v3314 = vrsqrt.pop %v3298
  %v3315 = vrsqrt.pop %v3299
  %v3316 = vrsqrt.pop %v3300
  %v3317 = vrsqrt.pop %v3301
  %v3318 = vrsqrt.pop %v3302
  %v3319 = vrsqrt.pop %v3303
  %v3320 = vrsqrt.pop %v3304
  %v3321 = vrsqrt.pop %v3305
  %v3322 = vrsqrt.pop %v3306
  %v3323 = vrsqrt.pop %v3307
  %v3324 = vmul.f32 %v3196, %v3308
  %v3325 = vmul.f32 %v3197, %v3309
  %v3326 = vmul.f32 %v3198, %v3310
  %v3327 = vmul.f32 %v3199, %v3311
  %v3328 = vmul.f32 %v3200, %v3312
  %v3329 = vmul.f32 %v3201, %v3313
  %v3330 = vmul.f32 %v3202, %v3314
  %v3331 = vmul.f32 %v3203, %v3315
  %v3332 = vmul.f32 %v3204, %v3316
  %v3333 = vmul.f32 %v3205, %v3317
  %v3334 = vmul.f32 %v3206, %v3318
  %v3335 = vmul.f32 %v3207, %v3319
  %v3336 = vmul.f32 %v3208, %v3320
  %v3337 = vmul.f32 %v3209, %v3321
  %v3338 = vmul.f32 %v3210, %v3322
  %v3339 = vmul.f32 %v3211, %v3323
  %v3340 = vld [vmem:[%s8 + $0x7] sm:$0x1]
  %v3341 = vlaneseq
  %v3342 = vshrl.u32 %v3341, 7
  %v3343 = vsub.s32 0, %v3342
  %v3344 = vrot.slane %v3340, %v3343
  %v3345 = vmul.f32 %v3324, %v3344
  %v3346 = vmul.f32 %v3325, %v3344
  %v3347 = vmul.f32 %v3326, %v3344
  %v3348 = vmul.f32 %v3327, %v3344
  %v3349 = vmul.f32 %v3328, %v3344
  %v3350 = vmul.f32 %v3329, %v3344
  %v3351 = vmul.f32 %v3330, %v3344
  %v3352 = vmul.f32 %v3331, %v3344
  %v3353 = vmul.f32 %v3332, %v3344
  %v3354 = vmul.f32 %v3333, %v3344
  %v3355 = vmul.f32 %v3334, %v3344
  %v3356 = vmul.f32 %v3335, %v3344
  %v3357 = vmul.f32 %v3336, %v3344
  %v3358 = vmul.f32 %v3337, %v3344
  %v3359 = vmul.f32 %v3338, %v3344
  %v3360 = vmul.f32 %v3339, %v3344
  %v3361 = vld [vmem:[%s8 + $0x8] sm:$0x1]
  %v3362 = vlaneseq
  %v3363 = vshrl.u32 %v3362, 7
  %v3364 = vsub.s32 0, %v3363
  %v3365 = vrot.slane %v3361, %v3364
  %v3366 = vadd.f32 %v3345, %v3365
  %v3367 = vadd.f32 %v3346, %v3365
  %v3368 = vadd.f32 %v3347, %v3365
  %v3369 = vadd.f32 %v3348, %v3365
  %v3370 = vadd.f32 %v3349, %v3365
  %v3371 = vadd.f32 %v3350, %v3365
  %v3372 = vadd.f32 %v3351, %v3365
  %v3373 = vadd.f32 %v3352, %v3365
  %v3374 = vadd.f32 %v3353, %v3365
  %v3375 = vadd.f32 %v3354, %v3365
  %v3376 = vadd.f32 %v3355, %v3365
  %v3377 = vadd.f32 %v3356, %v3365
  %v3378 = vadd.f32 %v3357, %v3365
  %v3379 = vadd.f32 %v3358, %v3365
  %v3380 = vadd.f32 %v3359, %v3365
  %v3381 = vadd.f32 %v3360, %v3365
  %3382 = vst.msk [vmem:[%s9] sm:$0xff] %vm80, %v3366
  %3383 = vst.msk [vmem:[%s9 + $0x8] sm:$0xff] %vm80, %v3367
  %3384 = vst.msk [vmem:[%s9 + $0x10] sm:$0xff] %vm80, %v3368
  %3385 = vst.msk [vmem:[%s9 + $0x18] sm:$0xff] %vm80, %v3369
  %3386 = vst.msk [vmem:[%s9 + $0x20] sm:$0xff] %vm80, %v3370
  %3387 = vst.msk [vmem:[%s9 + $0x28] sm:$0xff] %vm80, %v3371
  %3388 = vst.msk [vmem:[%s9 + $0x30] sm:$0xff] %vm80, %v3372
  %3389 = vst.msk [vmem:[%s9 + $0x38] sm:$0xff] %vm80, %v3373
  %3390 = vst.msk [vmem:[%s9 + $0x40] sm:$0xff] %vm80, %v3374
  %3391 = vst.msk [vmem:[%s9 + $0x48] sm:$0xff] %vm80, %v3375
  %3392 = vst.msk [vmem:[%s9 + $0x50] sm:$0xff] %vm80, %v3376
  %3393 = vst.msk [vmem:[%s9 + $0x58] sm:$0xff] %vm80, %v3377
  %3394 = vst.msk [vmem:[%s9 + $0x60] sm:$0xff] %vm80, %v3378
  %3395 = vst.msk [vmem:[%s9 + $0x68] sm:$0xff] %vm80, %v3379
  %3396 = vst.msk [vmem:[%s9 + $0x70] sm:$0xff] %vm80, %v3380
  %3397 = vst.msk [vmem:[%s9 + $0x78] sm:$0xff] %vm80, %v3381
  // Predicated region
  $region38: #{tpu_custom_call.1} parent=0 // pred_check
    _
  $region39: #{tpu_custom_call.1} parent=0 // pred_check_branch
    %3399 = sbr.rel (0) target = $region41
  $region40: #{tpu_custom_call.1} parent=0 // pred_region
    _
  $region41: #{tpu_custom_call.1} parent=0 // pred_fallthru
    _
  // Predicated region
  $region42: #{tpu_custom_call.1} parent=0 // pred_check
    _
  $region43: #{tpu_custom_call.1} parent=0 // pred_check_branch
    %3401 = sbr.rel (0) target = $region45
  $region44: #{tpu_custom_call.1} parent=0 // pred_region
    _
  $region45: #{tpu_custom_call.1} parent=0 // pred_fallthru
    _

</llo_original>
